<compile_context>
chip_gen: v7x
topology: tpu7x:2x2x1
jax: 0.10.0
libtpu: 0.0.40
codegen_flags: <defaults>
</compile_context>

<pallas_src>
import numpy as np
import jax
import jax.numpy as jnp
from jax.experimental import pallas as pl
from jax.experimental.pallas import tpu as pltpu


# ---------------------------------------------------------------------------
# Pallas kernel: whole forward pass (both LSTM recurrences + output projection)
# ---------------------------------------------------------------------------
def seq2seq2_kernel(x_ref, w_ih1_ref, w_hh1_ref, b1_ref,
                    w_ih2_ref, w_hh2_ref, b2_ref,
                    w_lin_ref, b_lin_ref, y_ref):
    # Shapes (all static): x_ref (B, T_in*D), y_ref (B, T_out*O)
    B = x_ref.shape[0]
    D = w_ih1_ref.shape[0]
    H = w_hh1_ref.shape[0]
    O = w_lin_ref.shape[1]
    T_in = x_ref.shape[1] // D
    T_out = y_ref.shape[1] // O

    x = x_ref[...]                                   # (B, T_in*D), tiny, VMEM resident
    w_ih1 = w_ih1_ref[...]; w_hh1 = w_hh1_ref[...]; b1 = b1_ref[...]
    w_ih2 = w_ih2_ref[...]; w_hh2 = w_hh2_ref[...]; b2 = b2_ref[...]
    w_lin = w_lin_ref[...]; b_lin = b_lin_ref[...]

    # ---- Hoisted encoder input projections (independent of h -> off critical path).
    #      pre1[t] = x_t @ W_ih1 + b1, with x_t a static lane slice of the 2D x slab.
    pre1 = [jnp.dot(x[:, t * D:(t + 1) * D], w_ih1,
                    preferred_element_type=jnp.float32) + b1
            for t in range(T_in)]

    def lstm_cell(pre_t, h, c, w_hh):
        # Only the h @ W_hh matmul sits on the serial dependence chain.
        gates = pre_t + jnp.dot(h, w_hh, preferred_element_type=jnp.float32)
        i = jax.nn.sigmoid(gates[:, 0:H])
        f = jax.nn.sigmoid(gates[:, H:2 * H])
        g = jnp.tanh(gates[:, 2 * H:3 * H])
        o = jax.nn.sigmoid(gates[:, 3 * H:4 * H])
        c_new = f * c + i * g
        h_new = o * jnp.tanh(c_new)
        return h_new, c_new

    # ---- Encoder LSTM (rnn1): keep only the final (h, c). Fully unrolled (static T_in).
    h = jnp.zeros((B, H), jnp.float32)
    c = jnp.zeros((B, H), jnp.float32)
    for t in range(T_in):
        h, c = lstm_cell(pre1[t], h, c, w_hh1)
    h_enc, c_enc = h, c

    # ---- Decoder LSTM (rnn2): input is time_repeat(h_enc), so its input projection
    #      is loop-invariant -> compute once (bias folded in here too).
    pre2 = jnp.dot(h_enc, w_ih2, preferred_element_type=jnp.float32) + b2

    h, c = h_enc, c_enc
    hs = []
    for _ in range(T_out):                           # fully unrolled (static T_out)
        h, c = lstm_cell(pre2, h, c, w_hh2)
        hs.append(h)

    # ---- Output projection, off the recurrence: project each collected hidden state,
    #      lane-concatenate into one (B, T_out*O) slab and store once.
    ys = [jnp.dot(ht, w_lin, preferred_element_type=jnp.float32) + b_lin
          for ht in hs]
    y_ref[...] = jnp.concatenate(ys, axis=-1).astype(y_ref.dtype)


# ---------------------------------------------------------------------------
# Wrapper (no transposes: only free reshapes on both ends)
# ---------------------------------------------------------------------------
def seq2seq2_forward(x, params, output_shape):
    """x: (B, T_in, D) float32 -> (B, T_out, O) float32."""
    T_out, O = output_shape
    B, T_in, D = x.shape
    x2 = x.reshape(B, T_in * D)                      # row-major view change, no data movement

    y2 = pl.pallas_call(
        seq2seq2_kernel,
        out_shape=jax.ShapeDtypeStruct((B, T_out * O), jnp.float32),
        in_specs=[pl.BlockSpec(memory_space=pltpu.MemorySpace.VMEM)] * 9,
        out_specs=pl.BlockSpec(memory_space=pltpu.MemorySpace.VMEM),
    )(x2, *params)

    return y2.reshape(B, T_out, O)                   # free reshape back to (B, T_out, O)


# ---------------------------------------------------------------------------
# Pure-JAX reference (same math, no Pallas) for a correctness check
# ---------------------------------------------------------------------------
def seq2seq2_reference(x, params, output_shape):
    w_ih1, w_hh1, b1, w_ih2, w_hh2, b2, w_lin, b_lin = params
    T_out, O = output_shape
    B, T_in, _ = x.shape
    H = w_hh1.shape[0]

    def cell(xt, h, c, w_ih, w_hh, b):
        gates = xt @ w_ih + h @ w_hh + b
        i = jax.nn.sigmoid(gates[:, 0:H])
        f = jax.nn.sigmoid(gates[:, H:2 * H])
        g = jnp.tanh(gates[:, 2 * H:3 * H])
        o = jax.nn.sigmoid(gates[:, 3 * H:4 * H])
        c = f * c + i * g
        h = o * jnp.tanh(c)
        return h, c

    h = jnp.zeros((B, H), jnp.float32)
    c = jnp.zeros((B, H), jnp.float32)
    for t in range(T_in):
        h, c = cell(x[:, t, :], h, c, w_ih1, w_hh1, b1)
    h_enc, c_enc = h, c

    ys = []
    h, c = h_enc, c_enc
    for _ in range(T_out):
        h, c = cell(h_enc, h, c, w_ih2, w_hh2, b2)
        ys.append(h @ w_lin + b_lin)
    return jnp.stack(ys, axis=1)


# ---------------------------------------------------------------------------
# Main
# ---------------------------------------------------------------------------
if __name__ == "__main__":
    # Module config: input_shape=(T_in, D), output_shape=(T_out, O), hidden_size=H
    T_in, D = 8, 4
    T_out, O = 6, 8
    H = 16
    B = 2

    key = jax.random.PRNGKey(0)
    ks = jax.random.split(key, 9)
    scale = 0.2

    w_ih1 = scale * jax.random.normal(ks[0], (D, 4 * H), jnp.float32)
    w_hh1 = scale * jax.random.normal(ks[1], (H, 4 * H), jnp.float32)
    b1    = scale * jax.random.normal(ks[2], (1, 4 * H), jnp.float32)
    w_ih2 = scale * jax.random.normal(ks[3], (H, 4 * H), jnp.float32)
    w_hh2 = scale * jax.random.normal(ks[4], (H, 4 * H), jnp.float32)
    b2    = scale * jax.random.normal(ks[5], (1, 4 * H), jnp.float32)
    # lin is present because hidden_size (16) != output_shape[1] (8)
    w_lin = scale * jax.random.normal(ks[6], (H, O), jnp.float32)
    b_lin = scale * jax.random.normal(ks[7], (1, O), jnp.float32)

    params = (w_ih1, w_hh1, b1, w_ih2, w_hh2, b2, w_lin, b_lin)

    x = jax.random.normal(ks[8], (B, T_in, D), jnp.float32)

    y = seq2seq2_forward(x, params, (T_out, O))
    y = jax.block_until_ready(y)

    y_ref = seq2seq2_reference(x, params, (T_out, O))
    np.testing.assert_allclose(np.asarray(y), np.asarray(y_ref), rtol=1e-4, atol=1e-5)

    assert y.shape == (B, T_out, O)
    print("KERNEL_OK")
</pallas_src>

<mosaic_0001>
module attributes {stable_mosaic.version = 11 : i64} {
  func.func @seq2seq2_kernel(%arg0: memref<2x32xf32, #tpu.memory_space<vmem>>, %arg1: memref<4x64xf32, #tpu.memory_space<vmem>>, %arg2: memref<16x64xf32, #tpu.memory_space<vmem>>, %arg3: memref<1x64xf32, #tpu.memory_space<vmem>>, %arg4: memref<16x64xf32, #tpu.memory_space<vmem>>, %arg5: memref<16x64xf32, #tpu.memory_space<vmem>>, %arg6: memref<1x64xf32, #tpu.memory_space<vmem>>, %arg7: memref<16x8xf32, #tpu.memory_space<vmem>>, %arg8: memref<1x8xf32, #tpu.memory_space<vmem>>, %arg9: memref<2x48xf32, #tpu.memory_space<vmem>>) attributes {dimension_semantics = [], scalar_prefetch = 0 : i64, scratch_operands = 0 : i64, tpu.core_type = #tpu.core_type<tc>} {
    %c0 = arith.constant 0 : index
    %c0_0 = arith.constant 0 : index
    %0 = vector.load %arg0[%c0, %c0_0] : memref<2x32xf32, #tpu.memory_space<vmem>>, vector<2x32xf32>
    %c0_1 = arith.constant 0 : index
    %c0_2 = arith.constant 0 : index
    %1 = vector.load %arg1[%c0_1, %c0_2] : memref<4x64xf32, #tpu.memory_space<vmem>>, vector<4x64xf32>
    %c0_3 = arith.constant 0 : index
    %c0_4 = arith.constant 0 : index
    %2 = vector.load %arg2[%c0_3, %c0_4] : memref<16x64xf32, #tpu.memory_space<vmem>>, vector<16x64xf32>
    %c0_5 = arith.constant 0 : index
    %c0_6 = arith.constant 0 : index
    %3 = vector.load %arg3[%c0_5, %c0_6] : memref<1x64xf32, #tpu.memory_space<vmem>>, vector<1x64xf32>
    %c0_7 = arith.constant 0 : index
    %c0_8 = arith.constant 0 : index
    %4 = vector.load %arg4[%c0_7, %c0_8] : memref<16x64xf32, #tpu.memory_space<vmem>>, vector<16x64xf32>
    %c0_9 = arith.constant 0 : index
    %c0_10 = arith.constant 0 : index
    %5 = vector.load %arg5[%c0_9, %c0_10] : memref<16x64xf32, #tpu.memory_space<vmem>>, vector<16x64xf32>
    %c0_11 = arith.constant 0 : index
    %c0_12 = arith.constant 0 : index
    %6 = vector.load %arg6[%c0_11, %c0_12] : memref<1x64xf32, #tpu.memory_space<vmem>>, vector<1x64xf32>
    %c0_13 = arith.constant 0 : index
    %c0_14 = arith.constant 0 : index
    %7 = vector.load %arg7[%c0_13, %c0_14] : memref<16x8xf32, #tpu.memory_space<vmem>>, vector<16x8xf32>
    %c0_15 = arith.constant 0 : index
    %c0_16 = arith.constant 0 : index
    %8 = vector.load %arg8[%c0_15, %c0_16] : memref<1x8xf32, #tpu.memory_space<vmem>>, vector<1x8xf32>
    %9 = vector.extract_strided_slice %0 {offsets = [0, 0], sizes = [2, 4], strides = [1, 1]} : vector<2x32xf32> to vector<2x4xf32>
    %cst = arith.constant dense<0.000000e+00> : vector<2x64xf32>
    %10 = tpu.matmul %9, %1, %cst {dimension_numbers = #tpu.dot_dimension_numbers<[1], [0], [0], [1], [0, 0, 1, 1], [], []>} : vector<2x4xf32>, vector<4x64xf32>, vector<2x64xf32> -> vector<2x64xf32>
    %11 = vector.broadcast %3 : vector<1x64xf32> to vector<2x64xf32>
    %12 = arith.addf %10, %11 : vector<2x64xf32>
    %13 = vector.extract_strided_slice %0 {offsets = [0, 4], sizes = [2, 4], strides = [1, 1]} : vector<2x32xf32> to vector<2x4xf32>
    %cst_17 = arith.constant dense<0.000000e+00> : vector<2x64xf32>
    %14 = tpu.matmul %13, %1, %cst_17 {dimension_numbers = #tpu.dot_dimension_numbers<[1], [0], [0], [1], [0, 0, 1, 1], [], []>} : vector<2x4xf32>, vector<4x64xf32>, vector<2x64xf32> -> vector<2x64xf32>
    %15 = vector.broadcast %3 : vector<1x64xf32> to vector<2x64xf32>
    %16 = arith.addf %14, %15 : vector<2x64xf32>
    %17 = vector.extract_strided_slice %0 {offsets = [0, 8], sizes = [2, 4], strides = [1, 1]} : vector<2x32xf32> to vector<2x4xf32>
    %cst_18 = arith.constant dense<0.000000e+00> : vector<2x64xf32>
    %18 = tpu.matmul %17, %1, %cst_18 {dimension_numbers = #tpu.dot_dimension_numbers<[1], [0], [0], [1], [0, 0, 1, 1], [], []>} : vector<2x4xf32>, vector<4x64xf32>, vector<2x64xf32> -> vector<2x64xf32>
    %19 = vector.broadcast %3 : vector<1x64xf32> to vector<2x64xf32>
    %20 = arith.addf %18, %19 : vector<2x64xf32>
    %21 = vector.extract_strided_slice %0 {offsets = [0, 12], sizes = [2, 4], strides = [1, 1]} : vector<2x32xf32> to vector<2x4xf32>
    %cst_19 = arith.constant dense<0.000000e+00> : vector<2x64xf32>
    %22 = tpu.matmul %21, %1, %cst_19 {dimension_numbers = #tpu.dot_dimension_numbers<[1], [0], [0], [1], [0, 0, 1, 1], [], []>} : vector<2x4xf32>, vector<4x64xf32>, vector<2x64xf32> -> vector<2x64xf32>
    %23 = vector.broadcast %3 : vector<1x64xf32> to vector<2x64xf32>
    %24 = arith.addf %22, %23 : vector<2x64xf32>
    %25 = vector.extract_strided_slice %0 {offsets = [0, 16], sizes = [2, 4], strides = [1, 1]} : vector<2x32xf32> to vector<2x4xf32>
    %cst_20 = arith.constant dense<0.000000e+00> : vector<2x64xf32>
    %26 = tpu.matmul %25, %1, %cst_20 {dimension_numbers = #tpu.dot_dimension_numbers<[1], [0], [0], [1], [0, 0, 1, 1], [], []>} : vector<2x4xf32>, vector<4x64xf32>, vector<2x64xf32> -> vector<2x64xf32>
    %27 = vector.broadcast %3 : vector<1x64xf32> to vector<2x64xf32>
    %28 = arith.addf %26, %27 : vector<2x64xf32>
    %29 = vector.extract_strided_slice %0 {offsets = [0, 20], sizes = [2, 4], strides = [1, 1]} : vector<2x32xf32> to vector<2x4xf32>
    %cst_21 = arith.constant dense<0.000000e+00> : vector<2x64xf32>
    %30 = tpu.matmul %29, %1, %cst_21 {dimension_numbers = #tpu.dot_dimension_numbers<[1], [0], [0], [1], [0, 0, 1, 1], [], []>} : vector<2x4xf32>, vector<4x64xf32>, vector<2x64xf32> -> vector<2x64xf32>
    %31 = vector.broadcast %3 : vector<1x64xf32> to vector<2x64xf32>
    %32 = arith.addf %30, %31 : vector<2x64xf32>
    %33 = vector.extract_strided_slice %0 {offsets = [0, 24], sizes = [2, 4], strides = [1, 1]} : vector<2x32xf32> to vector<2x4xf32>
    %cst_22 = arith.constant dense<0.000000e+00> : vector<2x64xf32>
    %34 = tpu.matmul %33, %1, %cst_22 {dimension_numbers = #tpu.dot_dimension_numbers<[1], [0], [0], [1], [0, 0, 1, 1], [], []>} : vector<2x4xf32>, vector<4x64xf32>, vector<2x64xf32> -> vector<2x64xf32>
    %35 = vector.broadcast %3 : vector<1x64xf32> to vector<2x64xf32>
    %36 = arith.addf %34, %35 : vector<2x64xf32>
    %37 = vector.extract_strided_slice %0 {offsets = [0, 28], sizes = [2, 4], strides = [1, 1]} : vector<2x32xf32> to vector<2x4xf32>
    %cst_23 = arith.constant dense<0.000000e+00> : vector<2x64xf32>
    %38 = tpu.matmul %37, %1, %cst_23 {dimension_numbers = #tpu.dot_dimension_numbers<[1], [0], [0], [1], [0, 0, 1, 1], [], []>} : vector<2x4xf32>, vector<4x64xf32>, vector<2x64xf32> -> vector<2x64xf32>
    %39 = vector.broadcast %3 : vector<1x64xf32> to vector<2x64xf32>
    %40 = arith.addf %38, %39 : vector<2x64xf32>
    %cst_24 = arith.constant 0.000000e+00 : f32
    %41 = vector.broadcast %cst_24 : f32 to vector<2x16xf32>
    %cst_25 = arith.constant 0.000000e+00 : f32
    %42 = vector.broadcast %cst_25 : f32 to vector<2x16xf32>
    %cst_26 = arith.constant dense<0.000000e+00> : vector<2x64xf32>
    %43 = tpu.matmul %41, %2, %cst_26 {dimension_numbers = #tpu.dot_dimension_numbers<[1], [0], [0], [1], [0, 0, 1, 1], [], []>} : vector<2x16xf32>, vector<16x64xf32>, vector<2x64xf32> -> vector<2x64xf32>
    %44 = arith.addf %12, %43 : vector<2x64xf32>
    %45 = vector.extract_strided_slice %44 {offsets = [0, 0], sizes = [2, 16], strides = [1, 1]} : vector<2x64xf32> to vector<2x16xf32>
    %46 = arith.negf %45 : vector<2x16xf32>
    %47 = math.exp %46 : vector<2x16xf32>
    %cst_27 = arith.constant 1.000000e+00 : f32
    %48 = vector.broadcast %cst_27 : f32 to vector<2x16xf32>
    %49 = arith.addf %48, %47 : vector<2x16xf32>
    %50 = arith.divf %48, %49 : vector<2x16xf32>
    %51 = vector.extract_strided_slice %44 {offsets = [0, 16], sizes = [2, 16], strides = [1, 1]} : vector<2x64xf32> to vector<2x16xf32>
    %52 = arith.negf %51 : vector<2x16xf32>
    %53 = math.exp %52 : vector<2x16xf32>
    %cst_28 = arith.constant 1.000000e+00 : f32
    %54 = vector.broadcast %cst_28 : f32 to vector<2x16xf32>
    %55 = arith.addf %54, %53 : vector<2x16xf32>
    %56 = arith.divf %54, %55 : vector<2x16xf32>
    %57 = vector.extract_strided_slice %44 {offsets = [0, 32], sizes = [2, 16], strides = [1, 1]} : vector<2x64xf32> to vector<2x16xf32>
    %58 = math.tanh %57 : vector<2x16xf32>
    %59 = vector.extract_strided_slice %44 {offsets = [0, 48], sizes = [2, 16], strides = [1, 1]} : vector<2x64xf32> to vector<2x16xf32>
    %60 = arith.negf %59 : vector<2x16xf32>
    %61 = math.exp %60 : vector<2x16xf32>
    %cst_29 = arith.constant 1.000000e+00 : f32
    %62 = vector.broadcast %cst_29 : f32 to vector<2x16xf32>
    %63 = arith.addf %62, %61 : vector<2x16xf32>
    %64 = arith.divf %62, %63 : vector<2x16xf32>
    %65 = arith.mulf %56, %42 : vector<2x16xf32>
    %66 = arith.mulf %50, %58 : vector<2x16xf32>
    %67 = arith.addf %65, %66 : vector<2x16xf32>
    %68 = math.tanh %67 : vector<2x16xf32>
    %69 = arith.mulf %64, %68 : vector<2x16xf32>
    %cst_30 = arith.constant dense<0.000000e+00> : vector<2x64xf32>
    %70 = tpu.matmul %69, %2, %cst_30 {dimension_numbers = #tpu.dot_dimension_numbers<[1], [0], [0], [1], [0, 0, 1, 1], [], []>} : vector<2x16xf32>, vector<16x64xf32>, vector<2x64xf32> -> vector<2x64xf32>
    %71 = arith.addf %16, %70 : vector<2x64xf32>
    %72 = vector.extract_strided_slice %71 {offsets = [0, 0], sizes = [2, 16], strides = [1, 1]} : vector<2x64xf32> to vector<2x16xf32>
    %73 = arith.negf %72 : vector<2x16xf32>
    %74 = math.exp %73 : vector<2x16xf32>
    %cst_31 = arith.constant 1.000000e+00 : f32
    %75 = vector.broadcast %cst_31 : f32 to vector<2x16xf32>
    %76 = arith.addf %75, %74 : vector<2x16xf32>
    %77 = arith.divf %75, %76 : vector<2x16xf32>
    %78 = vector.extract_strided_slice %71 {offsets = [0, 16], sizes = [2, 16], strides = [1, 1]} : vector<2x64xf32> to vector<2x16xf32>
    %79 = arith.negf %78 : vector<2x16xf32>
    %80 = math.exp %79 : vector<2x16xf32>
    %cst_32 = arith.constant 1.000000e+00 : f32
    %81 = vector.broadcast %cst_32 : f32 to vector<2x16xf32>
    %82 = arith.addf %81, %80 : vector<2x16xf32>
    %83 = arith.divf %81, %82 : vector<2x16xf32>
    %84 = vector.extract_strided_slice %71 {offsets = [0, 32], sizes = [2, 16], strides = [1, 1]} : vector<2x64xf32> to vector<2x16xf32>
    %85 = math.tanh %84 : vector<2x16xf32>
    %86 = vector.extract_strided_slice %71 {offsets = [0, 48], sizes = [2, 16], strides = [1, 1]} : vector<2x64xf32> to vector<2x16xf32>
    %87 = arith.negf %86 : vector<2x16xf32>
    %88 = math.exp %87 : vector<2x16xf32>
    %cst_33 = arith.constant 1.000000e+00 : f32
    %89 = vector.broadcast %cst_33 : f32 to vector<2x16xf32>
    %90 = arith.addf %89, %88 : vector<2x16xf32>
    %91 = arith.divf %89, %90 : vector<2x16xf32>
    %92 = arith.mulf %83, %67 : vector<2x16xf32>
    %93 = arith.mulf %77, %85 : vector<2x16xf32>
    %94 = arith.addf %92, %93 : vector<2x16xf32>
    %95 = math.tanh %94 : vector<2x16xf32>
    %96 = arith.mulf %91, %95 : vector<2x16xf32>
    %cst_34 = arith.constant dense<0.000000e+00> : vector<2x64xf32>
    %97 = tpu.matmul %96, %2, %cst_34 {dimension_numbers = #tpu.dot_dimension_numbers<[1], [0], [0], [1], [0, 0, 1, 1], [], []>} : vector<2x16xf32>, vector<16x64xf32>, vector<2x64xf32> -> vector<2x64xf32>
    %98 = arith.addf %20, %97 : vector<2x64xf32>
    %99 = vector.extract_strided_slice %98 {offsets = [0, 0], sizes = [2, 16], strides = [1, 1]} : vector<2x64xf32> to vector<2x16xf32>
    %100 = arith.negf %99 : vector<2x16xf32>
    %101 = math.exp %100 : vector<2x16xf32>
    %cst_35 = arith.constant 1.000000e+00 : f32
    %102 = vector.broadcast %cst_35 : f32 to vector<2x16xf32>
    %103 = arith.addf %102, %101 : vector<2x16xf32>
    %104 = arith.divf %102, %103 : vector<2x16xf32>
    %105 = vector.extract_strided_slice %98 {offsets = [0, 16], sizes = [2, 16], strides = [1, 1]} : vector<2x64xf32> to vector<2x16xf32>
    %106 = arith.negf %105 : vector<2x16xf32>
    %107 = math.exp %106 : vector<2x16xf32>
    %cst_36 = arith.constant 1.000000e+00 : f32
    %108 = vector.broadcast %cst_36 : f32 to vector<2x16xf32>
    %109 = arith.addf %108, %107 : vector<2x16xf32>
    %110 = arith.divf %108, %109 : vector<2x16xf32>
    %111 = vector.extract_strided_slice %98 {offsets = [0, 32], sizes = [2, 16], strides = [1, 1]} : vector<2x64xf32> to vector<2x16xf32>
    %112 = math.tanh %111 : vector<2x16xf32>
    %113 = vector.extract_strided_slice %98 {offsets = [0, 48], sizes = [2, 16], strides = [1, 1]} : vector<2x64xf32> to vector<2x16xf32>
    %114 = arith.negf %113 : vector<2x16xf32>
    %115 = math.exp %114 : vector<2x16xf32>
    %cst_37 = arith.constant 1.000000e+00 : f32
    %116 = vector.broadcast %cst_37 : f32 to vector<2x16xf32>
    %117 = arith.addf %116, %115 : vector<2x16xf32>
    %118 = arith.divf %116, %117 : vector<2x16xf32>
    %119 = arith.mulf %110, %94 : vector<2x16xf32>
    %120 = arith.mulf %104, %112 : vector<2x16xf32>
    %121 = arith.addf %119, %120 : vector<2x16xf32>
    %122 = math.tanh %121 : vector<2x16xf32>
    %123 = arith.mulf %118, %122 : vector<2x16xf32>
    %cst_38 = arith.constant dense<0.000000e+00> : vector<2x64xf32>
    %124 = tpu.matmul %123, %2, %cst_38 {dimension_numbers = #tpu.dot_dimension_numbers<[1], [0], [0], [1], [0, 0, 1, 1], [], []>} : vector<2x16xf32>, vector<16x64xf32>, vector<2x64xf32> -> vector<2x64xf32>
    %125 = arith.addf %24, %124 : vector<2x64xf32>
    %126 = vector.extract_strided_slice %125 {offsets = [0, 0], sizes = [2, 16], strides = [1, 1]} : vector<2x64xf32> to vector<2x16xf32>
    %127 = arith.negf %126 : vector<2x16xf32>
    %128 = math.exp %127 : vector<2x16xf32>
    %cst_39 = arith.constant 1.000000e+00 : f32
    %129 = vector.broadcast %cst_39 : f32 to vector<2x16xf32>
    %130 = arith.addf %129, %128 : vector<2x16xf32>
    %131 = arith.divf %129, %130 : vector<2x16xf32>
    %132 = vector.extract_strided_slice %125 {offsets = [0, 16], sizes = [2, 16], strides = [1, 1]} : vector<2x64xf32> to vector<2x16xf32>
    %133 = arith.negf %132 : vector<2x16xf32>
    %134 = math.exp %133 : vector<2x16xf32>
    %cst_40 = arith.constant 1.000000e+00 : f32
    %135 = vector.broadcast %cst_40 : f32 to vector<2x16xf32>
    %136 = arith.addf %135, %134 : vector<2x16xf32>
    %137 = arith.divf %135, %136 : vector<2x16xf32>
    %138 = vector.extract_strided_slice %125 {offsets = [0, 32], sizes = [2, 16], strides = [1, 1]} : vector<2x64xf32> to vector<2x16xf32>
    %139 = math.tanh %138 : vector<2x16xf32>
    %140 = vector.extract_strided_slice %125 {offsets = [0, 48], sizes = [2, 16], strides = [1, 1]} : vector<2x64xf32> to vector<2x16xf32>
    %141 = arith.negf %140 : vector<2x16xf32>
    %142 = math.exp %141 : vector<2x16xf32>
    %cst_41 = arith.constant 1.000000e+00 : f32
    %143 = vector.broadcast %cst_41 : f32 to vector<2x16xf32>
    %144 = arith.addf %143, %142 : vector<2x16xf32>
    %145 = arith.divf %143, %144 : vector<2x16xf32>
    %146 = arith.mulf %137, %121 : vector<2x16xf32>
    %147 = arith.mulf %131, %139 : vector<2x16xf32>
    %148 = arith.addf %146, %147 : vector<2x16xf32>
    %149 = math.tanh %148 : vector<2x16xf32>
    %150 = arith.mulf %145, %149 : vector<2x16xf32>
    %cst_42 = arith.constant dense<0.000000e+00> : vector<2x64xf32>
    %151 = tpu.matmul %150, %2, %cst_42 {dimension_numbers = #tpu.dot_dimension_numbers<[1], [0], [0], [1], [0, 0, 1, 1], [], []>} : vector<2x16xf32>, vector<16x64xf32>, vector<2x64xf32> -> vector<2x64xf32>
    %152 = arith.addf %28, %151 : vector<2x64xf32>
    %153 = vector.extract_strided_slice %152 {offsets = [0, 0], sizes = [2, 16], strides = [1, 1]} : vector<2x64xf32> to vector<2x16xf32>
    %154 = arith.negf %153 : vector<2x16xf32>
    %155 = math.exp %154 : vector<2x16xf32>
    %cst_43 = arith.constant 1.000000e+00 : f32
    %156 = vector.broadcast %cst_43 : f32 to vector<2x16xf32>
    %157 = arith.addf %156, %155 : vector<2x16xf32>
    %158 = arith.divf %156, %157 : vector<2x16xf32>
    %159 = vector.extract_strided_slice %152 {offsets = [0, 16], sizes = [2, 16], strides = [1, 1]} : vector<2x64xf32> to vector<2x16xf32>
    %160 = arith.negf %159 : vector<2x16xf32>
    %161 = math.exp %160 : vector<2x16xf32>
    %cst_44 = arith.constant 1.000000e+00 : f32
    %162 = vector.broadcast %cst_44 : f32 to vector<2x16xf32>
    %163 = arith.addf %162, %161 : vector<2x16xf32>
    %164 = arith.divf %162, %163 : vector<2x16xf32>
    %165 = vector.extract_strided_slice %152 {offsets = [0, 32], sizes = [2, 16], strides = [1, 1]} : vector<2x64xf32> to vector<2x16xf32>
    %166 = math.tanh %165 : vector<2x16xf32>
    %167 = vector.extract_strided_slice %152 {offsets = [0, 48], sizes = [2, 16], strides = [1, 1]} : vector<2x64xf32> to vector<2x16xf32>
    %168 = arith.negf %167 : vector<2x16xf32>
    %169 = math.exp %168 : vector<2x16xf32>
    %cst_45 = arith.constant 1.000000e+00 : f32
    %170 = vector.broadcast %cst_45 : f32 to vector<2x16xf32>
    %171 = arith.addf %170, %169 : vector<2x16xf32>
    %172 = arith.divf %170, %171 : vector<2x16xf32>
    %173 = arith.mulf %164, %148 : vector<2x16xf32>
    %174 = arith.mulf %158, %166 : vector<2x16xf32>
    %175 = arith.addf %173, %174 : vector<2x16xf32>
    %176 = math.tanh %175 : vector<2x16xf32>
    %177 = arith.mulf %172, %176 : vector<2x16xf32>
    %cst_46 = arith.constant dense<0.000000e+00> : vector<2x64xf32>
    %178 = tpu.matmul %177, %2, %cst_46 {dimension_numbers = #tpu.dot_dimension_numbers<[1], [0], [0], [1], [0, 0, 1, 1], [], []>} : vector<2x16xf32>, vector<16x64xf32>, vector<2x64xf32> -> vector<2x64xf32>
    %179 = arith.addf %32, %178 : vector<2x64xf32>
    %180 = vector.extract_strided_slice %179 {offsets = [0, 0], sizes = [2, 16], strides = [1, 1]} : vector<2x64xf32> to vector<2x16xf32>
    %181 = arith.negf %180 : vector<2x16xf32>
    %182 = math.exp %181 : vector<2x16xf32>
    %cst_47 = arith.constant 1.000000e+00 : f32
    %183 = vector.broadcast %cst_47 : f32 to vector<2x16xf32>
    %184 = arith.addf %183, %182 : vector<2x16xf32>
    %185 = arith.divf %183, %184 : vector<2x16xf32>
    %186 = vector.extract_strided_slice %179 {offsets = [0, 16], sizes = [2, 16], strides = [1, 1]} : vector<2x64xf32> to vector<2x16xf32>
    %187 = arith.negf %186 : vector<2x16xf32>
    %188 = math.exp %187 : vector<2x16xf32>
    %cst_48 = arith.constant 1.000000e+00 : f32
    %189 = vector.broadcast %cst_48 : f32 to vector<2x16xf32>
    %190 = arith.addf %189, %188 : vector<2x16xf32>
    %191 = arith.divf %189, %190 : vector<2x16xf32>
    %192 = vector.extract_strided_slice %179 {offsets = [0, 32], sizes = [2, 16], strides = [1, 1]} : vector<2x64xf32> to vector<2x16xf32>
    %193 = math.tanh %192 : vector<2x16xf32>
    %194 = vector.extract_strided_slice %179 {offsets = [0, 48], sizes = [2, 16], strides = [1, 1]} : vector<2x64xf32> to vector<2x16xf32>
    %195 = arith.negf %194 : vector<2x16xf32>
    %196 = math.exp %195 : vector<2x16xf32>
    %cst_49 = arith.constant 1.000000e+00 : f32
    %197 = vector.broadcast %cst_49 : f32 to vector<2x16xf32>
    %198 = arith.addf %197, %196 : vector<2x16xf32>
    %199 = arith.divf %197, %198 : vector<2x16xf32>
    %200 = arith.mulf %191, %175 : vector<2x16xf32>
    %201 = arith.mulf %185, %193 : vector<2x16xf32>
    %202 = arith.addf %200, %201 : vector<2x16xf32>
    %203 = math.tanh %202 : vector<2x16xf32>
    %204 = arith.mulf %199, %203 : vector<2x16xf32>
    %cst_50 = arith.constant dense<0.000000e+00> : vector<2x64xf32>
    %205 = tpu.matmul %204, %2, %cst_50 {dimension_numbers = #tpu.dot_dimension_numbers<[1], [0], [0], [1], [0, 0, 1, 1], [], []>} : vector<2x16xf32>, vector<16x64xf32>, vector<2x64xf32> -> vector<2x64xf32>
    %206 = arith.addf %36, %205 : vector<2x64xf32>
    %207 = vector.extract_strided_slice %206 {offsets = [0, 0], sizes = [2, 16], strides = [1, 1]} : vector<2x64xf32> to vector<2x16xf32>
    %208 = arith.negf %207 : vector<2x16xf32>
    %209 = math.exp %208 : vector<2x16xf32>
    %cst_51 = arith.constant 1.000000e+00 : f32
    %210 = vector.broadcast %cst_51 : f32 to vector<2x16xf32>
    %211 = arith.addf %210, %209 : vector<2x16xf32>
    %212 = arith.divf %210, %211 : vector<2x16xf32>
    %213 = vector.extract_strided_slice %206 {offsets = [0, 16], sizes = [2, 16], strides = [1, 1]} : vector<2x64xf32> to vector<2x16xf32>
    %214 = arith.negf %213 : vector<2x16xf32>
    %215 = math.exp %214 : vector<2x16xf32>
    %cst_52 = arith.constant 1.000000e+00 : f32
    %216 = vector.broadcast %cst_52 : f32 to vector<2x16xf32>
    %217 = arith.addf %216, %215 : vector<2x16xf32>
    %218 = arith.divf %216, %217 : vector<2x16xf32>
    %219 = vector.extract_strided_slice %206 {offsets = [0, 32], sizes = [2, 16], strides = [1, 1]} : vector<2x64xf32> to vector<2x16xf32>
    %220 = math.tanh %219 : vector<2x16xf32>
    %221 = vector.extract_strided_slice %206 {offsets = [0, 48], sizes = [2, 16], strides = [1, 1]} : vector<2x64xf32> to vector<2x16xf32>
    %222 = arith.negf %221 : vector<2x16xf32>
    %223 = math.exp %222 : vector<2x16xf32>
    %cst_53 = arith.constant 1.000000e+00 : f32
    %224 = vector.broadcast %cst_53 : f32 to vector<2x16xf32>
    %225 = arith.addf %224, %223 : vector<2x16xf32>
    %226 = arith.divf %224, %225 : vector<2x16xf32>
    %227 = arith.mulf %218, %202 : vector<2x16xf32>
    %228 = arith.mulf %212, %220 : vector<2x16xf32>
    %229 = arith.addf %227, %228 : vector<2x16xf32>
    %230 = math.tanh %229 : vector<2x16xf32>
    %231 = arith.mulf %226, %230 : vector<2x16xf32>
    %cst_54 = arith.constant dense<0.000000e+00> : vector<2x64xf32>
    %232 = tpu.matmul %231, %2, %cst_54 {dimension_numbers = #tpu.dot_dimension_numbers<[1], [0], [0], [1], [0, 0, 1, 1], [], []>} : vector<2x16xf32>, vector<16x64xf32>, vector<2x64xf32> -> vector<2x64xf32>
    %233 = arith.addf %40, %232 : vector<2x64xf32>
    %234 = vector.extract_strided_slice %233 {offsets = [0, 0], sizes = [2, 16], strides = [1, 1]} : vector<2x64xf32> to vector<2x16xf32>
    %235 = arith.negf %234 : vector<2x16xf32>
    %236 = math.exp %235 : vector<2x16xf32>
    %cst_55 = arith.constant 1.000000e+00 : f32
    %237 = vector.broadcast %cst_55 : f32 to vector<2x16xf32>
    %238 = arith.addf %237, %236 : vector<2x16xf32>
    %239 = arith.divf %237, %238 : vector<2x16xf32>
    %240 = vector.extract_strided_slice %233 {offsets = [0, 16], sizes = [2, 16], strides = [1, 1]} : vector<2x64xf32> to vector<2x16xf32>
    %241 = arith.negf %240 : vector<2x16xf32>
    %242 = math.exp %241 : vector<2x16xf32>
    %cst_56 = arith.constant 1.000000e+00 : f32
    %243 = vector.broadcast %cst_56 : f32 to vector<2x16xf32>
    %244 = arith.addf %243, %242 : vector<2x16xf32>
    %245 = arith.divf %243, %244 : vector<2x16xf32>
    %246 = vector.extract_strided_slice %233 {offsets = [0, 32], sizes = [2, 16], strides = [1, 1]} : vector<2x64xf32> to vector<2x16xf32>
    %247 = math.tanh %246 : vector<2x16xf32>
    %248 = vector.extract_strided_slice %233 {offsets = [0, 48], sizes = [2, 16], strides = [1, 1]} : vector<2x64xf32> to vector<2x16xf32>
    %249 = arith.negf %248 : vector<2x16xf32>
    %250 = math.exp %249 : vector<2x16xf32>
    %cst_57 = arith.constant 1.000000e+00 : f32
    %251 = vector.broadcast %cst_57 : f32 to vector<2x16xf32>
    %252 = arith.addf %251, %250 : vector<2x16xf32>
    %253 = arith.divf %251, %252 : vector<2x16xf32>
    %254 = arith.mulf %245, %229 : vector<2x16xf32>
    %255 = arith.mulf %239, %247 : vector<2x16xf32>
    %256 = arith.addf %254, %255 : vector<2x16xf32>
    %257 = math.tanh %256 : vector<2x16xf32>
    %258 = arith.mulf %253, %257 : vector<2x16xf32>
    %cst_58 = arith.constant dense<0.000000e+00> : vector<2x64xf32>
    %259 = tpu.matmul %258, %4, %cst_58 {dimension_numbers = #tpu.dot_dimension_numbers<[1], [0], [0], [1], [0, 0, 1, 1], [], []>} : vector<2x16xf32>, vector<16x64xf32>, vector<2x64xf32> -> vector<2x64xf32>
    %260 = vector.broadcast %6 : vector<1x64xf32> to vector<2x64xf32>
    %261 = arith.addf %259, %260 : vector<2x64xf32>
    %cst_59 = arith.constant dense<0.000000e+00> : vector<2x64xf32>
    %262 = tpu.matmul %258, %5, %cst_59 {dimension_numbers = #tpu.dot_dimension_numbers<[1], [0], [0], [1], [0, 0, 1, 1], [], []>} : vector<2x16xf32>, vector<16x64xf32>, vector<2x64xf32> -> vector<2x64xf32>
    %263 = arith.addf %261, %262 : vector<2x64xf32>
    %264 = vector.extract_strided_slice %263 {offsets = [0, 0], sizes = [2, 16], strides = [1, 1]} : vector<2x64xf32> to vector<2x16xf32>
    %265 = arith.negf %264 : vector<2x16xf32>
    %266 = math.exp %265 : vector<2x16xf32>
    %cst_60 = arith.constant 1.000000e+00 : f32
    %267 = vector.broadcast %cst_60 : f32 to vector<2x16xf32>
    %268 = arith.addf %267, %266 : vector<2x16xf32>
    %269 = arith.divf %267, %268 : vector<2x16xf32>
    %270 = vector.extract_strided_slice %263 {offsets = [0, 16], sizes = [2, 16], strides = [1, 1]} : vector<2x64xf32> to vector<2x16xf32>
    %271 = arith.negf %270 : vector<2x16xf32>
    %272 = math.exp %271 : vector<2x16xf32>
    %cst_61 = arith.constant 1.000000e+00 : f32
    %273 = vector.broadcast %cst_61 : f32 to vector<2x16xf32>
    %274 = arith.addf %273, %272 : vector<2x16xf32>
    %275 = arith.divf %273, %274 : vector<2x16xf32>
    %276 = vector.extract_strided_slice %263 {offsets = [0, 32], sizes = [2, 16], strides = [1, 1]} : vector<2x64xf32> to vector<2x16xf32>
    %277 = math.tanh %276 : vector<2x16xf32>
    %278 = vector.extract_strided_slice %263 {offsets = [0, 48], sizes = [2, 16], strides = [1, 1]} : vector<2x64xf32> to vector<2x16xf32>
    %279 = arith.negf %278 : vector<2x16xf32>
    %280 = math.exp %279 : vector<2x16xf32>
    %cst_62 = arith.constant 1.000000e+00 : f32
    %281 = vector.broadcast %cst_62 : f32 to vector<2x16xf32>
    %282 = arith.addf %281, %280 : vector<2x16xf32>
    %283 = arith.divf %281, %282 : vector<2x16xf32>
    %284 = arith.mulf %275, %256 : vector<2x16xf32>
    %285 = arith.mulf %269, %277 : vector<2x16xf32>
    %286 = arith.addf %284, %285 : vector<2x16xf32>
    %287 = math.tanh %286 : vector<2x16xf32>
    %288 = arith.mulf %283, %287 : vector<2x16xf32>
    %cst_63 = arith.constant dense<0.000000e+00> : vector<2x64xf32>
    %289 = tpu.matmul %288, %5, %cst_63 {dimension_numbers = #tpu.dot_dimension_numbers<[1], [0], [0], [1], [0, 0, 1, 1], [], []>} : vector<2x16xf32>, vector<16x64xf32>, vector<2x64xf32> -> vector<2x64xf32>
    %290 = arith.addf %261, %289 : vector<2x64xf32>
    %291 = vector.extract_strided_slice %290 {offsets = [0, 0], sizes = [2, 16], strides = [1, 1]} : vector<2x64xf32> to vector<2x16xf32>
    %292 = arith.negf %291 : vector<2x16xf32>
    %293 = math.exp %292 : vector<2x16xf32>
    %cst_64 = arith.constant 1.000000e+00 : f32
    %294 = vector.broadcast %cst_64 : f32 to vector<2x16xf32>
    %295 = arith.addf %294, %293 : vector<2x16xf32>
    %296 = arith.divf %294, %295 : vector<2x16xf32>
    %297 = vector.extract_strided_slice %290 {offsets = [0, 16], sizes = [2, 16], strides = [1, 1]} : vector<2x64xf32> to vector<2x16xf32>
    %298 = arith.negf %297 : vector<2x16xf32>
    %299 = math.exp %298 : vector<2x16xf32>
    %cst_65 = arith.constant 1.000000e+00 : f32
    %300 = vector.broadcast %cst_65 : f32 to vector<2x16xf32>
    %301 = arith.addf %300, %299 : vector<2x16xf32>
    %302 = arith.divf %300, %301 : vector<2x16xf32>
    %303 = vector.extract_strided_slice %290 {offsets = [0, 32], sizes = [2, 16], strides = [1, 1]} : vector<2x64xf32> to vector<2x16xf32>
    %304 = math.tanh %303 : vector<2x16xf32>
    %305 = vector.extract_strided_slice %290 {offsets = [0, 48], sizes = [2, 16], strides = [1, 1]} : vector<2x64xf32> to vector<2x16xf32>
    %306 = arith.negf %305 : vector<2x16xf32>
    %307 = math.exp %306 : vector<2x16xf32>
    %cst_66 = arith.constant 1.000000e+00 : f32
    %308 = vector.broadcast %cst_66 : f32 to vector<2x16xf32>
    %309 = arith.addf %308, %307 : vector<2x16xf32>
    %310 = arith.divf %308, %309 : vector<2x16xf32>
    %311 = arith.mulf %302, %286 : vector<2x16xf32>
    %312 = arith.mulf %296, %304 : vector<2x16xf32>
    %313 = arith.addf %311, %312 : vector<2x16xf32>
    %314 = math.tanh %313 : vector<2x16xf32>
    %315 = arith.mulf %310, %314 : vector<2x16xf32>
    %cst_67 = arith.constant dense<0.000000e+00> : vector<2x64xf32>
    %316 = tpu.matmul %315, %5, %cst_67 {dimension_numbers = #tpu.dot_dimension_numbers<[1], [0], [0], [1], [0, 0, 1, 1], [], []>} : vector<2x16xf32>, vector<16x64xf32>, vector<2x64xf32> -> vector<2x64xf32>
    %317 = arith.addf %261, %316 : vector<2x64xf32>
    %318 = vector.extract_strided_slice %317 {offsets = [0, 0], sizes = [2, 16], strides = [1, 1]} : vector<2x64xf32> to vector<2x16xf32>
    %319 = arith.negf %318 : vector<2x16xf32>
    %320 = math.exp %319 : vector<2x16xf32>
    %cst_68 = arith.constant 1.000000e+00 : f32
    %321 = vector.broadcast %cst_68 : f32 to vector<2x16xf32>
    %322 = arith.addf %321, %320 : vector<2x16xf32>
    %323 = arith.divf %321, %322 : vector<2x16xf32>
    %324 = vector.extract_strided_slice %317 {offsets = [0, 16], sizes = [2, 16], strides = [1, 1]} : vector<2x64xf32> to vector<2x16xf32>
    %325 = arith.negf %324 : vector<2x16xf32>
    %326 = math.exp %325 : vector<2x16xf32>
    %cst_69 = arith.constant 1.000000e+00 : f32
    %327 = vector.broadcast %cst_69 : f32 to vector<2x16xf32>
    %328 = arith.addf %327, %326 : vector<2x16xf32>
    %329 = arith.divf %327, %328 : vector<2x16xf32>
    %330 = vector.extract_strided_slice %317 {offsets = [0, 32], sizes = [2, 16], strides = [1, 1]} : vector<2x64xf32> to vector<2x16xf32>
    %331 = math.tanh %330 : vector<2x16xf32>
    %332 = vector.extract_strided_slice %317 {offsets = [0, 48], sizes = [2, 16], strides = [1, 1]} : vector<2x64xf32> to vector<2x16xf32>
    %333 = arith.negf %332 : vector<2x16xf32>
    %334 = math.exp %333 : vector<2x16xf32>
    %cst_70 = arith.constant 1.000000e+00 : f32
    %335 = vector.broadcast %cst_70 : f32 to vector<2x16xf32>
    %336 = arith.addf %335, %334 : vector<2x16xf32>
    %337 = arith.divf %335, %336 : vector<2x16xf32>
    %338 = arith.mulf %329, %313 : vector<2x16xf32>
    %339 = arith.mulf %323, %331 : vector<2x16xf32>
    %340 = arith.addf %338, %339 : vector<2x16xf32>
    %341 = math.tanh %340 : vector<2x16xf32>
    %342 = arith.mulf %337, %341 : vector<2x16xf32>
    %cst_71 = arith.constant dense<0.000000e+00> : vector<2x64xf32>
    %343 = tpu.matmul %342, %5, %cst_71 {dimension_numbers = #tpu.dot_dimension_numbers<[1], [0], [0], [1], [0, 0, 1, 1], [], []>} : vector<2x16xf32>, vector<16x64xf32>, vector<2x64xf32> -> vector<2x64xf32>
    %344 = arith.addf %261, %343 : vector<2x64xf32>
    %345 = vector.extract_strided_slice %344 {offsets = [0, 0], sizes = [2, 16], strides = [1, 1]} : vector<2x64xf32> to vector<2x16xf32>
    %346 = arith.negf %345 : vector<2x16xf32>
    %347 = math.exp %346 : vector<2x16xf32>
    %cst_72 = arith.constant 1.000000e+00 : f32
    %348 = vector.broadcast %cst_72 : f32 to vector<2x16xf32>
    %349 = arith.addf %348, %347 : vector<2x16xf32>
    %350 = arith.divf %348, %349 : vector<2x16xf32>
    %351 = vector.extract_strided_slice %344 {offsets = [0, 16], sizes = [2, 16], strides = [1, 1]} : vector<2x64xf32> to vector<2x16xf32>
    %352 = arith.negf %351 : vector<2x16xf32>
    %353 = math.exp %352 : vector<2x16xf32>
    %cst_73 = arith.constant 1.000000e+00 : f32
    %354 = vector.broadcast %cst_73 : f32 to vector<2x16xf32>
    %355 = arith.addf %354, %353 : vector<2x16xf32>
    %356 = arith.divf %354, %355 : vector<2x16xf32>
    %357 = vector.extract_strided_slice %344 {offsets = [0, 32], sizes = [2, 16], strides = [1, 1]} : vector<2x64xf32> to vector<2x16xf32>
    %358 = math.tanh %357 : vector<2x16xf32>
    %359 = vector.extract_strided_slice %344 {offsets = [0, 48], sizes = [2, 16], strides = [1, 1]} : vector<2x64xf32> to vector<2x16xf32>
    %360 = arith.negf %359 : vector<2x16xf32>
    %361 = math.exp %360 : vector<2x16xf32>
    %cst_74 = arith.constant 1.000000e+00 : f32
    %362 = vector.broadcast %cst_74 : f32 to vector<2x16xf32>
    %363 = arith.addf %362, %361 : vector<2x16xf32>
    %364 = arith.divf %362, %363 : vector<2x16xf32>
    %365 = arith.mulf %356, %340 : vector<2x16xf32>
    %366 = arith.mulf %350, %358 : vector<2x16xf32>
    %367 = arith.addf %365, %366 : vector<2x16xf32>
    %368 = math.tanh %367 : vector<2x16xf32>
    %369 = arith.mulf %364, %368 : vector<2x16xf32>
    %cst_75 = arith.constant dense<0.000000e+00> : vector<2x64xf32>
    %370 = tpu.matmul %369, %5, %cst_75 {dimension_numbers = #tpu.dot_dimension_numbers<[1], [0], [0], [1], [0, 0, 1, 1], [], []>} : vector<2x16xf32>, vector<16x64xf32>, vector<2x64xf32> -> vector<2x64xf32>
    %371 = arith.addf %261, %370 : vector<2x64xf32>
    %372 = vector.extract_strided_slice %371 {offsets = [0, 0], sizes = [2, 16], strides = [1, 1]} : vector<2x64xf32> to vector<2x16xf32>
    %373 = arith.negf %372 : vector<2x16xf32>
    %374 = math.exp %373 : vector<2x16xf32>
    %cst_76 = arith.constant 1.000000e+00 : f32
    %375 = vector.broadcast %cst_76 : f32 to vector<2x16xf32>
    %376 = arith.addf %375, %374 : vector<2x16xf32>
    %377 = arith.divf %375, %376 : vector<2x16xf32>
    %378 = vector.extract_strided_slice %371 {offsets = [0, 16], sizes = [2, 16], strides = [1, 1]} : vector<2x64xf32> to vector<2x16xf32>
    %379 = arith.negf %378 : vector<2x16xf32>
    %380 = math.exp %379 : vector<2x16xf32>
    %cst_77 = arith.constant 1.000000e+00 : f32
    %381 = vector.broadcast %cst_77 : f32 to vector<2x16xf32>
    %382 = arith.addf %381, %380 : vector<2x16xf32>
    %383 = arith.divf %381, %382 : vector<2x16xf32>
    %384 = vector.extract_strided_slice %371 {offsets = [0, 32], sizes = [2, 16], strides = [1, 1]} : vector<2x64xf32> to vector<2x16xf32>
    %385 = math.tanh %384 : vector<2x16xf32>
    %386 = vector.extract_strided_slice %371 {offsets = [0, 48], sizes = [2, 16], strides = [1, 1]} : vector<2x64xf32> to vector<2x16xf32>
    %387 = arith.negf %386 : vector<2x16xf32>
    %388 = math.exp %387 : vector<2x16xf32>
    %cst_78 = arith.constant 1.000000e+00 : f32
    %389 = vector.broadcast %cst_78 : f32 to vector<2x16xf32>
    %390 = arith.addf %389, %388 : vector<2x16xf32>
    %391 = arith.divf %389, %390 : vector<2x16xf32>
    %392 = arith.mulf %383, %367 : vector<2x16xf32>
    %393 = arith.mulf %377, %385 : vector<2x16xf32>
    %394 = arith.addf %392, %393 : vector<2x16xf32>
    %395 = math.tanh %394 : vector<2x16xf32>
    %396 = arith.mulf %391, %395 : vector<2x16xf32>
    %cst_79 = arith.constant dense<0.000000e+00> : vector<2x64xf32>
    %397 = tpu.matmul %396, %5, %cst_79 {dimension_numbers = #tpu.dot_dimension_numbers<[1], [0], [0], [1], [0, 0, 1, 1], [], []>} : vector<2x16xf32>, vector<16x64xf32>, vector<2x64xf32> -> vector<2x64xf32>
    %398 = arith.addf %261, %397 : vector<2x64xf32>
    %399 = vector.extract_strided_slice %398 {offsets = [0, 0], sizes = [2, 16], strides = [1, 1]} : vector<2x64xf32> to vector<2x16xf32>
    %400 = arith.negf %399 : vector<2x16xf32>
    %401 = math.exp %400 : vector<2x16xf32>
    %cst_80 = arith.constant 1.000000e+00 : f32
    %402 = vector.broadcast %cst_80 : f32 to vector<2x16xf32>
    %403 = arith.addf %402, %401 : vector<2x16xf32>
    %404 = arith.divf %402, %403 : vector<2x16xf32>
    %405 = vector.extract_strided_slice %398 {offsets = [0, 16], sizes = [2, 16], strides = [1, 1]} : vector<2x64xf32> to vector<2x16xf32>
    %406 = arith.negf %405 : vector<2x16xf32>
    %407 = math.exp %406 : vector<2x16xf32>
    %cst_81 = arith.constant 1.000000e+00 : f32
    %408 = vector.broadcast %cst_81 : f32 to vector<2x16xf32>
    %409 = arith.addf %408, %407 : vector<2x16xf32>
    %410 = arith.divf %408, %409 : vector<2x16xf32>
    %411 = vector.extract_strided_slice %398 {offsets = [0, 32], sizes = [2, 16], strides = [1, 1]} : vector<2x64xf32> to vector<2x16xf32>
    %412 = math.tanh %411 : vector<2x16xf32>
    %413 = vector.extract_strided_slice %398 {offsets = [0, 48], sizes = [2, 16], strides = [1, 1]} : vector<2x64xf32> to vector<2x16xf32>
    %414 = arith.negf %413 : vector<2x16xf32>
    %415 = math.exp %414 : vector<2x16xf32>
    %cst_82 = arith.constant 1.000000e+00 : f32
    %416 = vector.broadcast %cst_82 : f32 to vector<2x16xf32>
    %417 = arith.addf %416, %415 : vector<2x16xf32>
    %418 = arith.divf %416, %417 : vector<2x16xf32>
    %419 = arith.mulf %410, %394 : vector<2x16xf32>
    %420 = arith.mulf %404, %412 : vector<2x16xf32>
    %421 = arith.addf %419, %420 : vector<2x16xf32>
    %422 = math.tanh %421 : vector<2x16xf32>
    %423 = arith.mulf %418, %422 : vector<2x16xf32>
    %cst_83 = arith.constant dense<0.000000e+00> : vector<2x8xf32>
    %424 = tpu.matmul %288, %7, %cst_83 {dimension_numbers = #tpu.dot_dimension_numbers<[1], [0], [0], [1], [0, 0, 1, 1], [], []>} : vector<2x16xf32>, vector<16x8xf32>, vector<2x8xf32> -> vector<2x8xf32>
    %425 = vector.broadcast %8 : vector<1x8xf32> to vector<2x8xf32>
    %426 = arith.addf %424, %425 : vector<2x8xf32>
    %cst_84 = arith.constant dense<0.000000e+00> : vector<2x8xf32>
    %427 = tpu.matmul %315, %7, %cst_84 {dimension_numbers = #tpu.dot_dimension_numbers<[1], [0], [0], [1], [0, 0, 1, 1], [], []>} : vector<2x16xf32>, vector<16x8xf32>, vector<2x8xf32> -> vector<2x8xf32>
    %428 = vector.broadcast %8 : vector<1x8xf32> to vector<2x8xf32>
    %429 = arith.addf %427, %428 : vector<2x8xf32>
    %cst_85 = arith.constant dense<0.000000e+00> : vector<2x8xf32>
    %430 = tpu.matmul %342, %7, %cst_85 {dimension_numbers = #tpu.dot_dimension_numbers<[1], [0], [0], [1], [0, 0, 1, 1], [], []>} : vector<2x16xf32>, vector<16x8xf32>, vector<2x8xf32> -> vector<2x8xf32>
    %431 = vector.broadcast %8 : vector<1x8xf32> to vector<2x8xf32>
    %432 = arith.addf %430, %431 : vector<2x8xf32>
    %cst_86 = arith.constant dense<0.000000e+00> : vector<2x8xf32>
    %433 = tpu.matmul %369, %7, %cst_86 {dimension_numbers = #tpu.dot_dimension_numbers<[1], [0], [0], [1], [0, 0, 1, 1], [], []>} : vector<2x16xf32>, vector<16x8xf32>, vector<2x8xf32> -> vector<2x8xf32>
    %434 = vector.broadcast %8 : vector<1x8xf32> to vector<2x8xf32>
    %435 = arith.addf %433, %434 : vector<2x8xf32>
    %cst_87 = arith.constant dense<0.000000e+00> : vector<2x8xf32>
    %436 = tpu.matmul %396, %7, %cst_87 {dimension_numbers = #tpu.dot_dimension_numbers<[1], [0], [0], [1], [0, 0, 1, 1], [], []>} : vector<2x16xf32>, vector<16x8xf32>, vector<2x8xf32> -> vector<2x8xf32>
    %437 = vector.broadcast %8 : vector<1x8xf32> to vector<2x8xf32>
    %438 = arith.addf %436, %437 : vector<2x8xf32>
    %cst_88 = arith.constant dense<0.000000e+00> : vector<2x8xf32>
    %439 = tpu.matmul %423, %7, %cst_88 {dimension_numbers = #tpu.dot_dimension_numbers<[1], [0], [0], [1], [0, 0, 1, 1], [], []>} : vector<2x16xf32>, vector<16x8xf32>, vector<2x8xf32> -> vector<2x8xf32>
    %440 = vector.broadcast %8 : vector<1x8xf32> to vector<2x8xf32>
    %441 = arith.addf %439, %440 : vector<2x8xf32>
    %442 = tpu.concatenate %426, %429, %432, %435, %438, %441 in 1 : vector<2x8xf32>, vector<2x8xf32>, vector<2x8xf32>, vector<2x8xf32>, vector<2x8xf32>, vector<2x8xf32> -> vector<2x48xf32>
    %c0_89 = arith.constant 0 : index
    %c0_90 = arith.constant 0 : index
    %443 = vector.load %arg9[%c0_89, %c0_90] : memref<2x48xf32, #tpu.memory_space<vmem>>, vector<2x48xf32>
    tpu.vector_store %arg9[%c0_89, %c0_90], %442 {strides = array<i32>} : memref<2x48xf32, #tpu.memory_space<vmem>>, vector<2x48xf32>,
    return
  }
}

</mosaic_0001>

<llo_original>
// kernel: tpu_custom_call.1
$region0: #{tpu_custom_call.1}
  #allocation0 [shape = 'u32[]', space=smem, size = 0x4, offset = 0x4, fixed_abs, tag = 'smem constant byte address 0x4 - core index']
  #allocation1 [shape = 'u32[144,128]{1,0:T(1,128)}', space=vmem, size = 0x12000, scoped, tag = 'internal scratch']
  %s0 = inlined_call_operand.vmem [shape: f32[2,32], index: 0, kind: input, shape index: {}]
  %s1 = inlined_call_operand.hbm [shape: f32[4,64], index: 1, kind: input, shape index: {}]
  %s2 = inlined_call_operand.vmem [shape: f32[16,64], index: 2, kind: input, shape index: {}]
  %s3 = inlined_call_operand.hbm [shape: f32[1,64], index: 3, kind: input, shape index: {}]
  %s4 = inlined_call_operand.vmem [shape: f32[16,64], index: 4, kind: input, shape index: {}]
  %s5 = inlined_call_operand.hbm [shape: f32[16,64], index: 5, kind: input, shape index: {}]
  %s6 = inlined_call_operand.vmem [shape: f32[1,64], index: 6, kind: input, shape index: {}]
  %s7 = inlined_call_operand.vmem [shape: f32[16,8], index: 7, kind: input, shape index: {}]
  %s8 = inlined_call_operand.vmem [shape: f32[1,8], index: 8, kind: input, shape index: {}]
  %s9 = inlined_call_operand.hbm [shape: f32[2,48], index: 9, kind: output, shape index: {}]
  %s10 = sld [smem:[#allocation0]]
  $region58: #{tpu_custom_call.1} parent=0
    _
  %s12 = ssub.s32 1, %s10
  %s13 = scalar_select 0, %s12, %s10
  $region1: #{tpu_custom_call.1} parent=0
    #allocation2 [shape = 'u8[2048]{0}', space=vmem, size = 0x800, scoped, tag = 'input window, operand 1, single buffered']
    #allocation3 [shape = 's32[1]{0}', space=sflag, size = 0x4, scoped, tag = 'scoped memory for tpu_custom_call.1']
    #allocation4 [shape = 's32[1]{0}', space=sflag, size = 0x4, scoped, tag = 'scoped memory for tpu_custom_call.1']
    #allocation5 [shape = 'u8[512]{0}', space=vmem, size = 0x400, scoped, tag = 'input window, operand 3, single buffered']
    #allocation6 [shape = 's32[1]{0}', space=sflag, size = 0x4, scoped, tag = 'scoped memory for tpu_custom_call.1']
    #allocation7 [shape = 'u8[8192]{0}', space=vmem, size = 0x2000, scoped, tag = 'input window, operand 5, single buffered']
    #allocation8 [shape = 'u8[1024]{0}', space=vmem, size = 0x400, scoped, tag = 'output window, operand 0, single buffered']
    %14 = vsyncpa [#allocation3], 0
    %15 = vsyncpa [#allocation6], 0
    %16 = vsyncpa [#allocation4], 0
    // Predicated region
    $region2: #{tpu_custom_call.1} parent=1 // pred_check
      _
    $region3: #{tpu_custom_call.1} parent=1 // pred_check_branch
      %18 = sbr.rel (0) target = $region5
    $region4: #{tpu_custom_call.1} parent=1 // pred_region
      _
    $region5: #{tpu_custom_call.1} parent=1 // pred_fallthru
      _
    // Predicated region
    $region6: #{tpu_custom_call.1} parent=1 // pred_check
      _
    $region7: #{tpu_custom_call.1} parent=1 // pred_check_branch
      %20 = sbr.rel (0) target = $region9
    $region8: #{tpu_custom_call.1} parent=1 // pred_region
      %s22 = ssub.s32 64, 64
      %23 = vsyncadd [#allocation3], %s22
      %s25 = sshll.u32 [#allocation2], 4
      %s26 = int_to_ptr.vmem [resolvable:$true] %s25
      %28 = dma.hbm_to_vmem [thread:$0]  %s1, 64, %s26, [#allocation3]
    $region9: #{tpu_custom_call.1} parent=1 // pred_fallthru
      _
    // Predicated region
    $region10: #{tpu_custom_call.1} parent=1 // pred_check
      _
    $region11: #{tpu_custom_call.1} parent=1 // pred_check_branch
      %30 = sbr.rel (0) target = $region13
    $region12: #{tpu_custom_call.1} parent=1 // pred_region
      _
    $region13: #{tpu_custom_call.1} parent=1 // pred_fallthru
      _
    // Predicated region
    $region14: #{tpu_custom_call.1} parent=1 // pred_check
      _
    $region15: #{tpu_custom_call.1} parent=1 // pred_check_branch
      %32 = sbr.rel (0) target = $region17
    $region16: #{tpu_custom_call.1} parent=1 // pred_region
      %s34 = ssub.s32 16, 16
      %35 = vsyncadd [#allocation6], %s34
      %s37 = sshll.u32 [#allocation5], 4
      %s38 = int_to_ptr.vmem [resolvable:$true] %s37
      %40 = dma.hbm_to_vmem [thread:$0]  %s3, 16, %s38, [#allocation6]
    $region17: #{tpu_custom_call.1} parent=1 // pred_fallthru
      _
    // Predicated region
    $region18: #{tpu_custom_call.1} parent=1 // pred_check
      _
    $region19: #{tpu_custom_call.1} parent=1 // pred_check_branch
      %42 = sbr.rel (0) target = $region21
    $region20: #{tpu_custom_call.1} parent=1 // pred_region
      _
    $region21: #{tpu_custom_call.1} parent=1 // pred_fallthru
      _
    // Predicated region
    $region22: #{tpu_custom_call.1} parent=1 // pred_check
      _
    $region23: #{tpu_custom_call.1} parent=1 // pred_check_branch
      %44 = sbr.rel (0) target = $region25
    $region24: #{tpu_custom_call.1} parent=1 // pred_region
      %s46 = ssub.s32 256, 256
      %47 = vsyncadd [#allocation6], %s46
      %s48 = sshll.u32 [#allocation7], 4
      %s49 = int_to_ptr.vmem [resolvable:$true] %s48
      %54 = dma.hbm_to_vmem [thread:$0]  %s5, 256, %s49, [#allocation6], 128, 128, 8
    $region25: #{tpu_custom_call.1} parent=1 // pred_fallthru
      _
    // Predicated region
    $region26: #{tpu_custom_call.1} parent=1 // pred_check
      _
    $region27: #{tpu_custom_call.1} parent=1 // pred_check_branch
      %56 = sbr.rel (0) target = $region29
    $region28: #{tpu_custom_call.1} parent=1 // pred_region
      _
    $region29: #{tpu_custom_call.1} parent=1 // pred_fallthru
      _
    // Predicated region
    $region30: #{tpu_custom_call.1} parent=1 // pred_check
      _
    $region31: #{tpu_custom_call.1} parent=1 // pred_check_branch
      %58 = sbr.rel (0) target = $region33
    $region32: #{tpu_custom_call.1} parent=1 // pred_region
      _
    $region33: #{tpu_custom_call.1} parent=1 // pred_fallthru
      _
    // Predicated region
    $region34: #{tpu_custom_call.1} parent=1 // pred_check
      _
    $region35: #{tpu_custom_call.1} parent=1 // pred_check_branch
      %60 = sbr.rel (0) target = $region37
    $region36: #{tpu_custom_call.1} parent=1 // pred_region
      _
    $region37: #{tpu_custom_call.1} parent=1 // pred_fallthru
      _
    // Predicated region
    $region38: #{tpu_custom_call.1} parent=1 // pred_check
      _
    $region39: #{tpu_custom_call.1} parent=1 // pred_check_branch
      %62 = sbr.rel (0) target = $region41
    $region40: #{tpu_custom_call.1} parent=1 // pred_region
      %63 = dma.done [#allocation3], 64
    $region41: #{tpu_custom_call.1} parent=1 // pred_fallthru
      _
    // Predicated region
    $region42: #{tpu_custom_call.1} parent=1 // pred_check
      _
    $region43: #{tpu_custom_call.1} parent=1 // pred_check_branch
      %65 = sbr.rel (0) target = $region45
    $region44: #{tpu_custom_call.1} parent=1 // pred_region
      %66 = dma.done [#allocation6], 16
    $region45: #{tpu_custom_call.1} parent=1 // pred_fallthru
      _
    // Predicated region
    $region46: #{tpu_custom_call.1} parent=1 // pred_check
      _
    $region47: #{tpu_custom_call.1} parent=1 // pred_check_branch
      %68 = sbr.rel (0) target = $region49
    $region48: #{tpu_custom_call.1} parent=1 // pred_region
      %69 = dma.done [#allocation6], 256
    $region49: #{tpu_custom_call.1} parent=1 // pred_fallthru
      _
    %v70 = vld [vmem:[%s0] sm:$0x3]
    %v71 = vld [vmem:[#allocation2] sm:$0xf]
    %v72 = vld [vmem:[%s2] sm:$0xff]
    %v73 = vld [vmem:[%s2 + $0x8] sm:$0xff]
    %v74 = vld [vmem:[#allocation5] sm:$0x1]
    %v75 = vld [vmem:[%s4] sm:$0xff]
    %v76 = vld [vmem:[%s4 + $0x8] sm:$0xff]
    %v77 = vld [vmem:[#allocation7] sm:$0xff]
    %v78 = vld [vmem:[#allocation7 + $0x8] sm:$0xff]
    %v79 = vld [vmem:[%s6] sm:$0x1]
    %v80 = vld [vmem:[%s7] sm:$0xff]
    %v81 = vld [vmem:[%s7 + $0x8] sm:$0xff]
    %v82 = vld [vmem:[%s8] sm:$0x1]
    %v84 = vlaneseq
    %v85 = vshrl.u32 %v84, 7
    %v86 = vsub.s32 0, %v85
    %v87 = vrot.slane %v74, %v86
    %vm89 = vcmask 31744
    %v91 = vsel %vm89, %v70, 0
    %vm93 = vcmask 1043456
    %v95 = vsel %vm93, %v71, 0
    %97 = vmatprep.subr.mxu0 0.0
    %98 = vmatpush1.msra.mxu0 %v95
    %99 = vmatprep.subr.mxu0 0.0
    %100 = vmatpush1.msra.mxu0 0.0
    %101 = vmatprep.subr.mxu0 0.0
    %102 = vmatpush1.msra.mxu0 0.0
    %103 = vmatprep.subr.mxu0 0.0
    %104 = vmatpush1.msra.mxu0 0.0
    %105 = vmatprep.subr.mxu0 0.0
    %106 = vmatpush1.msra.mxu0 0.0
    %107 = vmatprep.subr.mxu0 0.0
    %108 = vmatpush1.msra.mxu0 0.0
    %109 = vmatprep.subr.mxu0 0.0
    %110 = vmatpush1.msra.mxu0 0.0
    %111 = vmatprep.subr.mxu0 0.0
    %112 = vmatpush1.msra.mxu0 0.0
    %113 = vmatprep.subr.mxu0 0.0
    %114 = vmatpush1.msra.mxu0 0.0
    %115 = vmatprep.subr.mxu0 0.0
    %116 = vmatpush1.msra.mxu0 0.0
    %117 = vmatprep.subr.mxu0 0.0
    %118 = vmatpush1.msra.mxu0 0.0
    %119 = vmatprep.subr.mxu0 0.0
    %120 = vmatpush1.msra.mxu0 0.0
    %121 = vmatprep.subr.mxu0 0.0
    %122 = vmatpush1.msra.mxu0 0.0
    %123 = vmatprep.subr.mxu0 0.0
    %124 = vmatpush1.msra.mxu0 0.0
    %125 = vmatprep.subr.mxu0 0.0
    %126 = vmatpush1.msra.mxu0 0.0
    %127 = vmatprep.subr.mxu0 0.0
    %128 = vmatpush1.msra.mxu0 0.0
    %129 = vmatprep.subr.mxu0 0.0
    %130 = vmatpush1.msra.mxu0 0.0
    %131 = vmatprep.subr.mxu0 0.0
    %132 = vmatpush1.msra.mxu0 0.0
    %133 = vmatprep.subr.mxu0 0.0
    %134 = vmatpush1.msra.mxu0 0.0
    %135 = vmatprep.subr.mxu0 0.0
    %136 = vmatpush1.msra.mxu0 0.0
    %137 = vmatprep.subr.mxu0 0.0
    %138 = vmatpush1.msra.mxu0 0.0
    %139 = vmatprep.subr.mxu0 0.0
    %140 = vmatpush1.msra.mxu0 0.0
    %141 = vmatprep.subr.mxu0 0.0
    %142 = vmatpush1.msra.mxu0 0.0
    %143 = vmatprep.subr.mxu0 0.0
    %144 = vmatpush1.msra.mxu0 0.0
    %145 = vmatprep.subr.mxu0 0.0
    %146 = vmatpush1.msra.mxu0 0.0
    %147 = vmatprep.subr.mxu0 0.0
    %148 = vmatpush1.msra.mxu0 0.0
    %149 = vmatprep.subr.mxu0 0.0
    %150 = vmatpush1.msra.mxu0 0.0
    %151 = vmatprep.subr.mxu0 0.0
    %152 = vmatpush1.msra.mxu0 0.0
    %153 = vmatprep.subr.mxu0 0.0
    %154 = vmatpush1.msra.mxu0 0.0
    %155 = vmatprep.subr.mxu0 0.0
    %156 = vmatpush1.msra.mxu0 0.0
    %157 = vmatprep.subr.mxu0 0.0
    %158 = vmatpush1.msra.mxu0 0.0
    %159 = vmatprep.subr.mxu0 0.0
    %160 = vmatpush1.msra.mxu0 0.0
    %161 = vmatprep.mubr.f32.mxu0 0.0
    %162 = vmatmul.mubr.f32.gmra.mrb[0].mxu0 %v91
    %v163 = vpop.f32.mrb[0].mxu0
    %v164 = vadd.f32 %v87, %v163
    %v165 = vpop.f32.mrb[0].mxu0
    %166 = vdwg.mxu0
    %167 = vrot.lane.b32.xlu0 %v70, 124
    %v168 = vpop.permute.xlu0 %167
    %v169 = vsel %vm89, %v168, 0
    %171 = vmatprep.subr.mxu0 0.0
    %172 = vmatpush1.msra.mxu0 %v95
    %173 = vmatprep.subr.mxu0 0.0
    %174 = vmatpush1.msra.mxu0 0.0
    %175 = vmatprep.subr.mxu0 0.0
    %176 = vmatpush1.msra.mxu0 0.0
    %177 = vmatprep.subr.mxu0 0.0
    %178 = vmatpush1.msra.mxu0 0.0
    %179 = vmatprep.subr.mxu0 0.0
    %180 = vmatpush1.msra.mxu0 0.0
    %181 = vmatprep.subr.mxu0 0.0
    %182 = vmatpush1.msra.mxu0 0.0
    %183 = vmatprep.subr.mxu0 0.0
    %184 = vmatpush1.msra.mxu0 0.0
    %185 = vmatprep.subr.mxu0 0.0
    %186 = vmatpush1.msra.mxu0 0.0
    %187 = vmatprep.subr.mxu0 0.0
    %188 = vmatpush1.msra.mxu0 0.0
    %189 = vmatprep.subr.mxu0 0.0
    %190 = vmatpush1.msra.mxu0 0.0
    %191 = vmatprep.subr.mxu0 0.0
    %192 = vmatpush1.msra.mxu0 0.0
    %193 = vmatprep.subr.mxu0 0.0
    %194 = vmatpush1.msra.mxu0 0.0
    %195 = vmatprep.subr.mxu0 0.0
    %196 = vmatpush1.msra.mxu0 0.0
    %197 = vmatprep.subr.mxu0 0.0
    %198 = vmatpush1.msra.mxu0 0.0
    %199 = vmatprep.subr.mxu0 0.0
    %200 = vmatpush1.msra.mxu0 0.0
    %201 = vmatprep.subr.mxu0 0.0
    %202 = vmatpush1.msra.mxu0 0.0
    %203 = vmatprep.subr.mxu0 0.0
    %204 = vmatpush1.msra.mxu0 0.0
    %205 = vmatprep.subr.mxu0 0.0
    %206 = vmatpush1.msra.mxu0 0.0
    %207 = vmatprep.subr.mxu0 0.0
    %208 = vmatpush1.msra.mxu0 0.0
    %209 = vmatprep.subr.mxu0 0.0
    %210 = vmatpush1.msra.mxu0 0.0
    %211 = vmatprep.subr.mxu0 0.0
    %212 = vmatpush1.msra.mxu0 0.0
    %213 = vmatprep.subr.mxu0 0.0
    %214 = vmatpush1.msra.mxu0 0.0
    %215 = vmatprep.subr.mxu0 0.0
    %216 = vmatpush1.msra.mxu0 0.0
    %217 = vmatprep.subr.mxu0 0.0
    %218 = vmatpush1.msra.mxu0 0.0
    %219 = vmatprep.subr.mxu0 0.0
    %220 = vmatpush1.msra.mxu0 0.0
    %221 = vmatprep.subr.mxu0 0.0
    %222 = vmatpush1.msra.mxu0 0.0
    %223 = vmatprep.subr.mxu0 0.0
    %224 = vmatpush1.msra.mxu0 0.0
    %225 = vmatprep.subr.mxu0 0.0
    %226 = vmatpush1.msra.mxu0 0.0
    %227 = vmatprep.subr.mxu0 0.0
    %228 = vmatpush1.msra.mxu0 0.0
    %229 = vmatprep.subr.mxu0 0.0
    %230 = vmatpush1.msra.mxu0 0.0
    %231 = vmatprep.subr.mxu0 0.0
    %232 = vmatpush1.msra.mxu0 0.0
    %233 = vmatprep.subr.mxu0 0.0
    %234 = vmatpush1.msra.mxu0 0.0
    %235 = vmatprep.mubr.f32.mxu0 0.0
    %236 = vmatmul.mubr.f32.gmra.mrb[0].mxu0 %v169
    %v237 = vpop.f32.mrb[0].mxu0
    %v238 = vadd.f32 %v87, %v237
    %v239 = vpop.f32.mrb[0].mxu0
    %240 = vdwg.mxu0
    %241 = vrot.lane.b32.xlu0 %v70, 120
    %v242 = vpop.permute.xlu0 %241
    %v243 = vsel %vm89, %v242, 0
    %245 = vmatprep.subr.mxu0 0.0
    %246 = vmatpush1.msra.mxu0 %v95
    %247 = vmatprep.subr.mxu0 0.0
    %248 = vmatpush1.msra.mxu0 0.0
    %249 = vmatprep.subr.mxu0 0.0
    %250 = vmatpush1.msra.mxu0 0.0
    %251 = vmatprep.subr.mxu0 0.0
    %252 = vmatpush1.msra.mxu0 0.0
    %253 = vmatprep.subr.mxu0 0.0
    %254 = vmatpush1.msra.mxu0 0.0
    %255 = vmatprep.subr.mxu0 0.0
    %256 = vmatpush1.msra.mxu0 0.0
    %257 = vmatprep.subr.mxu0 0.0
    %258 = vmatpush1.msra.mxu0 0.0
    %259 = vmatprep.subr.mxu0 0.0
    %260 = vmatpush1.msra.mxu0 0.0
    %261 = vmatprep.subr.mxu0 0.0
    %262 = vmatpush1.msra.mxu0 0.0
    %263 = vmatprep.subr.mxu0 0.0
    %264 = vmatpush1.msra.mxu0 0.0
    %265 = vmatprep.subr.mxu0 0.0
    %266 = vmatpush1.msra.mxu0 0.0
    %267 = vmatprep.subr.mxu0 0.0
    %268 = vmatpush1.msra.mxu0 0.0
    %269 = vmatprep.subr.mxu0 0.0
    %270 = vmatpush1.msra.mxu0 0.0
    %271 = vmatprep.subr.mxu0 0.0
    %272 = vmatpush1.msra.mxu0 0.0
    %273 = vmatprep.subr.mxu0 0.0
    %274 = vmatpush1.msra.mxu0 0.0
    %275 = vmatprep.subr.mxu0 0.0
    %276 = vmatpush1.msra.mxu0 0.0
    %277 = vmatprep.subr.mxu0 0.0
    %278 = vmatpush1.msra.mxu0 0.0
    %279 = vmatprep.subr.mxu0 0.0
    %280 = vmatpush1.msra.mxu0 0.0
    %281 = vmatprep.subr.mxu0 0.0
    %282 = vmatpush1.msra.mxu0 0.0
    %283 = vmatprep.subr.mxu0 0.0
    %284 = vmatpush1.msra.mxu0 0.0
    %285 = vmatprep.subr.mxu0 0.0
    %286 = vmatpush1.msra.mxu0 0.0
    %287 = vmatprep.subr.mxu0 0.0
    %288 = vmatpush1.msra.mxu0 0.0
    %289 = vmatprep.subr.mxu0 0.0
    %290 = vmatpush1.msra.mxu0 0.0
    %291 = vmatprep.subr.mxu0 0.0
    %292 = vmatpush1.msra.mxu0 0.0
    %293 = vmatprep.subr.mxu0 0.0
    %294 = vmatpush1.msra.mxu0 0.0
    %295 = vmatprep.subr.mxu0 0.0
    %296 = vmatpush1.msra.mxu0 0.0
    %297 = vmatprep.subr.mxu0 0.0
    %298 = vmatpush1.msra.mxu0 0.0
    %299 = vmatprep.subr.mxu0 0.0
    %300 = vmatpush1.msra.mxu0 0.0
    %301 = vmatprep.subr.mxu0 0.0
    %302 = vmatpush1.msra.mxu0 0.0
    %303 = vmatprep.subr.mxu0 0.0
    %304 = vmatpush1.msra.mxu0 0.0
    %305 = vmatprep.subr.mxu0 0.0
    %306 = vmatpush1.msra.mxu0 0.0
    %307 = vmatprep.subr.mxu0 0.0
    %308 = vmatpush1.msra.mxu0 0.0
    %309 = vmatprep.mubr.f32.mxu0 0.0
    %310 = vmatmul.mubr.f32.gmra.mrb[0].mxu0 %v243
    %v311 = vpop.f32.mrb[0].mxu0
    %v312 = vadd.f32 %v87, %v311
    %v313 = vpop.f32.mrb[0].mxu0
    %314 = vdwg.mxu0
    %315 = vrot.lane.b32.xlu0 %v70, 116
    %v316 = vpop.permute.xlu0 %315
    %v317 = vsel %vm89, %v316, 0
    %319 = vmatprep.subr.mxu0 0.0
    %320 = vmatpush1.msra.mxu0 %v95
    %321 = vmatprep.subr.mxu0 0.0
    %322 = vmatpush1.msra.mxu0 0.0
    %323 = vmatprep.subr.mxu0 0.0
    %324 = vmatpush1.msra.mxu0 0.0
    %325 = vmatprep.subr.mxu0 0.0
    %326 = vmatpush1.msra.mxu0 0.0
    %327 = vmatprep.subr.mxu0 0.0
    %328 = vmatpush1.msra.mxu0 0.0
    %329 = vmatprep.subr.mxu0 0.0
    %330 = vmatpush1.msra.mxu0 0.0
    %331 = vmatprep.subr.mxu0 0.0
    %332 = vmatpush1.msra.mxu0 0.0
    %333 = vmatprep.subr.mxu0 0.0
    %334 = vmatpush1.msra.mxu0 0.0
    %335 = vmatprep.subr.mxu0 0.0
    %336 = vmatpush1.msra.mxu0 0.0
    %337 = vmatprep.subr.mxu0 0.0
    %338 = vmatpush1.msra.mxu0 0.0
    %339 = vmatprep.subr.mxu0 0.0
    %340 = vmatpush1.msra.mxu0 0.0
    %341 = vmatprep.subr.mxu0 0.0
    %342 = vmatpush1.msra.mxu0 0.0
    %343 = vmatprep.subr.mxu0 0.0
    %344 = vmatpush1.msra.mxu0 0.0
    %345 = vmatprep.subr.mxu0 0.0
    %346 = vmatpush1.msra.mxu0 0.0
    %347 = vmatprep.subr.mxu0 0.0
    %348 = vmatpush1.msra.mxu0 0.0
    %349 = vmatprep.subr.mxu0 0.0
    %350 = vmatpush1.msra.mxu0 0.0
    %351 = vmatprep.subr.mxu0 0.0
    %352 = vmatpush1.msra.mxu0 0.0
    %353 = vmatprep.subr.mxu0 0.0
    %354 = vmatpush1.msra.mxu0 0.0
    %355 = vmatprep.subr.mxu0 0.0
    %356 = vmatpush1.msra.mxu0 0.0
    %357 = vmatprep.subr.mxu0 0.0
    %358 = vmatpush1.msra.mxu0 0.0
    %359 = vmatprep.subr.mxu0 0.0
    %360 = vmatpush1.msra.mxu0 0.0
    %361 = vmatprep.subr.mxu0 0.0
    %362 = vmatpush1.msra.mxu0 0.0
    %363 = vmatprep.subr.mxu0 0.0
    %364 = vmatpush1.msra.mxu0 0.0
    %365 = vmatprep.subr.mxu0 0.0
    %366 = vmatpush1.msra.mxu0 0.0
    %367 = vmatprep.subr.mxu0 0.0
    %368 = vmatpush1.msra.mxu0 0.0
    %369 = vmatprep.subr.mxu0 0.0
    %370 = vmatpush1.msra.mxu0 0.0
    %371 = vmatprep.subr.mxu0 0.0
    %372 = vmatpush1.msra.mxu0 0.0
    %373 = vmatprep.subr.mxu0 0.0
    %374 = vmatpush1.msra.mxu0 0.0
    %375 = vmatprep.subr.mxu0 0.0
    %376 = vmatpush1.msra.mxu0 0.0
    %377 = vmatprep.subr.mxu0 0.0
    %378 = vmatpush1.msra.mxu0 0.0
    %379 = vmatprep.subr.mxu0 0.0
    %380 = vmatpush1.msra.mxu0 0.0
    %381 = vmatprep.subr.mxu0 0.0
    %382 = vmatpush1.msra.mxu0 0.0
    %383 = vmatprep.mubr.f32.mxu0 0.0
    %384 = vmatmul.mubr.f32.gmra.mrb[0].mxu0 %v317
    %v385 = vpop.f32.mrb[0].mxu0
    %v386 = vadd.f32 %v87, %v385
    %v387 = vpop.f32.mrb[0].mxu0
    %388 = vdwg.mxu0
    %389 = vrot.lane.b32.xlu0 %v70, 112
    %v390 = vpop.permute.xlu0 %389
    %v391 = vsel %vm89, %v390, 0
    %393 = vmatprep.subr.mxu0 0.0
    %394 = vmatpush1.msra.mxu0 %v95
    %395 = vmatprep.subr.mxu0 0.0
    %396 = vmatpush1.msra.mxu0 0.0
    %397 = vmatprep.subr.mxu0 0.0
    %398 = vmatpush1.msra.mxu0 0.0
    %399 = vmatprep.subr.mxu0 0.0
    %400 = vmatpush1.msra.mxu0 0.0
    %401 = vmatprep.subr.mxu0 0.0
    %402 = vmatpush1.msra.mxu0 0.0
    %403 = vmatprep.subr.mxu0 0.0
    %404 = vmatpush1.msra.mxu0 0.0
    %405 = vmatprep.subr.mxu0 0.0
    %406 = vmatpush1.msra.mxu0 0.0
    %407 = vmatprep.subr.mxu0 0.0
    %408 = vmatpush1.msra.mxu0 0.0
    %409 = vmatprep.subr.mxu0 0.0
    %410 = vmatpush1.msra.mxu0 0.0
    %411 = vmatprep.subr.mxu0 0.0
    %412 = vmatpush1.msra.mxu0 0.0
    %413 = vmatprep.subr.mxu0 0.0
    %414 = vmatpush1.msra.mxu0 0.0
    %415 = vmatprep.subr.mxu0 0.0
    %416 = vmatpush1.msra.mxu0 0.0
    %417 = vmatprep.subr.mxu0 0.0
    %418 = vmatpush1.msra.mxu0 0.0
    %419 = vmatprep.subr.mxu0 0.0
    %420 = vmatpush1.msra.mxu0 0.0
    %421 = vmatprep.subr.mxu0 0.0
    %422 = vmatpush1.msra.mxu0 0.0
    %423 = vmatprep.subr.mxu0 0.0
    %424 = vmatpush1.msra.mxu0 0.0
    %425 = vmatprep.subr.mxu0 0.0
    %426 = vmatpush1.msra.mxu0 0.0
    %427 = vmatprep.subr.mxu0 0.0
    %428 = vmatpush1.msra.mxu0 0.0
    %429 = vmatprep.subr.mxu0 0.0
    %430 = vmatpush1.msra.mxu0 0.0
    %431 = vmatprep.subr.mxu0 0.0
    %432 = vmatpush1.msra.mxu0 0.0
    %433 = vmatprep.subr.mxu0 0.0
    %434 = vmatpush1.msra.mxu0 0.0
    %435 = vmatprep.subr.mxu0 0.0
    %436 = vmatpush1.msra.mxu0 0.0
    %437 = vmatprep.subr.mxu0 0.0
    %438 = vmatpush1.msra.mxu0 0.0
    %439 = vmatprep.subr.mxu0 0.0
    %440 = vmatpush1.msra.mxu0 0.0
    %441 = vmatprep.subr.mxu0 0.0
    %442 = vmatpush1.msra.mxu0 0.0
    %443 = vmatprep.subr.mxu0 0.0
    %444 = vmatpush1.msra.mxu0 0.0
    %445 = vmatprep.subr.mxu0 0.0
    %446 = vmatpush1.msra.mxu0 0.0
    %447 = vmatprep.subr.mxu0 0.0
    %448 = vmatpush1.msra.mxu0 0.0
    %449 = vmatprep.subr.mxu0 0.0
    %450 = vmatpush1.msra.mxu0 0.0
    %451 = vmatprep.subr.mxu0 0.0
    %452 = vmatpush1.msra.mxu0 0.0
    %453 = vmatprep.subr.mxu0 0.0
    %454 = vmatpush1.msra.mxu0 0.0
    %455 = vmatprep.subr.mxu0 0.0
    %456 = vmatpush1.msra.mxu0 0.0
    %457 = vmatprep.mubr.f32.mxu0 0.0
    %458 = vmatmul.mubr.f32.gmra.mrb[0].mxu0 %v391
    %v459 = vpop.f32.mrb[0].mxu0
    %v460 = vadd.f32 %v87, %v459
    %v461 = vpop.f32.mrb[0].mxu0
    %462 = vdwg.mxu0
    %463 = vrot.lane.b32.xlu0 %v70, 108
    %v464 = vpop.permute.xlu0 %463
    %v465 = vsel %vm89, %v464, 0
    %467 = vmatprep.subr.mxu0 0.0
    %468 = vmatpush1.msra.mxu0 %v95
    %469 = vmatprep.subr.mxu0 0.0
    %470 = vmatpush1.msra.mxu0 0.0
    %471 = vmatprep.subr.mxu0 0.0
    %472 = vmatpush1.msra.mxu0 0.0
    %473 = vmatprep.subr.mxu0 0.0
    %474 = vmatpush1.msra.mxu0 0.0
    %475 = vmatprep.subr.mxu0 0.0
    %476 = vmatpush1.msra.mxu0 0.0
    %477 = vmatprep.subr.mxu0 0.0
    %478 = vmatpush1.msra.mxu0 0.0
    %479 = vmatprep.subr.mxu0 0.0
    %480 = vmatpush1.msra.mxu0 0.0
    %481 = vmatprep.subr.mxu0 0.0
    %482 = vmatpush1.msra.mxu0 0.0
    %483 = vmatprep.subr.mxu0 0.0
    %484 = vmatpush1.msra.mxu0 0.0
    %485 = vmatprep.subr.mxu0 0.0
    %486 = vmatpush1.msra.mxu0 0.0
    %487 = vmatprep.subr.mxu0 0.0
    %488 = vmatpush1.msra.mxu0 0.0
    %489 = vmatprep.subr.mxu0 0.0
    %490 = vmatpush1.msra.mxu0 0.0
    %491 = vmatprep.subr.mxu0 0.0
    %492 = vmatpush1.msra.mxu0 0.0
    %493 = vmatprep.subr.mxu0 0.0
    %494 = vmatpush1.msra.mxu0 0.0
    %495 = vmatprep.subr.mxu0 0.0
    %496 = vmatpush1.msra.mxu0 0.0
    %497 = vmatprep.subr.mxu0 0.0
    %498 = vmatpush1.msra.mxu0 0.0
    %499 = vmatprep.subr.mxu0 0.0
    %500 = vmatpush1.msra.mxu0 0.0
    %501 = vmatprep.subr.mxu0 0.0
    %502 = vmatpush1.msra.mxu0 0.0
    %503 = vmatprep.subr.mxu0 0.0
    %504 = vmatpush1.msra.mxu0 0.0
    %505 = vmatprep.subr.mxu0 0.0
    %506 = vmatpush1.msra.mxu0 0.0
    %507 = vmatprep.subr.mxu0 0.0
    %508 = vmatpush1.msra.mxu0 0.0
    %509 = vmatprep.subr.mxu0 0.0
    %510 = vmatpush1.msra.mxu0 0.0
    %511 = vmatprep.subr.mxu0 0.0
    %512 = vmatpush1.msra.mxu0 0.0
    %513 = vmatprep.subr.mxu0 0.0
    %514 = vmatpush1.msra.mxu0 0.0
    %515 = vmatprep.subr.mxu0 0.0
    %516 = vmatpush1.msra.mxu0 0.0
    %517 = vmatprep.subr.mxu0 0.0
    %518 = vmatpush1.msra.mxu0 0.0
    %519 = vmatprep.subr.mxu0 0.0
    %520 = vmatpush1.msra.mxu0 0.0
    %521 = vmatprep.subr.mxu0 0.0
    %522 = vmatpush1.msra.mxu0 0.0
    %523 = vmatprep.subr.mxu0 0.0
    %524 = vmatpush1.msra.mxu0 0.0
    %525 = vmatprep.subr.mxu0 0.0
    %526 = vmatpush1.msra.mxu0 0.0
    %527 = vmatprep.subr.mxu0 0.0
    %528 = vmatpush1.msra.mxu0 0.0
    %529 = vmatprep.subr.mxu0 0.0
    %530 = vmatpush1.msra.mxu0 0.0
    %531 = vmatprep.mubr.f32.mxu0 0.0
    %532 = vmatmul.mubr.f32.gmra.mrb[0].mxu0 %v465
    %v533 = vpop.f32.mrb[0].mxu0
    %v534 = vadd.f32 %v87, %v533
    %v535 = vpop.f32.mrb[0].mxu0
    %536 = vdwg.mxu0
    %537 = vrot.lane.b32.xlu0 %v70, 104
    %v538 = vpop.permute.xlu0 %537
    %v539 = vsel %vm89, %v538, 0
    %541 = vmatprep.subr.mxu0 0.0
    %542 = vmatpush1.msra.mxu0 %v95
    %543 = vmatprep.subr.mxu0 0.0
    %544 = vmatpush1.msra.mxu0 0.0
    %545 = vmatprep.subr.mxu0 0.0
    %546 = vmatpush1.msra.mxu0 0.0
    %547 = vmatprep.subr.mxu0 0.0
    %548 = vmatpush1.msra.mxu0 0.0
    %549 = vmatprep.subr.mxu0 0.0
    %550 = vmatpush1.msra.mxu0 0.0
    %551 = vmatprep.subr.mxu0 0.0
    %552 = vmatpush1.msra.mxu0 0.0
    %553 = vmatprep.subr.mxu0 0.0
    %554 = vmatpush1.msra.mxu0 0.0
    %555 = vmatprep.subr.mxu0 0.0
    %556 = vmatpush1.msra.mxu0 0.0
    %557 = vmatprep.subr.mxu0 0.0
    %558 = vmatpush1.msra.mxu0 0.0
    %559 = vmatprep.subr.mxu0 0.0
    %560 = vmatpush1.msra.mxu0 0.0
    %561 = vmatprep.subr.mxu0 0.0
    %562 = vmatpush1.msra.mxu0 0.0
    %563 = vmatprep.subr.mxu0 0.0
    %564 = vmatpush1.msra.mxu0 0.0
    %565 = vmatprep.subr.mxu0 0.0
    %566 = vmatpush1.msra.mxu0 0.0
    %567 = vmatprep.subr.mxu0 0.0
    %568 = vmatpush1.msra.mxu0 0.0
    %569 = vmatprep.subr.mxu0 0.0
    %570 = vmatpush1.msra.mxu0 0.0
    %571 = vmatprep.subr.mxu0 0.0
    %572 = vmatpush1.msra.mxu0 0.0
    %573 = vmatprep.subr.mxu0 0.0
    %574 = vmatpush1.msra.mxu0 0.0
    %575 = vmatprep.subr.mxu0 0.0
    %576 = vmatpush1.msra.mxu0 0.0
    %577 = vmatprep.subr.mxu0 0.0
    %578 = vmatpush1.msra.mxu0 0.0
    %579 = vmatprep.subr.mxu0 0.0
    %580 = vmatpush1.msra.mxu0 0.0
    %581 = vmatprep.subr.mxu0 0.0
    %582 = vmatpush1.msra.mxu0 0.0
    %583 = vmatprep.subr.mxu0 0.0
    %584 = vmatpush1.msra.mxu0 0.0
    %585 = vmatprep.subr.mxu0 0.0
    %586 = vmatpush1.msra.mxu0 0.0
    %587 = vmatprep.subr.mxu0 0.0
    %588 = vmatpush1.msra.mxu0 0.0
    %589 = vmatprep.subr.mxu0 0.0
    %590 = vmatpush1.msra.mxu0 0.0
    %591 = vmatprep.subr.mxu0 0.0
    %592 = vmatpush1.msra.mxu0 0.0
    %593 = vmatprep.subr.mxu0 0.0
    %594 = vmatpush1.msra.mxu0 0.0
    %595 = vmatprep.subr.mxu0 0.0
    %596 = vmatpush1.msra.mxu0 0.0
    %597 = vmatprep.subr.mxu0 0.0
    %598 = vmatpush1.msra.mxu0 0.0
    %599 = vmatprep.subr.mxu0 0.0
    %600 = vmatpush1.msra.mxu0 0.0
    %601 = vmatprep.subr.mxu0 0.0
    %602 = vmatpush1.msra.mxu0 0.0
    %603 = vmatprep.subr.mxu0 0.0
    %604 = vmatpush1.msra.mxu0 0.0
    %605 = vmatprep.mubr.f32.mxu0 0.0
    %606 = vmatmul.mubr.f32.gmra.mrb[0].mxu0 %v539
    %v607 = vpop.f32.mrb[0].mxu0
    %v608 = vadd.f32 %v87, %v607
    %v609 = vpop.f32.mrb[0].mxu0
    %610 = vdwg.mxu0
    %611 = vrot.lane.b32.xlu0 %v70, 100
    %v612 = vpop.permute.xlu0 %611
    %v613 = vsel %vm89, %v612, 0
    %615 = vmatprep.subr.mxu0 0.0
    %616 = vmatpush1.msra.mxu0 %v95
    %617 = vmatprep.subr.mxu0 0.0
    %618 = vmatpush1.msra.mxu0 0.0
    %619 = vmatprep.subr.mxu0 0.0
    %620 = vmatpush1.msra.mxu0 0.0
    %621 = vmatprep.subr.mxu0 0.0
    %622 = vmatpush1.msra.mxu0 0.0
    %623 = vmatprep.subr.mxu0 0.0
    %624 = vmatpush1.msra.mxu0 0.0
    %625 = vmatprep.subr.mxu0 0.0
    %626 = vmatpush1.msra.mxu0 0.0
    %627 = vmatprep.subr.mxu0 0.0
    %628 = vmatpush1.msra.mxu0 0.0
    %629 = vmatprep.subr.mxu0 0.0
    %630 = vmatpush1.msra.mxu0 0.0
    %631 = vmatprep.subr.mxu0 0.0
    %632 = vmatpush1.msra.mxu0 0.0
    %633 = vmatprep.subr.mxu0 0.0
    %634 = vmatpush1.msra.mxu0 0.0
    %635 = vmatprep.subr.mxu0 0.0
    %636 = vmatpush1.msra.mxu0 0.0
    %637 = vmatprep.subr.mxu0 0.0
    %638 = vmatpush1.msra.mxu0 0.0
    %639 = vmatprep.subr.mxu0 0.0
    %640 = vmatpush1.msra.mxu0 0.0
    %641 = vmatprep.subr.mxu0 0.0
    %642 = vmatpush1.msra.mxu0 0.0
    %643 = vmatprep.subr.mxu0 0.0
    %644 = vmatpush1.msra.mxu0 0.0
    %645 = vmatprep.subr.mxu0 0.0
    %646 = vmatpush1.msra.mxu0 0.0
    %647 = vmatprep.subr.mxu0 0.0
    %648 = vmatpush1.msra.mxu0 0.0
    %649 = vmatprep.subr.mxu0 0.0
    %650 = vmatpush1.msra.mxu0 0.0
    %651 = vmatprep.subr.mxu0 0.0
    %652 = vmatpush1.msra.mxu0 0.0
    %653 = vmatprep.subr.mxu0 0.0
    %654 = vmatpush1.msra.mxu0 0.0
    %655 = vmatprep.subr.mxu0 0.0
    %656 = vmatpush1.msra.mxu0 0.0
    %657 = vmatprep.subr.mxu0 0.0
    %658 = vmatpush1.msra.mxu0 0.0
    %659 = vmatprep.subr.mxu0 0.0
    %660 = vmatpush1.msra.mxu0 0.0
    %661 = vmatprep.subr.mxu0 0.0
    %662 = vmatpush1.msra.mxu0 0.0
    %663 = vmatprep.subr.mxu0 0.0
    %664 = vmatpush1.msra.mxu0 0.0
    %665 = vmatprep.subr.mxu0 0.0
    %666 = vmatpush1.msra.mxu0 0.0
    %667 = vmatprep.subr.mxu0 0.0
    %668 = vmatpush1.msra.mxu0 0.0
    %669 = vmatprep.subr.mxu0 0.0
    %670 = vmatpush1.msra.mxu0 0.0
    %671 = vmatprep.subr.mxu0 0.0
    %672 = vmatpush1.msra.mxu0 0.0
    %673 = vmatprep.subr.mxu0 0.0
    %674 = vmatpush1.msra.mxu0 0.0
    %675 = vmatprep.subr.mxu0 0.0
    %676 = vmatpush1.msra.mxu0 0.0
    %677 = vmatprep.subr.mxu0 0.0
    %678 = vmatpush1.msra.mxu0 0.0
    %679 = vmatprep.mubr.f32.mxu0 0.0
    %680 = vmatmul.mubr.f32.gmra.mrb[0].mxu0 %v613
    %v681 = vpop.f32.mrb[0].mxu0
    %v682 = vadd.f32 %v87, %v681
    %v683 = vpop.f32.mrb[0].mxu0
    %684 = vdwg.mxu0
    %vm685 = vcmask 130048
    %v687 = vsel %vm685, 0.0, 0
    %689 = vmatprep.subr.mxu0 0.0
    %690 = vmatpush1.msra.mxu0 %v72
    %691 = vmatprep.subr.mxu0 0.0
    %692 = vmatpush1.msra.mxu0 %v73
    %693 = vmatprep.subr.mxu0 0.0
    %694 = vmatpush1.msra.mxu0 0.0
    %695 = vmatprep.subr.mxu0 0.0
    %696 = vmatpush1.msra.mxu0 0.0
    %697 = vmatprep.subr.mxu0 0.0
    %698 = vmatpush1.msra.mxu0 0.0
    %699 = vmatprep.subr.mxu0 0.0
    %700 = vmatpush1.msra.mxu0 0.0
    %701 = vmatprep.subr.mxu0 0.0
    %702 = vmatpush1.msra.mxu0 0.0
    %703 = vmatprep.subr.mxu0 0.0
    %704 = vmatpush1.msra.mxu0 0.0
    %705 = vmatprep.subr.mxu0 0.0
    %706 = vmatpush1.msra.mxu0 0.0
    %707 = vmatprep.subr.mxu0 0.0
    %708 = vmatpush1.msra.mxu0 0.0
    %709 = vmatprep.subr.mxu0 0.0
    %710 = vmatpush1.msra.mxu0 0.0
    %711 = vmatprep.subr.mxu0 0.0
    %712 = vmatpush1.msra.mxu0 0.0
    %713 = vmatprep.subr.mxu0 0.0
    %714 = vmatpush1.msra.mxu0 0.0
    %715 = vmatprep.subr.mxu0 0.0
    %716 = vmatpush1.msra.mxu0 0.0
    %717 = vmatprep.subr.mxu0 0.0
    %718 = vmatpush1.msra.mxu0 0.0
    %719 = vmatprep.subr.mxu0 0.0
    %720 = vmatpush1.msra.mxu0 0.0
    %721 = vmatprep.subr.mxu0 0.0
    %722 = vmatpush1.msra.mxu0 0.0
    %723 = vmatprep.subr.mxu0 0.0
    %724 = vmatpush1.msra.mxu0 0.0
    %725 = vmatprep.subr.mxu0 0.0
    %726 = vmatpush1.msra.mxu0 0.0
    %727 = vmatprep.subr.mxu0 0.0
    %728 = vmatpush1.msra.mxu0 0.0
    %729 = vmatprep.subr.mxu0 0.0
    %730 = vmatpush1.msra.mxu0 0.0
    %731 = vmatprep.subr.mxu0 0.0
    %732 = vmatpush1.msra.mxu0 0.0
    %733 = vmatprep.subr.mxu0 0.0
    %734 = vmatpush1.msra.mxu0 0.0
    %735 = vmatprep.subr.mxu0 0.0
    %736 = vmatpush1.msra.mxu0 0.0
    %737 = vmatprep.subr.mxu0 0.0
    %738 = vmatpush1.msra.mxu0 0.0
    %739 = vmatprep.subr.mxu0 0.0
    %740 = vmatpush1.msra.mxu0 0.0
    %741 = vmatprep.subr.mxu0 0.0
    %742 = vmatpush1.msra.mxu0 0.0
    %743 = vmatprep.subr.mxu0 0.0
    %744 = vmatpush1.msra.mxu0 0.0
    %745 = vmatprep.subr.mxu0 0.0
    %746 = vmatpush1.msra.mxu0 0.0
    %747 = vmatprep.subr.mxu0 0.0
    %748 = vmatpush1.msra.mxu0 0.0
    %749 = vmatprep.subr.mxu0 0.0
    %750 = vmatpush1.msra.mxu0 0.0
    %751 = vmatprep.subr.mxu0 0.0
    %752 = vmatpush1.msra.mxu0 0.0
    %753 = vmatprep.mubr.f32.mxu0 0.0
    %754 = vmatmul.mubr.f32.gmra.mrb[0].mxu0 %v687
    %v755 = vpop.f32.mrb[0].mxu0
    %v756 = vadd.f32 0.0, %v755
    %v757 = vpop.f32.mrb[0].mxu0
    %758 = vdwg.mxu0
    %v759 = vadd.f32 %v164, %v756
    %v760 = vxor.u32 %v759, 2147483648
    %v761 = vmul.f32 %v760, 1.442695
    %v762 = vpow.pop %v761
    %v763 = vadd.f32 %v762, 1.0
    %v764 = vrcp.pop %v763
    %v765 = vmul.f32 1.0, %v764
    %v766 = vtanh.pop %v759
    %v767 = vmul.f32 %v765, 0.0
    %769 = vrot.lane.b32.xlu0 %v766, 96
    %v770 = vpop.permute.xlu0 %769
    %v772 = vmul.f32 %v765, %v770
    %774 = vrot.lane.b32.xlu0 %v772, 16
    %v775 = vpop.permute.xlu0 %774
    %v777 = vadd.f32 %v767, %v775
    %v778 = vtanh.pop %v777
    %780 = vrot.lane.b32.xlu0 %v778, 32
    %v781 = vpop.permute.xlu0 %780
    %v783 = vmul.f32 %v765, %v781
    %785 = vrot.lane.b32.xlu0 %v783, 80
    %v786 = vpop.permute.xlu0 %785
    %v787 = vsel %vm685, %v786, 0
    %789 = vmatprep.subr.mxu0 0.0
    %790 = vmatpush1.msra.mxu0 %v72
    %791 = vmatprep.subr.mxu0 0.0
    %792 = vmatpush1.msra.mxu0 %v73
    %793 = vmatprep.subr.mxu0 0.0
    %794 = vmatpush1.msra.mxu0 0.0
    %795 = vmatprep.subr.mxu0 0.0
    %796 = vmatpush1.msra.mxu0 0.0
    %797 = vmatprep.subr.mxu0 0.0
    %798 = vmatpush1.msra.mxu0 0.0
    %799 = vmatprep.subr.mxu0 0.0
    %800 = vmatpush1.msra.mxu0 0.0
    %801 = vmatprep.subr.mxu0 0.0
    %802 = vmatpush1.msra.mxu0 0.0
    %803 = vmatprep.subr.mxu0 0.0
    %804 = vmatpush1.msra.mxu0 0.0
    %805 = vmatprep.subr.mxu0 0.0
    %806 = vmatpush1.msra.mxu0 0.0
    %807 = vmatprep.subr.mxu0 0.0
    %808 = vmatpush1.msra.mxu0 0.0
    %809 = vmatprep.subr.mxu0 0.0
    %810 = vmatpush1.msra.mxu0 0.0
    %811 = vmatprep.subr.mxu0 0.0
    %812 = vmatpush1.msra.mxu0 0.0
    %813 = vmatprep.subr.mxu0 0.0
    %814 = vmatpush1.msra.mxu0 0.0
    %815 = vmatprep.subr.mxu0 0.0
    %816 = vmatpush1.msra.mxu0 0.0
    %817 = vmatprep.subr.mxu0 0.0
    %818 = vmatpush1.msra.mxu0 0.0
    %819 = vmatprep.subr.mxu0 0.0
    %820 = vmatpush1.msra.mxu0 0.0
    %821 = vmatprep.subr.mxu0 0.0
    %822 = vmatpush1.msra.mxu0 0.0
    %823 = vmatprep.subr.mxu0 0.0
    %824 = vmatpush1.msra.mxu0 0.0
    %825 = vmatprep.subr.mxu0 0.0
    %826 = vmatpush1.msra.mxu0 0.0
    %827 = vmatprep.subr.mxu0 0.0
    %828 = vmatpush1.msra.mxu0 0.0
    %829 = vmatprep.subr.mxu0 0.0
    %830 = vmatpush1.msra.mxu0 0.0
    %831 = vmatprep.subr.mxu0 0.0
    %832 = vmatpush1.msra.mxu0 0.0
    %833 = vmatprep.subr.mxu0 0.0
    %834 = vmatpush1.msra.mxu0 0.0
    %835 = vmatprep.subr.mxu0 0.0
    %836 = vmatpush1.msra.mxu0 0.0
    %837 = vmatprep.subr.mxu0 0.0
    %838 = vmatpush1.msra.mxu0 0.0
    %839 = vmatprep.subr.mxu0 0.0
    %840 = vmatpush1.msra.mxu0 0.0
    %841 = vmatprep.subr.mxu0 0.0
    %842 = vmatpush1.msra.mxu0 0.0
    %843 = vmatprep.subr.mxu0 0.0
    %844 = vmatpush1.msra.mxu0 0.0
    %845 = vmatprep.subr.mxu0 0.0
    %846 = vmatpush1.msra.mxu0 0.0
    %847 = vmatprep.subr.mxu0 0.0
    %848 = vmatpush1.msra.mxu0 0.0
    %849 = vmatprep.subr.mxu0 0.0
    %850 = vmatpush1.msra.mxu0 0.0
    %851 = vmatprep.subr.mxu0 0.0
    %852 = vmatpush1.msra.mxu0 0.0
    %853 = vmatprep.mubr.f32.mxu0 0.0
    %854 = vmatmul.mubr.f32.gmra.mrb[0].mxu0 %v787
    %v855 = vpop.f32.mrb[0].mxu0
    %v856 = vadd.f32 0.0, %v855
    %v857 = vpop.f32.mrb[0].mxu0
    %858 = vdwg.mxu0
    %v859 = vadd.f32 %v238, %v856
    %v860 = vxor.u32 %v859, 2147483648
    %v861 = vmul.f32 %v860, 1.442695
    %v862 = vpow.pop %v861
    %v863 = vadd.f32 %v862, 1.0
    %v864 = vrcp.pop %v863
    %v865 = vmul.f32 1.0, %v864
    %v866 = vtanh.pop %v859
    %v867 = vmul.f32 %v865, %v777
    %869 = vrot.lane.b32.xlu0 %v866, 96
    %v870 = vpop.permute.xlu0 %869
    %v872 = vmul.f32 %v865, %v870
    %874 = vrot.lane.b32.xlu0 %v872, 16
    %v875 = vpop.permute.xlu0 %874
    %v877 = vadd.f32 %v867, %v875
    %v878 = vtanh.pop %v877
    %880 = vrot.lane.b32.xlu0 %v878, 32
    %v881 = vpop.permute.xlu0 %880
    %v883 = vmul.f32 %v865, %v881
    %885 = vrot.lane.b32.xlu0 %v883, 80
    %v886 = vpop.permute.xlu0 %885
    %v887 = vsel %vm685, %v886, 0
    %889 = vmatprep.subr.mxu0 0.0
    %890 = vmatpush1.msra.mxu0 %v72
    %891 = vmatprep.subr.mxu0 0.0
    %892 = vmatpush1.msra.mxu0 %v73
    %893 = vmatprep.subr.mxu0 0.0
    %894 = vmatpush1.msra.mxu0 0.0
    %895 = vmatprep.subr.mxu0 0.0
    %896 = vmatpush1.msra.mxu0 0.0
    %897 = vmatprep.subr.mxu0 0.0
    %898 = vmatpush1.msra.mxu0 0.0
    %899 = vmatprep.subr.mxu0 0.0
    %900 = vmatpush1.msra.mxu0 0.0
    %901 = vmatprep.subr.mxu0 0.0
    %902 = vmatpush1.msra.mxu0 0.0
    %903 = vmatprep.subr.mxu0 0.0
    %904 = vmatpush1.msra.mxu0 0.0
    %905 = vmatprep.subr.mxu0 0.0
    %906 = vmatpush1.msra.mxu0 0.0
    %907 = vmatprep.subr.mxu0 0.0
    %908 = vmatpush1.msra.mxu0 0.0
    %909 = vmatprep.subr.mxu0 0.0
    %910 = vmatpush1.msra.mxu0 0.0
    %911 = vmatprep.subr.mxu0 0.0
    %912 = vmatpush1.msra.mxu0 0.0
    %913 = vmatprep.subr.mxu0 0.0
    %914 = vmatpush1.msra.mxu0 0.0
    %915 = vmatprep.subr.mxu0 0.0
    %916 = vmatpush1.msra.mxu0 0.0
    %917 = vmatprep.subr.mxu0 0.0
    %918 = vmatpush1.msra.mxu0 0.0
    %919 = vmatprep.subr.mxu0 0.0
    %920 = vmatpush1.msra.mxu0 0.0
    %921 = vmatprep.subr.mxu0 0.0
    %922 = vmatpush1.msra.mxu0 0.0
    %923 = vmatprep.subr.mxu0 0.0
    %924 = vmatpush1.msra.mxu0 0.0
    %925 = vmatprep.subr.mxu0 0.0
    %926 = vmatpush1.msra.mxu0 0.0
    %927 = vmatprep.subr.mxu0 0.0
    %928 = vmatpush1.msra.mxu0 0.0
    %929 = vmatprep.subr.mxu0 0.0
    %930 = vmatpush1.msra.mxu0 0.0
    %931 = vmatprep.subr.mxu0 0.0
    %932 = vmatpush1.msra.mxu0 0.0
    %933 = vmatprep.subr.mxu0 0.0
    %934 = vmatpush1.msra.mxu0 0.0
    %935 = vmatprep.subr.mxu0 0.0
    %936 = vmatpush1.msra.mxu0 0.0
    %937 = vmatprep.subr.mxu0 0.0
    %938 = vmatpush1.msra.mxu0 0.0
    %939 = vmatprep.subr.mxu0 0.0
    %940 = vmatpush1.msra.mxu0 0.0
    %941 = vmatprep.subr.mxu0 0.0
    %942 = vmatpush1.msra.mxu0 0.0
    %943 = vmatprep.subr.mxu0 0.0
    %944 = vmatpush1.msra.mxu0 0.0
    %945 = vmatprep.subr.mxu0 0.0
    %946 = vmatpush1.msra.mxu0 0.0
    %947 = vmatprep.subr.mxu0 0.0
    %948 = vmatpush1.msra.mxu0 0.0
    %949 = vmatprep.subr.mxu0 0.0
    %950 = vmatpush1.msra.mxu0 0.0
    %951 = vmatprep.subr.mxu0 0.0
    %952 = vmatpush1.msra.mxu0 0.0
    %953 = vmatprep.mubr.f32.mxu0 0.0
    %954 = vmatmul.mubr.f32.gmra.mrb[0].mxu0 %v887
    %v955 = vpop.f32.mrb[0].mxu0
    %v956 = vadd.f32 0.0, %v955
    %v957 = vpop.f32.mrb[0].mxu0
    %958 = vdwg.mxu0
    %v959 = vadd.f32 %v312, %v956
    %v960 = vxor.u32 %v959, 2147483648
    %v961 = vmul.f32 %v960, 1.442695
    %v962 = vpow.pop %v961
    %v963 = vadd.f32 %v962, 1.0
    %v964 = vrcp.pop %v963
    %v965 = vmul.f32 1.0, %v964
    %v966 = vtanh.pop %v959
    %v967 = vmul.f32 %v965, %v877
    %969 = vrot.lane.b32.xlu0 %v966, 96
    %v970 = vpop.permute.xlu0 %969
    %v972 = vmul.f32 %v965, %v970
    %974 = vrot.lane.b32.xlu0 %v972, 16
    %v975 = vpop.permute.xlu0 %974
    %v977 = vadd.f32 %v967, %v975
    %v978 = vtanh.pop %v977
    %980 = vrot.lane.b32.xlu0 %v978, 32
    %v981 = vpop.permute.xlu0 %980
    %v983 = vmul.f32 %v965, %v981
    %985 = vrot.lane.b32.xlu0 %v983, 80
    %v986 = vpop.permute.xlu0 %985
    %v987 = vsel %vm685, %v986, 0
    %989 = vmatprep.subr.mxu0 0.0
    %990 = vmatpush1.msra.mxu0 %v72
    %991 = vmatprep.subr.mxu0 0.0
    %992 = vmatpush1.msra.mxu0 %v73
    %993 = vmatprep.subr.mxu0 0.0
    %994 = vmatpush1.msra.mxu0 0.0
    %995 = vmatprep.subr.mxu0 0.0
    %996 = vmatpush1.msra.mxu0 0.0
    %997 = vmatprep.subr.mxu0 0.0
    %998 = vmatpush1.msra.mxu0 0.0
    %999 = vmatprep.subr.mxu0 0.0
    %1000 = vmatpush1.msra.mxu0 0.0
    %1001 = vmatprep.subr.mxu0 0.0
    %1002 = vmatpush1.msra.mxu0 0.0
    %1003 = vmatprep.subr.mxu0 0.0
    %1004 = vmatpush1.msra.mxu0 0.0
    %1005 = vmatprep.subr.mxu0 0.0
    %1006 = vmatpush1.msra.mxu0 0.0
    %1007 = vmatprep.subr.mxu0 0.0
    %1008 = vmatpush1.msra.mxu0 0.0
    %1009 = vmatprep.subr.mxu0 0.0
    %1010 = vmatpush1.msra.mxu0 0.0
    %1011 = vmatprep.subr.mxu0 0.0
    %1012 = vmatpush1.msra.mxu0 0.0
    %1013 = vmatprep.subr.mxu0 0.0
    %1014 = vmatpush1.msra.mxu0 0.0
    %1015 = vmatprep.subr.mxu0 0.0
    %1016 = vmatpush1.msra.mxu0 0.0
    %1017 = vmatprep.subr.mxu0 0.0
    %1018 = vmatpush1.msra.mxu0 0.0
    %1019 = vmatprep.subr.mxu0 0.0
    %1020 = vmatpush1.msra.mxu0 0.0
    %1021 = vmatprep.subr.mxu0 0.0
    %1022 = vmatpush1.msra.mxu0 0.0
    %1023 = vmatprep.subr.mxu0 0.0
    %1024 = vmatpush1.msra.mxu0 0.0
    %1025 = vmatprep.subr.mxu0 0.0
    %1026 = vmatpush1.msra.mxu0 0.0
    %1027 = vmatprep.subr.mxu0 0.0
    %1028 = vmatpush1.msra.mxu0 0.0
    %1029 = vmatprep.subr.mxu0 0.0
    %1030 = vmatpush1.msra.mxu0 0.0
    %1031 = vmatprep.subr.mxu0 0.0
    %1032 = vmatpush1.msra.mxu0 0.0
    %1033 = vmatprep.subr.mxu0 0.0
    %1034 = vmatpush1.msra.mxu0 0.0
    %1035 = vmatprep.subr.mxu0 0.0
    %1036 = vmatpush1.msra.mxu0 0.0
    %1037 = vmatprep.subr.mxu0 0.0
    %1038 = vmatpush1.msra.mxu0 0.0
    %1039 = vmatprep.subr.mxu0 0.0
    %1040 = vmatpush1.msra.mxu0 0.0
    %1041 = vmatprep.subr.mxu0 0.0
    %1042 = vmatpush1.msra.mxu0 0.0
    %1043 = vmatprep.subr.mxu0 0.0
    %1044 = vmatpush1.msra.mxu0 0.0
    %1045 = vmatprep.subr.mxu0 0.0
    %1046 = vmatpush1.msra.mxu0 0.0
    %1047 = vmatprep.subr.mxu0 0.0
    %1048 = vmatpush1.msra.mxu0 0.0
    %1049 = vmatprep.subr.mxu0 0.0
    %1050 = vmatpush1.msra.mxu0 0.0
    %1051 = vmatprep.subr.mxu0 0.0
    %1052 = vmatpush1.msra.mxu0 0.0
    %1053 = vmatprep.mubr.f32.mxu0 0.0
    %1054 = vmatmul.mubr.f32.gmra.mrb[0].mxu0 %v987
    %v1055 = vpop.f32.mrb[0].mxu0
    %v1056 = vadd.f32 0.0, %v1055
    %v1057 = vpop.f32.mrb[0].mxu0
    %1058 = vdwg.mxu0
    %v1059 = vadd.f32 %v386, %v1056
    %v1060 = vxor.u32 %v1059, 2147483648
    %v1061 = vmul.f32 %v1060, 1.442695
    %v1062 = vpow.pop %v1061
    %v1063 = vadd.f32 %v1062, 1.0
    %v1064 = vrcp.pop %v1063
    %v1065 = vmul.f32 1.0, %v1064
    %v1066 = vtanh.pop %v1059
    %v1067 = vmul.f32 %v1065, %v977
    %1069 = vrot.lane.b32.xlu0 %v1066, 96
    %v1070 = vpop.permute.xlu0 %1069
    %v1072 = vmul.f32 %v1065, %v1070
    %1074 = vrot.lane.b32.xlu0 %v1072, 16
    %v1075 = vpop.permute.xlu0 %1074
    %v1077 = vadd.f32 %v1067, %v1075
    %v1078 = vtanh.pop %v1077
    %1080 = vrot.lane.b32.xlu0 %v1078, 32
    %v1081 = vpop.permute.xlu0 %1080
    %v1083 = vmul.f32 %v1065, %v1081
    %1085 = vrot.lane.b32.xlu0 %v1083, 80
    %v1086 = vpop.permute.xlu0 %1085
    %v1087 = vsel %vm685, %v1086, 0
    %1089 = vmatprep.subr.mxu0 0.0
    %1090 = vmatpush1.msra.mxu0 %v72
    %1091 = vmatprep.subr.mxu0 0.0
    %1092 = vmatpush1.msra.mxu0 %v73
    %1093 = vmatprep.subr.mxu0 0.0
    %1094 = vmatpush1.msra.mxu0 0.0
    %1095 = vmatprep.subr.mxu0 0.0
    %1096 = vmatpush1.msra.mxu0 0.0
    %1097 = vmatprep.subr.mxu0 0.0
    %1098 = vmatpush1.msra.mxu0 0.0
    %1099 = vmatprep.subr.mxu0 0.0
    %1100 = vmatpush1.msra.mxu0 0.0
    %1101 = vmatprep.subr.mxu0 0.0
    %1102 = vmatpush1.msra.mxu0 0.0
    %1103 = vmatprep.subr.mxu0 0.0
    %1104 = vmatpush1.msra.mxu0 0.0
    %1105 = vmatprep.subr.mxu0 0.0
    %1106 = vmatpush1.msra.mxu0 0.0
    %1107 = vmatprep.subr.mxu0 0.0
    %1108 = vmatpush1.msra.mxu0 0.0
    %1109 = vmatprep.subr.mxu0 0.0
    %1110 = vmatpush1.msra.mxu0 0.0
    %1111 = vmatprep.subr.mxu0 0.0
    %1112 = vmatpush1.msra.mxu0 0.0
    %1113 = vmatprep.subr.mxu0 0.0
    %1114 = vmatpush1.msra.mxu0 0.0
    %1115 = vmatprep.subr.mxu0 0.0
    %1116 = vmatpush1.msra.mxu0 0.0
    %1117 = vmatprep.subr.mxu0 0.0
    %1118 = vmatpush1.msra.mxu0 0.0
    %1119 = vmatprep.subr.mxu0 0.0
    %1120 = vmatpush1.msra.mxu0 0.0
    %1121 = vmatprep.subr.mxu0 0.0
    %1122 = vmatpush1.msra.mxu0 0.0
    %1123 = vmatprep.subr.mxu0 0.0
    %1124 = vmatpush1.msra.mxu0 0.0
    %1125 = vmatprep.subr.mxu0 0.0
    %1126 = vmatpush1.msra.mxu0 0.0
    %1127 = vmatprep.subr.mxu0 0.0
    %1128 = vmatpush1.msra.mxu0 0.0
    %1129 = vmatprep.subr.mxu0 0.0
    %1130 = vmatpush1.msra.mxu0 0.0
    %1131 = vmatprep.subr.mxu0 0.0
    %1132 = vmatpush1.msra.mxu0 0.0
    %1133 = vmatprep.subr.mxu0 0.0
    %1134 = vmatpush1.msra.mxu0 0.0
    %1135 = vmatprep.subr.mxu0 0.0
    %1136 = vmatpush1.msra.mxu0 0.0
    %1137 = vmatprep.subr.mxu0 0.0
    %1138 = vmatpush1.msra.mxu0 0.0
    %1139 = vmatprep.subr.mxu0 0.0
    %1140 = vmatpush1.msra.mxu0 0.0
    %1141 = vmatprep.subr.mxu0 0.0
    %1142 = vmatpush1.msra.mxu0 0.0
    %1143 = vmatprep.subr.mxu0 0.0
    %1144 = vmatpush1.msra.mxu0 0.0
    %1145 = vmatprep.subr.mxu0 0.0
    %1146 = vmatpush1.msra.mxu0 0.0
    %1147 = vmatprep.subr.mxu0 0.0
    %1148 = vmatpush1.msra.mxu0 0.0
    %1149 = vmatprep.subr.mxu0 0.0
    %1150 = vmatpush1.msra.mxu0 0.0
    %1151 = vmatprep.subr.mxu0 0.0
    %1152 = vmatpush1.msra.mxu0 0.0
    %1153 = vmatprep.mubr.f32.mxu0 0.0
    %1154 = vmatmul.mubr.f32.gmra.mrb[0].mxu0 %v1087
    %v1155 = vpop.f32.mrb[0].mxu0
    %v1156 = vadd.f32 0.0, %v1155
    %v1157 = vpop.f32.mrb[0].mxu0
    %1158 = vdwg.mxu0
    %v1159 = vadd.f32 %v460, %v1156
    %v1160 = vxor.u32 %v1159, 2147483648
    %v1161 = vmul.f32 %v1160, 1.442695
    %v1162 = vpow.pop %v1161
    %v1163 = vadd.f32 %v1162, 1.0
    %v1164 = vrcp.pop %v1163
    %v1165 = vmul.f32 1.0, %v1164
    %v1166 = vtanh.pop %v1159
    %v1167 = vmul.f32 %v1165, %v1077
    %1169 = vrot.lane.b32.xlu0 %v1166, 96
    %v1170 = vpop.permute.xlu0 %1169
    %v1172 = vmul.f32 %v1165, %v1170
    %1174 = vrot.lane.b32.xlu0 %v1172, 16
    %v1175 = vpop.permute.xlu0 %1174
    %v1177 = vadd.f32 %v1167, %v1175
    %v1178 = vtanh.pop %v1177
    %1180 = vrot.lane.b32.xlu0 %v1178, 32
    %v1181 = vpop.permute.xlu0 %1180
    %v1183 = vmul.f32 %v1165, %v1181
    %1185 = vrot.lane.b32.xlu0 %v1183, 80
    %v1186 = vpop.permute.xlu0 %1185
    %v1187 = vsel %vm685, %v1186, 0
    %1189 = vmatprep.subr.mxu0 0.0
    %1190 = vmatpush1.msra.mxu0 %v72
    %1191 = vmatprep.subr.mxu0 0.0
    %1192 = vmatpush1.msra.mxu0 %v73
    %1193 = vmatprep.subr.mxu0 0.0
    %1194 = vmatpush1.msra.mxu0 0.0
    %1195 = vmatprep.subr.mxu0 0.0
    %1196 = vmatpush1.msra.mxu0 0.0
    %1197 = vmatprep.subr.mxu0 0.0
    %1198 = vmatpush1.msra.mxu0 0.0
    %1199 = vmatprep.subr.mxu0 0.0
    %1200 = vmatpush1.msra.mxu0 0.0
    %1201 = vmatprep.subr.mxu0 0.0
    %1202 = vmatpush1.msra.mxu0 0.0
    %1203 = vmatprep.subr.mxu0 0.0
    %1204 = vmatpush1.msra.mxu0 0.0
    %1205 = vmatprep.subr.mxu0 0.0
    %1206 = vmatpush1.msra.mxu0 0.0
    %1207 = vmatprep.subr.mxu0 0.0
    %1208 = vmatpush1.msra.mxu0 0.0
    %1209 = vmatprep.subr.mxu0 0.0
    %1210 = vmatpush1.msra.mxu0 0.0
    %1211 = vmatprep.subr.mxu0 0.0
    %1212 = vmatpush1.msra.mxu0 0.0
    %1213 = vmatprep.subr.mxu0 0.0
    %1214 = vmatpush1.msra.mxu0 0.0
    %1215 = vmatprep.subr.mxu0 0.0
    %1216 = vmatpush1.msra.mxu0 0.0
    %1217 = vmatprep.subr.mxu0 0.0
    %1218 = vmatpush1.msra.mxu0 0.0
    %1219 = vmatprep.subr.mxu0 0.0
    %1220 = vmatpush1.msra.mxu0 0.0
    %1221 = vmatprep.subr.mxu0 0.0
    %1222 = vmatpush1.msra.mxu0 0.0
    %1223 = vmatprep.subr.mxu0 0.0
    %1224 = vmatpush1.msra.mxu0 0.0
    %1225 = vmatprep.subr.mxu0 0.0
    %1226 = vmatpush1.msra.mxu0 0.0
    %1227 = vmatprep.subr.mxu0 0.0
    %1228 = vmatpush1.msra.mxu0 0.0
    %1229 = vmatprep.subr.mxu0 0.0
    %1230 = vmatpush1.msra.mxu0 0.0
    %1231 = vmatprep.subr.mxu0 0.0
    %1232 = vmatpush1.msra.mxu0 0.0
    %1233 = vmatprep.subr.mxu0 0.0
    %1234 = vmatpush1.msra.mxu0 0.0
    %1235 = vmatprep.subr.mxu0 0.0
    %1236 = vmatpush1.msra.mxu0 0.0
    %1237 = vmatprep.subr.mxu0 0.0
    %1238 = vmatpush1.msra.mxu0 0.0
    %1239 = vmatprep.subr.mxu0 0.0
    %1240 = vmatpush1.msra.mxu0 0.0
    %1241 = vmatprep.subr.mxu0 0.0
    %1242 = vmatpush1.msra.mxu0 0.0
    %1243 = vmatprep.subr.mxu0 0.0
    %1244 = vmatpush1.msra.mxu0 0.0
    %1245 = vmatprep.subr.mxu0 0.0
    %1246 = vmatpush1.msra.mxu0 0.0
    %1247 = vmatprep.subr.mxu0 0.0
    %1248 = vmatpush1.msra.mxu0 0.0
    %1249 = vmatprep.subr.mxu0 0.0
    %1250 = vmatpush1.msra.mxu0 0.0
    %1251 = vmatprep.subr.mxu0 0.0
    %1252 = vmatpush1.msra.mxu0 0.0
    %1253 = vmatprep.mubr.f32.mxu0 0.0
    %1254 = vmatmul.mubr.f32.gmra.mrb[0].mxu0 %v1187
    %v1255 = vpop.f32.mrb[0].mxu0
    %v1256 = vadd.f32 0.0, %v1255
    %v1257 = vpop.f32.mrb[0].mxu0
    %1258 = vdwg.mxu0
    %v1259 = vadd.f32 %v534, %v1256
    %v1260 = vxor.u32 %v1259, 2147483648
    %v1261 = vmul.f32 %v1260, 1.442695
    %v1262 = vpow.pop %v1261
    %v1263 = vadd.f32 %v1262, 1.0
    %v1264 = vrcp.pop %v1263
    %v1265 = vmul.f32 1.0, %v1264
    %v1266 = vtanh.pop %v1259
    %v1267 = vmul.f32 %v1265, %v1177
    %1269 = vrot.lane.b32.xlu0 %v1266, 96
    %v1270 = vpop.permute.xlu0 %1269
    %v1272 = vmul.f32 %v1265, %v1270
    %1274 = vrot.lane.b32.xlu0 %v1272, 16
    %v1275 = vpop.permute.xlu0 %1274
    %v1277 = vadd.f32 %v1267, %v1275
    %v1278 = vtanh.pop %v1277
    %1280 = vrot.lane.b32.xlu0 %v1278, 32
    %v1281 = vpop.permute.xlu0 %1280
    %v1283 = vmul.f32 %v1265, %v1281
    %1285 = vrot.lane.b32.xlu0 %v1283, 80
    %v1286 = vpop.permute.xlu0 %1285
    %v1287 = vsel %vm685, %v1286, 0
    %1289 = vmatprep.subr.mxu0 0.0
    %1290 = vmatpush1.msra.mxu0 %v72
    %1291 = vmatprep.subr.mxu0 0.0
    %1292 = vmatpush1.msra.mxu0 %v73
    %1293 = vmatprep.subr.mxu0 0.0
    %1294 = vmatpush1.msra.mxu0 0.0
    %1295 = vmatprep.subr.mxu0 0.0
    %1296 = vmatpush1.msra.mxu0 0.0
    %1297 = vmatprep.subr.mxu0 0.0
    %1298 = vmatpush1.msra.mxu0 0.0
    %1299 = vmatprep.subr.mxu0 0.0
    %1300 = vmatpush1.msra.mxu0 0.0
    %1301 = vmatprep.subr.mxu0 0.0
    %1302 = vmatpush1.msra.mxu0 0.0
    %1303 = vmatprep.subr.mxu0 0.0
    %1304 = vmatpush1.msra.mxu0 0.0
    %1305 = vmatprep.subr.mxu0 0.0
    %1306 = vmatpush1.msra.mxu0 0.0
    %1307 = vmatprep.subr.mxu0 0.0
    %1308 = vmatpush1.msra.mxu0 0.0
    %1309 = vmatprep.subr.mxu0 0.0
    %1310 = vmatpush1.msra.mxu0 0.0
    %1311 = vmatprep.subr.mxu0 0.0
    %1312 = vmatpush1.msra.mxu0 0.0
    %1313 = vmatprep.subr.mxu0 0.0
    %1314 = vmatpush1.msra.mxu0 0.0
    %1315 = vmatprep.subr.mxu0 0.0
    %1316 = vmatpush1.msra.mxu0 0.0
    %1317 = vmatprep.subr.mxu0 0.0
    %1318 = vmatpush1.msra.mxu0 0.0
    %1319 = vmatprep.subr.mxu0 0.0
    %1320 = vmatpush1.msra.mxu0 0.0
    %1321 = vmatprep.subr.mxu0 0.0
    %1322 = vmatpush1.msra.mxu0 0.0
    %1323 = vmatprep.subr.mxu0 0.0
    %1324 = vmatpush1.msra.mxu0 0.0
    %1325 = vmatprep.subr.mxu0 0.0
    %1326 = vmatpush1.msra.mxu0 0.0
    %1327 = vmatprep.subr.mxu0 0.0
    %1328 = vmatpush1.msra.mxu0 0.0
    %1329 = vmatprep.subr.mxu0 0.0
    %1330 = vmatpush1.msra.mxu0 0.0
    %1331 = vmatprep.subr.mxu0 0.0
    %1332 = vmatpush1.msra.mxu0 0.0
    %1333 = vmatprep.subr.mxu0 0.0
    %1334 = vmatpush1.msra.mxu0 0.0
    %1335 = vmatprep.subr.mxu0 0.0
    %1336 = vmatpush1.msra.mxu0 0.0
    %1337 = vmatprep.subr.mxu0 0.0
    %1338 = vmatpush1.msra.mxu0 0.0
    %1339 = vmatprep.subr.mxu0 0.0
    %1340 = vmatpush1.msra.mxu0 0.0
    %1341 = vmatprep.subr.mxu0 0.0
    %1342 = vmatpush1.msra.mxu0 0.0
    %1343 = vmatprep.subr.mxu0 0.0
    %1344 = vmatpush1.msra.mxu0 0.0
    %1345 = vmatprep.subr.mxu0 0.0
    %1346 = vmatpush1.msra.mxu0 0.0
    %1347 = vmatprep.subr.mxu0 0.0
    %1348 = vmatpush1.msra.mxu0 0.0
    %1349 = vmatprep.subr.mxu0 0.0
    %1350 = vmatpush1.msra.mxu0 0.0
    %1351 = vmatprep.subr.mxu0 0.0
    %1352 = vmatpush1.msra.mxu0 0.0
    %1353 = vmatprep.mubr.f32.mxu0 0.0
    %1354 = vmatmul.mubr.f32.gmra.mrb[0].mxu0 %v1287
    %v1355 = vpop.f32.mrb[0].mxu0
    %v1356 = vadd.f32 0.0, %v1355
    %v1357 = vpop.f32.mrb[0].mxu0
    %1358 = vdwg.mxu0
    %v1359 = vadd.f32 %v608, %v1356
    %v1360 = vxor.u32 %v1359, 2147483648
    %v1361 = vmul.f32 %v1360, 1.442695
    %v1362 = vpow.pop %v1361
    %v1363 = vadd.f32 %v1362, 1.0
    %v1364 = vrcp.pop %v1363
    %v1365 = vmul.f32 1.0, %v1364
    %v1366 = vtanh.pop %v1359
    %v1367 = vmul.f32 %v1365, %v1277
    %1369 = vrot.lane.b32.xlu0 %v1366, 96
    %v1370 = vpop.permute.xlu0 %1369
    %v1372 = vmul.f32 %v1365, %v1370
    %1374 = vrot.lane.b32.xlu0 %v1372, 16
    %v1375 = vpop.permute.xlu0 %1374
    %v1377 = vadd.f32 %v1367, %v1375
    %v1378 = vtanh.pop %v1377
    %1380 = vrot.lane.b32.xlu0 %v1378, 32
    %v1381 = vpop.permute.xlu0 %1380
    %v1383 = vmul.f32 %v1365, %v1381
    %1385 = vrot.lane.b32.xlu0 %v1383, 80
    %v1386 = vpop.permute.xlu0 %1385
    %v1387 = vsel %vm685, %v1386, 0
    %1389 = vmatprep.subr.mxu0 0.0
    %1390 = vmatpush1.msra.mxu0 %v72
    %1391 = vmatprep.subr.mxu0 0.0
    %1392 = vmatpush1.msra.mxu0 %v73
    %1393 = vmatprep.subr.mxu0 0.0
    %1394 = vmatpush1.msra.mxu0 0.0
    %1395 = vmatprep.subr.mxu0 0.0
    %1396 = vmatpush1.msra.mxu0 0.0
    %1397 = vmatprep.subr.mxu0 0.0
    %1398 = vmatpush1.msra.mxu0 0.0
    %1399 = vmatprep.subr.mxu0 0.0
    %1400 = vmatpush1.msra.mxu0 0.0
    %1401 = vmatprep.subr.mxu0 0.0
    %1402 = vmatpush1.msra.mxu0 0.0
    %1403 = vmatprep.subr.mxu0 0.0
    %1404 = vmatpush1.msra.mxu0 0.0
    %1405 = vmatprep.subr.mxu0 0.0
    %1406 = vmatpush1.msra.mxu0 0.0
    %1407 = vmatprep.subr.mxu0 0.0
    %1408 = vmatpush1.msra.mxu0 0.0
    %1409 = vmatprep.subr.mxu0 0.0
    %1410 = vmatpush1.msra.mxu0 0.0
    %1411 = vmatprep.subr.mxu0 0.0
    %1412 = vmatpush1.msra.mxu0 0.0
    %1413 = vmatprep.subr.mxu0 0.0
    %1414 = vmatpush1.msra.mxu0 0.0
    %1415 = vmatprep.subr.mxu0 0.0
    %1416 = vmatpush1.msra.mxu0 0.0
    %1417 = vmatprep.subr.mxu0 0.0
    %1418 = vmatpush1.msra.mxu0 0.0
    %1419 = vmatprep.subr.mxu0 0.0
    %1420 = vmatpush1.msra.mxu0 0.0
    %1421 = vmatprep.subr.mxu0 0.0
    %1422 = vmatpush1.msra.mxu0 0.0
    %1423 = vmatprep.subr.mxu0 0.0
    %1424 = vmatpush1.msra.mxu0 0.0
    %1425 = vmatprep.subr.mxu0 0.0
    %1426 = vmatpush1.msra.mxu0 0.0
    %1427 = vmatprep.subr.mxu0 0.0
    %1428 = vmatpush1.msra.mxu0 0.0
    %1429 = vmatprep.subr.mxu0 0.0
    %1430 = vmatpush1.msra.mxu0 0.0
    %1431 = vmatprep.subr.mxu0 0.0
    %1432 = vmatpush1.msra.mxu0 0.0
    %1433 = vmatprep.subr.mxu0 0.0
    %1434 = vmatpush1.msra.mxu0 0.0
    %1435 = vmatprep.subr.mxu0 0.0
    %1436 = vmatpush1.msra.mxu0 0.0
    %1437 = vmatprep.subr.mxu0 0.0
    %1438 = vmatpush1.msra.mxu0 0.0
    %1439 = vmatprep.subr.mxu0 0.0
    %1440 = vmatpush1.msra.mxu0 0.0
    %1441 = vmatprep.subr.mxu0 0.0
    %1442 = vmatpush1.msra.mxu0 0.0
    %1443 = vmatprep.subr.mxu0 0.0
    %1444 = vmatpush1.msra.mxu0 0.0
    %1445 = vmatprep.subr.mxu0 0.0
    %1446 = vmatpush1.msra.mxu0 0.0
    %1447 = vmatprep.subr.mxu0 0.0
    %1448 = vmatpush1.msra.mxu0 0.0
    %1449 = vmatprep.subr.mxu0 0.0
    %1450 = vmatpush1.msra.mxu0 0.0
    %1451 = vmatprep.subr.mxu0 0.0
    %1452 = vmatpush1.msra.mxu0 0.0
    %1453 = vmatprep.mubr.f32.mxu0 0.0
    %1454 = vmatmul.mubr.f32.gmra.mrb[0].mxu0 %v1387
    %v1455 = vpop.f32.mrb[0].mxu0
    %v1456 = vadd.f32 0.0, %v1455
    %v1457 = vpop.f32.mrb[0].mxu0
    %1458 = vdwg.mxu0
    %v1459 = vadd.f32 %v682, %v1456
    %v1460 = vxor.u32 %v1459, 2147483648
    %v1461 = vmul.f32 %v1460, 1.442695
    %v1462 = vpow.pop %v1461
    %v1463 = vadd.f32 %v1462, 1.0
    %v1464 = vrcp.pop %v1463
    %v1465 = vmul.f32 1.0, %v1464
    %v1466 = vtanh.pop %v1459
    %v1467 = vmul.f32 %v1465, %v1377
    %1469 = vrot.lane.b32.xlu0 %v1466, 96
    %v1470 = vpop.permute.xlu0 %1469
    %v1472 = vmul.f32 %v1465, %v1470
    %1474 = vrot.lane.b32.xlu0 %v1472, 16
    %v1475 = vpop.permute.xlu0 %1474
    %v1477 = vadd.f32 %v1467, %v1475
    %v1478 = vtanh.pop %v1477
    %1480 = vrot.lane.b32.xlu0 %v1478, 32
    %v1481 = vpop.permute.xlu0 %1480
    %v1483 = vmul.f32 %v1465, %v1481
    %v1485 = vlaneseq
    %v1486 = vshrl.u32 %v1485, 7
    %v1487 = vsub.s32 0, %v1486
    %v1488 = vrot.slane %v79, %v1487
    %1491 = vrot.lane.b32.xlu0 %v1483, 80
    %v1492 = vpop.permute.xlu0 %1491
    %v1493 = vsel %vm685, %v1492, 0
    %1495 = vmatprep.subr.mxu0 0.0
    %1496 = vmatpush1.msra.mxu0 %v75
    %1497 = vmatprep.subr.mxu0 0.0
    %1498 = vmatpush1.msra.mxu0 %v76
    %1499 = vmatprep.subr.mxu0 0.0
    %1500 = vmatpush1.msra.mxu0 0.0
    %1501 = vmatprep.subr.mxu0 0.0
    %1502 = vmatpush1.msra.mxu0 0.0
    %1503 = vmatprep.subr.mxu0 0.0
    %1504 = vmatpush1.msra.mxu0 0.0
    %1505 = vmatprep.subr.mxu0 0.0
    %1506 = vmatpush1.msra.mxu0 0.0
    %1507 = vmatprep.subr.mxu0 0.0
    %1508 = vmatpush1.msra.mxu0 0.0
    %1509 = vmatprep.subr.mxu0 0.0
    %1510 = vmatpush1.msra.mxu0 0.0
    %1511 = vmatprep.subr.mxu0 0.0
    %1512 = vmatpush1.msra.mxu0 0.0
    %1513 = vmatprep.subr.mxu0 0.0
    %1514 = vmatpush1.msra.mxu0 0.0
    %1515 = vmatprep.subr.mxu0 0.0
    %1516 = vmatpush1.msra.mxu0 0.0
    %1517 = vmatprep.subr.mxu0 0.0
    %1518 = vmatpush1.msra.mxu0 0.0
    %1519 = vmatprep.subr.mxu0 0.0
    %1520 = vmatpush1.msra.mxu0 0.0
    %1521 = vmatprep.subr.mxu0 0.0
    %1522 = vmatpush1.msra.mxu0 0.0
    %1523 = vmatprep.subr.mxu0 0.0
    %1524 = vmatpush1.msra.mxu0 0.0
    %1525 = vmatprep.subr.mxu0 0.0
    %1526 = vmatpush1.msra.mxu0 0.0
    %1527 = vmatprep.subr.mxu0 0.0
    %1528 = vmatpush1.msra.mxu0 0.0
    %1529 = vmatprep.subr.mxu0 0.0
    %1530 = vmatpush1.msra.mxu0 0.0
    %1531 = vmatprep.subr.mxu0 0.0
    %1532 = vmatpush1.msra.mxu0 0.0
    %1533 = vmatprep.subr.mxu0 0.0
    %1534 = vmatpush1.msra.mxu0 0.0
    %1535 = vmatprep.subr.mxu0 0.0
    %1536 = vmatpush1.msra.mxu0 0.0
    %1537 = vmatprep.subr.mxu0 0.0
    %1538 = vmatpush1.msra.mxu0 0.0
    %1539 = vmatprep.subr.mxu0 0.0
    %1540 = vmatpush1.msra.mxu0 0.0
    %1541 = vmatprep.subr.mxu0 0.0
    %1542 = vmatpush1.msra.mxu0 0.0
    %1543 = vmatprep.subr.mxu0 0.0
    %1544 = vmatpush1.msra.mxu0 0.0
    %1545 = vmatprep.subr.mxu0 0.0
    %1546 = vmatpush1.msra.mxu0 0.0
    %1547 = vmatprep.subr.mxu0 0.0
    %1548 = vmatpush1.msra.mxu0 0.0
    %1549 = vmatprep.subr.mxu0 0.0
    %1550 = vmatpush1.msra.mxu0 0.0
    %1551 = vmatprep.subr.mxu0 0.0
    %1552 = vmatpush1.msra.mxu0 0.0
    %1553 = vmatprep.subr.mxu0 0.0
    %1554 = vmatpush1.msra.mxu0 0.0
    %1555 = vmatprep.subr.mxu0 0.0
    %1556 = vmatpush1.msra.mxu0 0.0
    %1557 = vmatprep.subr.mxu0 0.0
    %1558 = vmatpush1.msra.mxu0 0.0
    %1559 = vmatprep.mubr.f32.mxu0 0.0
    %1560 = vmatmul.mubr.f32.gmra.mrb[0].mxu0 %v1493
    %v1561 = vpop.f32.mrb[0].mxu0
    %v1562 = vadd.f32 %v1488, %v1561
    %v1563 = vpop.f32.mrb[0].mxu0
    %1564 = vdwg.mxu0
    %1565 = vmatprep.subr.mxu0 0.0
    %1566 = vmatpush1.msra.mxu0 %v77
    %1567 = vmatprep.subr.mxu0 0.0
    %1568 = vmatpush1.msra.mxu0 %v78
    %1569 = vmatprep.subr.mxu0 0.0
    %1570 = vmatpush1.msra.mxu0 0.0
    %1571 = vmatprep.subr.mxu0 0.0
    %1572 = vmatpush1.msra.mxu0 0.0
    %1573 = vmatprep.subr.mxu0 0.0
    %1574 = vmatpush1.msra.mxu0 0.0
    %1575 = vmatprep.subr.mxu0 0.0
    %1576 = vmatpush1.msra.mxu0 0.0
    %1577 = vmatprep.subr.mxu0 0.0
    %1578 = vmatpush1.msra.mxu0 0.0
    %1579 = vmatprep.subr.mxu0 0.0
    %1580 = vmatpush1.msra.mxu0 0.0
    %1581 = vmatprep.subr.mxu0 0.0
    %1582 = vmatpush1.msra.mxu0 0.0
    %1583 = vmatprep.subr.mxu0 0.0
    %1584 = vmatpush1.msra.mxu0 0.0
    %1585 = vmatprep.subr.mxu0 0.0
    %1586 = vmatpush1.msra.mxu0 0.0
    %1587 = vmatprep.subr.mxu0 0.0
    %1588 = vmatpush1.msra.mxu0 0.0
    %1589 = vmatprep.subr.mxu0 0.0
    %1590 = vmatpush1.msra.mxu0 0.0
    %1591 = vmatprep.subr.mxu0 0.0
    %1592 = vmatpush1.msra.mxu0 0.0
    %1593 = vmatprep.subr.mxu0 0.0
    %1594 = vmatpush1.msra.mxu0 0.0
    %1595 = vmatprep.subr.mxu0 0.0
    %1596 = vmatpush1.msra.mxu0 0.0
    %1597 = vmatprep.subr.mxu0 0.0
    %1598 = vmatpush1.msra.mxu0 0.0
    %1599 = vmatprep.subr.mxu0 0.0
    %1600 = vmatpush1.msra.mxu0 0.0
    %1601 = vmatprep.subr.mxu0 0.0
    %1602 = vmatpush1.msra.mxu0 0.0
    %1603 = vmatprep.subr.mxu0 0.0
    %1604 = vmatpush1.msra.mxu0 0.0
    %1605 = vmatprep.subr.mxu0 0.0
    %1606 = vmatpush1.msra.mxu0 0.0
    %1607 = vmatprep.subr.mxu0 0.0
    %1608 = vmatpush1.msra.mxu0 0.0
    %1609 = vmatprep.subr.mxu0 0.0
    %1610 = vmatpush1.msra.mxu0 0.0
    %1611 = vmatprep.subr.mxu0 0.0
    %1612 = vmatpush1.msra.mxu0 0.0
    %1613 = vmatprep.subr.mxu0 0.0
    %1614 = vmatpush1.msra.mxu0 0.0
    %1615 = vmatprep.subr.mxu0 0.0
    %1616 = vmatpush1.msra.mxu0 0.0
    %1617 = vmatprep.subr.mxu0 0.0
    %1618 = vmatpush1.msra.mxu0 0.0
    %1619 = vmatprep.subr.mxu0 0.0
    %1620 = vmatpush1.msra.mxu0 0.0
    %1621 = vmatprep.subr.mxu0 0.0
    %1622 = vmatpush1.msra.mxu0 0.0
    %1623 = vmatprep.subr.mxu0 0.0
    %1624 = vmatpush1.msra.mxu0 0.0
    %1625 = vmatprep.subr.mxu0 0.0
    %1626 = vmatpush1.msra.mxu0 0.0
    %1627 = vmatprep.subr.mxu0 0.0
    %1628 = vmatpush1.msra.mxu0 0.0
    %1629 = vmatprep.mubr.f32.mxu0 0.0
    %1630 = vmatmul.mubr.f32.gmra.mrb[0].mxu0 %v1493
    %v1631 = vpop.f32.mrb[0].mxu0
    %v1632 = vadd.f32 0.0, %v1631
    %v1633 = vpop.f32.mrb[0].mxu0
    %1634 = vdwg.mxu0
    %v1635 = vadd.f32 %v1562, %v1632
    %v1636 = vxor.u32 %v1635, 2147483648
    %v1637 = vmul.f32 %v1636, 1.442695
    %v1638 = vpow.pop %v1637
    %v1639 = vadd.f32 %v1638, 1.0
    %v1640 = vrcp.pop %v1639
    %v1641 = vmul.f32 1.0, %v1640
    %v1642 = vtanh.pop %v1635
    %v1643 = vmul.f32 %v1641, %v1477
    %1645 = vrot.lane.b32.xlu0 %v1642, 96
    %v1646 = vpop.permute.xlu0 %1645
    %v1648 = vmul.f32 %v1641, %v1646
    %1650 = vrot.lane.b32.xlu0 %v1648, 16
    %v1651 = vpop.permute.xlu0 %1650
    %v1653 = vadd.f32 %v1643, %v1651
    %v1654 = vtanh.pop %v1653
    %1656 = vrot.lane.b32.xlu0 %v1654, 32
    %v1657 = vpop.permute.xlu0 %1656
    %v1659 = vmul.f32 %v1641, %v1657
    %1661 = vrot.lane.b32.xlu0 %v1659, 80
    %v1662 = vpop.permute.xlu0 %1661
    %v1663 = vsel %vm685, %v1662, 0
    %1665 = vmatprep.subr.mxu0 0.0
    %1666 = vmatpush1.msra.mxu0 %v77
    %1667 = vmatprep.subr.mxu0 0.0
    %1668 = vmatpush1.msra.mxu0 %v78
    %1669 = vmatprep.subr.mxu0 0.0
    %1670 = vmatpush1.msra.mxu0 0.0
    %1671 = vmatprep.subr.mxu0 0.0
    %1672 = vmatpush1.msra.mxu0 0.0
    %1673 = vmatprep.subr.mxu0 0.0
    %1674 = vmatpush1.msra.mxu0 0.0
    %1675 = vmatprep.subr.mxu0 0.0
    %1676 = vmatpush1.msra.mxu0 0.0
    %1677 = vmatprep.subr.mxu0 0.0
    %1678 = vmatpush1.msra.mxu0 0.0
    %1679 = vmatprep.subr.mxu0 0.0
    %1680 = vmatpush1.msra.mxu0 0.0
    %1681 = vmatprep.subr.mxu0 0.0
    %1682 = vmatpush1.msra.mxu0 0.0
    %1683 = vmatprep.subr.mxu0 0.0
    %1684 = vmatpush1.msra.mxu0 0.0
    %1685 = vmatprep.subr.mxu0 0.0
    %1686 = vmatpush1.msra.mxu0 0.0
    %1687 = vmatprep.subr.mxu0 0.0
    %1688 = vmatpush1.msra.mxu0 0.0
    %1689 = vmatprep.subr.mxu0 0.0
    %1690 = vmatpush1.msra.mxu0 0.0
    %1691 = vmatprep.subr.mxu0 0.0
    %1692 = vmatpush1.msra.mxu0 0.0
    %1693 = vmatprep.subr.mxu0 0.0
    %1694 = vmatpush1.msra.mxu0 0.0
    %1695 = vmatprep.subr.mxu0 0.0
    %1696 = vmatpush1.msra.mxu0 0.0
    %1697 = vmatprep.subr.mxu0 0.0
    %1698 = vmatpush1.msra.mxu0 0.0
    %1699 = vmatprep.subr.mxu0 0.0
    %1700 = vmatpush1.msra.mxu0 0.0
    %1701 = vmatprep.subr.mxu0 0.0
    %1702 = vmatpush1.msra.mxu0 0.0
    %1703 = vmatprep.subr.mxu0 0.0
    %1704 = vmatpush1.msra.mxu0 0.0
    %1705 = vmatprep.subr.mxu0 0.0
    %1706 = vmatpush1.msra.mxu0 0.0
    %1707 = vmatprep.subr.mxu0 0.0
    %1708 = vmatpush1.msra.mxu0 0.0
    %1709 = vmatprep.subr.mxu0 0.0
    %1710 = vmatpush1.msra.mxu0 0.0
    %1711 = vmatprep.subr.mxu0 0.0
    %1712 = vmatpush1.msra.mxu0 0.0
    %1713 = vmatprep.subr.mxu0 0.0
    %1714 = vmatpush1.msra.mxu0 0.0
    %1715 = vmatprep.subr.mxu0 0.0
    %1716 = vmatpush1.msra.mxu0 0.0
    %1717 = vmatprep.subr.mxu0 0.0
    %1718 = vmatpush1.msra.mxu0 0.0
    %1719 = vmatprep.subr.mxu0 0.0
    %1720 = vmatpush1.msra.mxu0 0.0
    %1721 = vmatprep.subr.mxu0 0.0
    %1722 = vmatpush1.msra.mxu0 0.0
    %1723 = vmatprep.subr.mxu0 0.0
    %1724 = vmatpush1.msra.mxu0 0.0
    %1725 = vmatprep.subr.mxu0 0.0
    %1726 = vmatpush1.msra.mxu0 0.0
    %1727 = vmatprep.subr.mxu0 0.0
    %1728 = vmatpush1.msra.mxu0 0.0
    %1729 = vmatprep.mubr.f32.mxu0 0.0
    %1730 = vmatmul.mubr.f32.gmra.mrb[0].mxu0 %v1663
    %v1731 = vpop.f32.mrb[0].mxu0
    %v1732 = vadd.f32 0.0, %v1731
    %v1733 = vpop.f32.mrb[0].mxu0
    %1734 = vdwg.mxu0
    %v1735 = vadd.f32 %v1562, %v1732
    %v1736 = vxor.u32 %v1735, 2147483648
    %v1737 = vmul.f32 %v1736, 1.442695
    %v1738 = vpow.pop %v1737
    %v1739 = vadd.f32 %v1738, 1.0
    %v1740 = vrcp.pop %v1739
    %v1741 = vmul.f32 1.0, %v1740
    %v1742 = vtanh.pop %v1735
    %v1743 = vmul.f32 %v1741, %v1653
    %1745 = vrot.lane.b32.xlu0 %v1742, 96
    %v1746 = vpop.permute.xlu0 %1745
    %v1748 = vmul.f32 %v1741, %v1746
    %1750 = vrot.lane.b32.xlu0 %v1748, 16
    %v1751 = vpop.permute.xlu0 %1750
    %v1753 = vadd.f32 %v1743, %v1751
    %v1754 = vtanh.pop %v1753
    %1756 = vrot.lane.b32.xlu0 %v1754, 32
    %v1757 = vpop.permute.xlu0 %1756
    %v1759 = vmul.f32 %v1741, %v1757
    %1761 = vrot.lane.b32.xlu0 %v1759, 80
    %v1762 = vpop.permute.xlu0 %1761
    %v1763 = vsel %vm685, %v1762, 0
    %1765 = vmatprep.subr.mxu0 0.0
    %1766 = vmatpush1.msra.mxu0 %v77
    %1767 = vmatprep.subr.mxu0 0.0
    %1768 = vmatpush1.msra.mxu0 %v78
    %1769 = vmatprep.subr.mxu0 0.0
    %1770 = vmatpush1.msra.mxu0 0.0
    %1771 = vmatprep.subr.mxu0 0.0
    %1772 = vmatpush1.msra.mxu0 0.0
    %1773 = vmatprep.subr.mxu0 0.0
    %1774 = vmatpush1.msra.mxu0 0.0
    %1775 = vmatprep.subr.mxu0 0.0
    %1776 = vmatpush1.msra.mxu0 0.0
    %1777 = vmatprep.subr.mxu0 0.0
    %1778 = vmatpush1.msra.mxu0 0.0
    %1779 = vmatprep.subr.mxu0 0.0
    %1780 = vmatpush1.msra.mxu0 0.0
    %1781 = vmatprep.subr.mxu0 0.0
    %1782 = vmatpush1.msra.mxu0 0.0
    %1783 = vmatprep.subr.mxu0 0.0
    %1784 = vmatpush1.msra.mxu0 0.0
    %1785 = vmatprep.subr.mxu0 0.0
    %1786 = vmatpush1.msra.mxu0 0.0
    %1787 = vmatprep.subr.mxu0 0.0
    %1788 = vmatpush1.msra.mxu0 0.0
    %1789 = vmatprep.subr.mxu0 0.0
    %1790 = vmatpush1.msra.mxu0 0.0
    %1791 = vmatprep.subr.mxu0 0.0
    %1792 = vmatpush1.msra.mxu0 0.0
    %1793 = vmatprep.subr.mxu0 0.0
    %1794 = vmatpush1.msra.mxu0 0.0
    %1795 = vmatprep.subr.mxu0 0.0
    %1796 = vmatpush1.msra.mxu0 0.0
    %1797 = vmatprep.subr.mxu0 0.0
    %1798 = vmatpush1.msra.mxu0 0.0
    %1799 = vmatprep.subr.mxu0 0.0
    %1800 = vmatpush1.msra.mxu0 0.0
    %1801 = vmatprep.subr.mxu0 0.0
    %1802 = vmatpush1.msra.mxu0 0.0
    %1803 = vmatprep.subr.mxu0 0.0
    %1804 = vmatpush1.msra.mxu0 0.0
    %1805 = vmatprep.subr.mxu0 0.0
    %1806 = vmatpush1.msra.mxu0 0.0
    %1807 = vmatprep.subr.mxu0 0.0
    %1808 = vmatpush1.msra.mxu0 0.0
    %1809 = vmatprep.subr.mxu0 0.0
    %1810 = vmatpush1.msra.mxu0 0.0
    %1811 = vmatprep.subr.mxu0 0.0
    %1812 = vmatpush1.msra.mxu0 0.0
    %1813 = vmatprep.subr.mxu0 0.0
    %1814 = vmatpush1.msra.mxu0 0.0
    %1815 = vmatprep.subr.mxu0 0.0
    %1816 = vmatpush1.msra.mxu0 0.0
    %1817 = vmatprep.subr.mxu0 0.0
    %1818 = vmatpush1.msra.mxu0 0.0
    %1819 = vmatprep.subr.mxu0 0.0
    %1820 = vmatpush1.msra.mxu0 0.0
    %1821 = vmatprep.subr.mxu0 0.0
    %1822 = vmatpush1.msra.mxu0 0.0
    %1823 = vmatprep.subr.mxu0 0.0
    %1824 = vmatpush1.msra.mxu0 0.0
    %1825 = vmatprep.subr.mxu0 0.0
    %1826 = vmatpush1.msra.mxu0 0.0
    %1827 = vmatprep.subr.mxu0 0.0
    %1828 = vmatpush1.msra.mxu0 0.0
    %1829 = vmatprep.mubr.f32.mxu0 0.0
    %1830 = vmatmul.mubr.f32.gmra.mrb[0].mxu0 %v1763
    %v1831 = vpop.f32.mrb[0].mxu0
    %v1832 = vadd.f32 0.0, %v1831
    %v1833 = vpop.f32.mrb[0].mxu0
    %1834 = vdwg.mxu0
    %v1835 = vadd.f32 %v1562, %v1832
    %v1836 = vxor.u32 %v1835, 2147483648
    %v1837 = vmul.f32 %v1836, 1.442695
    %v1838 = vpow.pop %v1837
    %v1839 = vadd.f32 %v1838, 1.0
    %v1840 = vrcp.pop %v1839
    %v1841 = vmul.f32 1.0, %v1840
    %v1842 = vtanh.pop %v1835
    %v1843 = vmul.f32 %v1841, %v1753
    %1845 = vrot.lane.b32.xlu0 %v1842, 96
    %v1846 = vpop.permute.xlu0 %1845
    %v1848 = vmul.f32 %v1841, %v1846
    %1850 = vrot.lane.b32.xlu0 %v1848, 16
    %v1851 = vpop.permute.xlu0 %1850
    %v1853 = vadd.f32 %v1843, %v1851
    %v1854 = vtanh.pop %v1853
    %1856 = vrot.lane.b32.xlu0 %v1854, 32
    %v1857 = vpop.permute.xlu0 %1856
    %v1859 = vmul.f32 %v1841, %v1857
    %1861 = vrot.lane.b32.xlu0 %v1859, 80
    %v1862 = vpop.permute.xlu0 %1861
    %v1863 = vsel %vm685, %v1862, 0
    %1865 = vmatprep.subr.mxu0 0.0
    %1866 = vmatpush1.msra.mxu0 %v77
    %1867 = vmatprep.subr.mxu0 0.0
    %1868 = vmatpush1.msra.mxu0 %v78
    %1869 = vmatprep.subr.mxu0 0.0
    %1870 = vmatpush1.msra.mxu0 0.0
    %1871 = vmatprep.subr.mxu0 0.0
    %1872 = vmatpush1.msra.mxu0 0.0
    %1873 = vmatprep.subr.mxu0 0.0
    %1874 = vmatpush1.msra.mxu0 0.0
    %1875 = vmatprep.subr.mxu0 0.0
    %1876 = vmatpush1.msra.mxu0 0.0
    %1877 = vmatprep.subr.mxu0 0.0
    %1878 = vmatpush1.msra.mxu0 0.0
    %1879 = vmatprep.subr.mxu0 0.0
    %1880 = vmatpush1.msra.mxu0 0.0
    %1881 = vmatprep.subr.mxu0 0.0
    %1882 = vmatpush1.msra.mxu0 0.0
    %1883 = vmatprep.subr.mxu0 0.0
    %1884 = vmatpush1.msra.mxu0 0.0
    %1885 = vmatprep.subr.mxu0 0.0
    %1886 = vmatpush1.msra.mxu0 0.0
    %1887 = vmatprep.subr.mxu0 0.0
    %1888 = vmatpush1.msra.mxu0 0.0
    %1889 = vmatprep.subr.mxu0 0.0
    %1890 = vmatpush1.msra.mxu0 0.0
    %1891 = vmatprep.subr.mxu0 0.0
    %1892 = vmatpush1.msra.mxu0 0.0
    %1893 = vmatprep.subr.mxu0 0.0
    %1894 = vmatpush1.msra.mxu0 0.0
    %1895 = vmatprep.subr.mxu0 0.0
    %1896 = vmatpush1.msra.mxu0 0.0
    %1897 = vmatprep.subr.mxu0 0.0
    %1898 = vmatpush1.msra.mxu0 0.0
    %1899 = vmatprep.subr.mxu0 0.0
    %1900 = vmatpush1.msra.mxu0 0.0
    %1901 = vmatprep.subr.mxu0 0.0
    %1902 = vmatpush1.msra.mxu0 0.0
    %1903 = vmatprep.subr.mxu0 0.0
    %1904 = vmatpush1.msra.mxu0 0.0
    %1905 = vmatprep.subr.mxu0 0.0
    %1906 = vmatpush1.msra.mxu0 0.0
    %1907 = vmatprep.subr.mxu0 0.0
    %1908 = vmatpush1.msra.mxu0 0.0
    %1909 = vmatprep.subr.mxu0 0.0
    %1910 = vmatpush1.msra.mxu0 0.0
    %1911 = vmatprep.subr.mxu0 0.0
    %1912 = vmatpush1.msra.mxu0 0.0
    %1913 = vmatprep.subr.mxu0 0.0
    %1914 = vmatpush1.msra.mxu0 0.0
    %1915 = vmatprep.subr.mxu0 0.0
    %1916 = vmatpush1.msra.mxu0 0.0
    %1917 = vmatprep.subr.mxu0 0.0
    %1918 = vmatpush1.msra.mxu0 0.0
    %1919 = vmatprep.subr.mxu0 0.0
    %1920 = vmatpush1.msra.mxu0 0.0
    %1921 = vmatprep.subr.mxu0 0.0
    %1922 = vmatpush1.msra.mxu0 0.0
    %1923 = vmatprep.subr.mxu0 0.0
    %1924 = vmatpush1.msra.mxu0 0.0
    %1925 = vmatprep.subr.mxu0 0.0
    %1926 = vmatpush1.msra.mxu0 0.0
    %1927 = vmatprep.subr.mxu0 0.0
    %1928 = vmatpush1.msra.mxu0 0.0
    %1929 = vmatprep.mubr.f32.mxu0 0.0
    %1930 = vmatmul.mubr.f32.gmra.mrb[0].mxu0 %v1863
    %v1931 = vpop.f32.mrb[0].mxu0
    %v1932 = vadd.f32 0.0, %v1931
    %v1933 = vpop.f32.mrb[0].mxu0
    %1934 = vdwg.mxu0
    %v1935 = vadd.f32 %v1562, %v1932
    %v1936 = vxor.u32 %v1935, 2147483648
    %v1937 = vmul.f32 %v1936, 1.442695
    %v1938 = vpow.pop %v1937
    %v1939 = vadd.f32 %v1938, 1.0
    %v1940 = vrcp.pop %v1939
    %v1941 = vmul.f32 1.0, %v1940
    %v1942 = vtanh.pop %v1935
    %v1943 = vmul.f32 %v1941, %v1853
    %1945 = vrot.lane.b32.xlu0 %v1942, 96
    %v1946 = vpop.permute.xlu0 %1945
    %v1948 = vmul.f32 %v1941, %v1946
    %1950 = vrot.lane.b32.xlu0 %v1948, 16
    %v1951 = vpop.permute.xlu0 %1950
    %v1953 = vadd.f32 %v1943, %v1951
    %v1954 = vtanh.pop %v1953
    %1956 = vrot.lane.b32.xlu0 %v1954, 32
    %v1957 = vpop.permute.xlu0 %1956
    %v1959 = vmul.f32 %v1941, %v1957
    %1961 = vrot.lane.b32.xlu0 %v1959, 80
    %v1962 = vpop.permute.xlu0 %1961
    %v1963 = vsel %vm685, %v1962, 0
    %1965 = vmatprep.subr.mxu0 0.0
    %1966 = vmatpush1.msra.mxu0 %v77
    %1967 = vmatprep.subr.mxu0 0.0
    %1968 = vmatpush1.msra.mxu0 %v78
    %1969 = vmatprep.subr.mxu0 0.0
    %1970 = vmatpush1.msra.mxu0 0.0
    %1971 = vmatprep.subr.mxu0 0.0
    %1972 = vmatpush1.msra.mxu0 0.0
    %1973 = vmatprep.subr.mxu0 0.0
    %1974 = vmatpush1.msra.mxu0 0.0
    %1975 = vmatprep.subr.mxu0 0.0
    %1976 = vmatpush1.msra.mxu0 0.0
    %1977 = vmatprep.subr.mxu0 0.0
    %1978 = vmatpush1.msra.mxu0 0.0
    %1979 = vmatprep.subr.mxu0 0.0
    %1980 = vmatpush1.msra.mxu0 0.0
    %1981 = vmatprep.subr.mxu0 0.0
    %1982 = vmatpush1.msra.mxu0 0.0
    %1983 = vmatprep.subr.mxu0 0.0
    %1984 = vmatpush1.msra.mxu0 0.0
    %1985 = vmatprep.subr.mxu0 0.0
    %1986 = vmatpush1.msra.mxu0 0.0
    %1987 = vmatprep.subr.mxu0 0.0
    %1988 = vmatpush1.msra.mxu0 0.0
    %1989 = vmatprep.subr.mxu0 0.0
    %1990 = vmatpush1.msra.mxu0 0.0
    %1991 = vmatprep.subr.mxu0 0.0
    %1992 = vmatpush1.msra.mxu0 0.0
    %1993 = vmatprep.subr.mxu0 0.0
    %1994 = vmatpush1.msra.mxu0 0.0
    %1995 = vmatprep.subr.mxu0 0.0
    %1996 = vmatpush1.msra.mxu0 0.0
    %1997 = vmatprep.subr.mxu0 0.0
    %1998 = vmatpush1.msra.mxu0 0.0
    %1999 = vmatprep.subr.mxu0 0.0
    %2000 = vmatpush1.msra.mxu0 0.0
    %2001 = vmatprep.subr.mxu0 0.0
    %2002 = vmatpush1.msra.mxu0 0.0
    %2003 = vmatprep.subr.mxu0 0.0
    %2004 = vmatpush1.msra.mxu0 0.0
    %2005 = vmatprep.subr.mxu0 0.0
    %2006 = vmatpush1.msra.mxu0 0.0
    %2007 = vmatprep.subr.mxu0 0.0
    %2008 = vmatpush1.msra.mxu0 0.0
    %2009 = vmatprep.subr.mxu0 0.0
    %2010 = vmatpush1.msra.mxu0 0.0
    %2011 = vmatprep.subr.mxu0 0.0
    %2012 = vmatpush1.msra.mxu0 0.0
    %2013 = vmatprep.subr.mxu0 0.0
    %2014 = vmatpush1.msra.mxu0 0.0
    %2015 = vmatprep.subr.mxu0 0.0
    %2016 = vmatpush1.msra.mxu0 0.0
    %2017 = vmatprep.subr.mxu0 0.0
    %2018 = vmatpush1.msra.mxu0 0.0
    %2019 = vmatprep.subr.mxu0 0.0
    %2020 = vmatpush1.msra.mxu0 0.0
    %2021 = vmatprep.subr.mxu0 0.0
    %2022 = vmatpush1.msra.mxu0 0.0
    %2023 = vmatprep.subr.mxu0 0.0
    %2024 = vmatpush1.msra.mxu0 0.0
    %2025 = vmatprep.subr.mxu0 0.0
    %2026 = vmatpush1.msra.mxu0 0.0
    %2027 = vmatprep.subr.mxu0 0.0
    %2028 = vmatpush1.msra.mxu0 0.0
    %2029 = vmatprep.mubr.f32.mxu0 0.0
    %2030 = vmatmul.mubr.f32.gmra.mrb[0].mxu0 %v1963
    %v2031 = vpop.f32.mrb[0].mxu0
    %v2032 = vadd.f32 0.0, %v2031
    %v2033 = vpop.f32.mrb[0].mxu0
    %2034 = vdwg.mxu0
    %v2035 = vadd.f32 %v1562, %v2032
    %v2036 = vxor.u32 %v2035, 2147483648
    %v2037 = vmul.f32 %v2036, 1.442695
    %v2038 = vpow.pop %v2037
    %v2039 = vadd.f32 %v2038, 1.0
    %v2040 = vrcp.pop %v2039
    %v2041 = vmul.f32 1.0, %v2040
    %v2042 = vtanh.pop %v2035
    %v2043 = vmul.f32 %v2041, %v1953
    %2045 = vrot.lane.b32.xlu0 %v2042, 96
    %v2046 = vpop.permute.xlu0 %2045
    %v2048 = vmul.f32 %v2041, %v2046
    %2050 = vrot.lane.b32.xlu0 %v2048, 16
    %v2051 = vpop.permute.xlu0 %2050
    %v2053 = vadd.f32 %v2043, %v2051
    %v2054 = vtanh.pop %v2053
    %2056 = vrot.lane.b32.xlu0 %v2054, 32
    %v2057 = vpop.permute.xlu0 %2056
    %v2059 = vmul.f32 %v2041, %v2057
    %2061 = vrot.lane.b32.xlu0 %v2059, 80
    %v2062 = vpop.permute.xlu0 %2061
    %v2063 = vsel %vm685, %v2062, 0
    %2065 = vmatprep.subr.mxu0 0.0
    %2066 = vmatpush1.msra.mxu0 %v77
    %2067 = vmatprep.subr.mxu0 0.0
    %2068 = vmatpush1.msra.mxu0 %v78
    %2069 = vmatprep.subr.mxu0 0.0
    %2070 = vmatpush1.msra.mxu0 0.0
    %2071 = vmatprep.subr.mxu0 0.0
    %2072 = vmatpush1.msra.mxu0 0.0
    %2073 = vmatprep.subr.mxu0 0.0
    %2074 = vmatpush1.msra.mxu0 0.0
    %2075 = vmatprep.subr.mxu0 0.0
    %2076 = vmatpush1.msra.mxu0 0.0
    %2077 = vmatprep.subr.mxu0 0.0
    %2078 = vmatpush1.msra.mxu0 0.0
    %2079 = vmatprep.subr.mxu0 0.0
    %2080 = vmatpush1.msra.mxu0 0.0
    %2081 = vmatprep.subr.mxu0 0.0
    %2082 = vmatpush1.msra.mxu0 0.0
    %2083 = vmatprep.subr.mxu0 0.0
    %2084 = vmatpush1.msra.mxu0 0.0
    %2085 = vmatprep.subr.mxu0 0.0
    %2086 = vmatpush1.msra.mxu0 0.0
    %2087 = vmatprep.subr.mxu0 0.0
    %2088 = vmatpush1.msra.mxu0 0.0
    %2089 = vmatprep.subr.mxu0 0.0
    %2090 = vmatpush1.msra.mxu0 0.0
    %2091 = vmatprep.subr.mxu0 0.0
    %2092 = vmatpush1.msra.mxu0 0.0
    %2093 = vmatprep.subr.mxu0 0.0
    %2094 = vmatpush1.msra.mxu0 0.0
    %2095 = vmatprep.subr.mxu0 0.0
    %2096 = vmatpush1.msra.mxu0 0.0
    %2097 = vmatprep.subr.mxu0 0.0
    %2098 = vmatpush1.msra.mxu0 0.0
    %2099 = vmatprep.subr.mxu0 0.0
    %2100 = vmatpush1.msra.mxu0 0.0
    %2101 = vmatprep.subr.mxu0 0.0
    %2102 = vmatpush1.msra.mxu0 0.0
    %2103 = vmatprep.subr.mxu0 0.0
    %2104 = vmatpush1.msra.mxu0 0.0
    %2105 = vmatprep.subr.mxu0 0.0
    %2106 = vmatpush1.msra.mxu0 0.0
    %2107 = vmatprep.subr.mxu0 0.0
    %2108 = vmatpush1.msra.mxu0 0.0
    %2109 = vmatprep.subr.mxu0 0.0
    %2110 = vmatpush1.msra.mxu0 0.0
    %2111 = vmatprep.subr.mxu0 0.0
    %2112 = vmatpush1.msra.mxu0 0.0
    %2113 = vmatprep.subr.mxu0 0.0
    %2114 = vmatpush1.msra.mxu0 0.0
    %2115 = vmatprep.subr.mxu0 0.0
    %2116 = vmatpush1.msra.mxu0 0.0
    %2117 = vmatprep.subr.mxu0 0.0
    %2118 = vmatpush1.msra.mxu0 0.0
    %2119 = vmatprep.subr.mxu0 0.0
    %2120 = vmatpush1.msra.mxu0 0.0
    %2121 = vmatprep.subr.mxu0 0.0
    %2122 = vmatpush1.msra.mxu0 0.0
    %2123 = vmatprep.subr.mxu0 0.0
    %2124 = vmatpush1.msra.mxu0 0.0
    %2125 = vmatprep.subr.mxu0 0.0
    %2126 = vmatpush1.msra.mxu0 0.0
    %2127 = vmatprep.subr.mxu0 0.0
    %2128 = vmatpush1.msra.mxu0 0.0
    %2129 = vmatprep.mubr.f32.mxu0 0.0
    %2130 = vmatmul.mubr.f32.gmra.mrb[0].mxu0 %v2063
    %v2131 = vpop.f32.mrb[0].mxu0
    %v2132 = vadd.f32 0.0, %v2131
    %v2133 = vpop.f32.mrb[0].mxu0
    %2134 = vdwg.mxu0
    %v2135 = vadd.f32 %v1562, %v2132
    %v2136 = vxor.u32 %v2135, 2147483648
    %v2137 = vmul.f32 %v2136, 1.442695
    %v2138 = vpow.pop %v2137
    %v2139 = vadd.f32 %v2138, 1.0
    %v2140 = vrcp.pop %v2139
    %v2141 = vmul.f32 1.0, %v2140
    %v2142 = vtanh.pop %v2135
    %v2143 = vmul.f32 %v2141, %v2053
    %2145 = vrot.lane.b32.xlu0 %v2142, 96
    %v2146 = vpop.permute.xlu0 %2145
    %v2148 = vmul.f32 %v2141, %v2146
    %2150 = vrot.lane.b32.xlu0 %v2148, 16
    %v2151 = vpop.permute.xlu0 %2150
    %v2153 = vadd.f32 %v2143, %v2151
    %v2154 = vtanh.pop %v2153
    %2156 = vrot.lane.b32.xlu0 %v2154, 32
    %v2157 = vpop.permute.xlu0 %2156
    %v2159 = vmul.f32 %v2141, %v2157
    %v2161 = vlaneseq
    %v2162 = vshrl.u32 %v2161, 7
    %v2163 = vsub.s32 0, %v2162
    %v2164 = vrot.slane %v82, %v2163
    %2166 = vmatprep.subr.mxu0 0.0
    %2167 = vmatpush1.msra.mxu0 %v80
    %2168 = vmatprep.subr.mxu0 0.0
    %2169 = vmatpush1.msra.mxu0 %v81
    %2170 = vmatprep.subr.mxu0 0.0
    %2171 = vmatpush1.msra.mxu0 0.0
    %2172 = vmatprep.subr.mxu0 0.0
    %2173 = vmatpush1.msra.mxu0 0.0
    %2174 = vmatprep.subr.mxu0 0.0
    %2175 = vmatpush1.msra.mxu0 0.0
    %2176 = vmatprep.subr.mxu0 0.0
    %2177 = vmatpush1.msra.mxu0 0.0
    %2178 = vmatprep.subr.mxu0 0.0
    %2179 = vmatpush1.msra.mxu0 0.0
    %2180 = vmatprep.subr.mxu0 0.0
    %2181 = vmatpush1.msra.mxu0 0.0
    %2182 = vmatprep.subr.mxu0 0.0
    %2183 = vmatpush1.msra.mxu0 0.0
    %2184 = vmatprep.subr.mxu0 0.0
    %2185 = vmatpush1.msra.mxu0 0.0
    %2186 = vmatprep.subr.mxu0 0.0
    %2187 = vmatpush1.msra.mxu0 0.0
    %2188 = vmatprep.subr.mxu0 0.0
    %2189 = vmatpush1.msra.mxu0 0.0
    %2190 = vmatprep.subr.mxu0 0.0
    %2191 = vmatpush1.msra.mxu0 0.0
    %2192 = vmatprep.subr.mxu0 0.0
    %2193 = vmatpush1.msra.mxu0 0.0
    %2194 = vmatprep.subr.mxu0 0.0
    %2195 = vmatpush1.msra.mxu0 0.0
    %2196 = vmatprep.subr.mxu0 0.0
    %2197 = vmatpush1.msra.mxu0 0.0
    %2198 = vmatprep.subr.mxu0 0.0
    %2199 = vmatpush1.msra.mxu0 0.0
    %2200 = vmatprep.subr.mxu0 0.0
    %2201 = vmatpush1.msra.mxu0 0.0
    %2202 = vmatprep.subr.mxu0 0.0
    %2203 = vmatpush1.msra.mxu0 0.0
    %2204 = vmatprep.subr.mxu0 0.0
    %2205 = vmatpush1.msra.mxu0 0.0
    %2206 = vmatprep.subr.mxu0 0.0
    %2207 = vmatpush1.msra.mxu0 0.0
    %2208 = vmatprep.subr.mxu0 0.0
    %2209 = vmatpush1.msra.mxu0 0.0
    %2210 = vmatprep.subr.mxu0 0.0
    %2211 = vmatpush1.msra.mxu0 0.0
    %2212 = vmatprep.subr.mxu0 0.0
    %2213 = vmatpush1.msra.mxu0 0.0
    %2214 = vmatprep.subr.mxu0 0.0
    %2215 = vmatpush1.msra.mxu0 0.0
    %2216 = vmatprep.subr.mxu0 0.0
    %2217 = vmatpush1.msra.mxu0 0.0
    %2218 = vmatprep.subr.mxu0 0.0
    %2219 = vmatpush1.msra.mxu0 0.0
    %2220 = vmatprep.subr.mxu0 0.0
    %2221 = vmatpush1.msra.mxu0 0.0
    %2222 = vmatprep.subr.mxu0 0.0
    %2223 = vmatpush1.msra.mxu0 0.0
    %2224 = vmatprep.subr.mxu0 0.0
    %2225 = vmatpush1.msra.mxu0 0.0
    %2226 = vmatprep.subr.mxu0 0.0
    %2227 = vmatpush1.msra.mxu0 0.0
    %2228 = vmatprep.subr.mxu0 0.0
    %2229 = vmatpush1.msra.mxu0 0.0
    %2230 = vmatprep.mubr.f32.mxu0 0.0
    %2231 = vmatmul.mubr.f32.gmra.mrb[0].mxu0 %v1663
    %v2232 = vpop.f32.mrb[0].mxu0
    %v2233 = vadd.f32 %v2164, %v2232
    %v2234 = vpop.f32.mrb[0].mxu0
    %2235 = vdwg.mxu0
    %2236 = vmatprep.subr.mxu0 0.0
    %2237 = vmatpush1.msra.mxu0 %v80
    %2238 = vmatprep.subr.mxu0 0.0
    %2239 = vmatpush1.msra.mxu0 %v81
    %2240 = vmatprep.subr.mxu0 0.0
    %2241 = vmatpush1.msra.mxu0 0.0
    %2242 = vmatprep.subr.mxu0 0.0
    %2243 = vmatpush1.msra.mxu0 0.0
    %2244 = vmatprep.subr.mxu0 0.0
    %2245 = vmatpush1.msra.mxu0 0.0
    %2246 = vmatprep.subr.mxu0 0.0
    %2247 = vmatpush1.msra.mxu0 0.0
    %2248 = vmatprep.subr.mxu0 0.0
    %2249 = vmatpush1.msra.mxu0 0.0
    %2250 = vmatprep.subr.mxu0 0.0
    %2251 = vmatpush1.msra.mxu0 0.0
    %2252 = vmatprep.subr.mxu0 0.0
    %2253 = vmatpush1.msra.mxu0 0.0
    %2254 = vmatprep.subr.mxu0 0.0
    %2255 = vmatpush1.msra.mxu0 0.0
    %2256 = vmatprep.subr.mxu0 0.0
    %2257 = vmatpush1.msra.mxu0 0.0
    %2258 = vmatprep.subr.mxu0 0.0
    %2259 = vmatpush1.msra.mxu0 0.0
    %2260 = vmatprep.subr.mxu0 0.0
    %2261 = vmatpush1.msra.mxu0 0.0
    %2262 = vmatprep.subr.mxu0 0.0
    %2263 = vmatpush1.msra.mxu0 0.0
    %2264 = vmatprep.subr.mxu0 0.0
    %2265 = vmatpush1.msra.mxu0 0.0
    %2266 = vmatprep.subr.mxu0 0.0
    %2267 = vmatpush1.msra.mxu0 0.0
    %2268 = vmatprep.subr.mxu0 0.0
    %2269 = vmatpush1.msra.mxu0 0.0
    %2270 = vmatprep.subr.mxu0 0.0
    %2271 = vmatpush1.msra.mxu0 0.0
    %2272 = vmatprep.subr.mxu0 0.0
    %2273 = vmatpush1.msra.mxu0 0.0
    %2274 = vmatprep.subr.mxu0 0.0
    %2275 = vmatpush1.msra.mxu0 0.0
    %2276 = vmatprep.subr.mxu0 0.0
    %2277 = vmatpush1.msra.mxu0 0.0
    %2278 = vmatprep.subr.mxu0 0.0
    %2279 = vmatpush1.msra.mxu0 0.0
    %2280 = vmatprep.subr.mxu0 0.0
    %2281 = vmatpush1.msra.mxu0 0.0
    %2282 = vmatprep.subr.mxu0 0.0
    %2283 = vmatpush1.msra.mxu0 0.0
    %2284 = vmatprep.subr.mxu0 0.0
    %2285 = vmatpush1.msra.mxu0 0.0
    %2286 = vmatprep.subr.mxu0 0.0
    %2287 = vmatpush1.msra.mxu0 0.0
    %2288 = vmatprep.subr.mxu0 0.0
    %2289 = vmatpush1.msra.mxu0 0.0
    %2290 = vmatprep.subr.mxu0 0.0
    %2291 = vmatpush1.msra.mxu0 0.0
    %2292 = vmatprep.subr.mxu0 0.0
    %2293 = vmatpush1.msra.mxu0 0.0
    %2294 = vmatprep.subr.mxu0 0.0
    %2295 = vmatpush1.msra.mxu0 0.0
    %2296 = vmatprep.subr.mxu0 0.0
    %2297 = vmatpush1.msra.mxu0 0.0
    %2298 = vmatprep.subr.mxu0 0.0
    %2299 = vmatpush1.msra.mxu0 0.0
    %2300 = vmatprep.mubr.f32.mxu0 0.0
    %2301 = vmatmul.mubr.f32.gmra.mrb[0].mxu0 %v1763
    %v2302 = vpop.f32.mrb[0].mxu0
    %v2303 = vadd.f32 %v2164, %v2302
    %v2304 = vpop.f32.mrb[0].mxu0
    %2305 = vdwg.mxu0
    %2306 = vmatprep.subr.mxu0 0.0
    %2307 = vmatpush1.msra.mxu0 %v80
    %2308 = vmatprep.subr.mxu0 0.0
    %2309 = vmatpush1.msra.mxu0 %v81
    %2310 = vmatprep.subr.mxu0 0.0
    %2311 = vmatpush1.msra.mxu0 0.0
    %2312 = vmatprep.subr.mxu0 0.0
    %2313 = vmatpush1.msra.mxu0 0.0
    %2314 = vmatprep.subr.mxu0 0.0
    %2315 = vmatpush1.msra.mxu0 0.0
    %2316 = vmatprep.subr.mxu0 0.0
    %2317 = vmatpush1.msra.mxu0 0.0
    %2318 = vmatprep.subr.mxu0 0.0
    %2319 = vmatpush1.msra.mxu0 0.0
    %2320 = vmatprep.subr.mxu0 0.0
    %2321 = vmatpush1.msra.mxu0 0.0
    %2322 = vmatprep.subr.mxu0 0.0
    %2323 = vmatpush1.msra.mxu0 0.0
    %2324 = vmatprep.subr.mxu0 0.0
    %2325 = vmatpush1.msra.mxu0 0.0
    %2326 = vmatprep.subr.mxu0 0.0
    %2327 = vmatpush1.msra.mxu0 0.0
    %2328 = vmatprep.subr.mxu0 0.0
    %2329 = vmatpush1.msra.mxu0 0.0
    %2330 = vmatprep.subr.mxu0 0.0
    %2331 = vmatpush1.msra.mxu0 0.0
    %2332 = vmatprep.subr.mxu0 0.0
    %2333 = vmatpush1.msra.mxu0 0.0
    %2334 = vmatprep.subr.mxu0 0.0
    %2335 = vmatpush1.msra.mxu0 0.0
    %2336 = vmatprep.subr.mxu0 0.0
    %2337 = vmatpush1.msra.mxu0 0.0
    %2338 = vmatprep.subr.mxu0 0.0
    %2339 = vmatpush1.msra.mxu0 0.0
    %2340 = vmatprep.subr.mxu0 0.0
    %2341 = vmatpush1.msra.mxu0 0.0
    %2342 = vmatprep.subr.mxu0 0.0
    %2343 = vmatpush1.msra.mxu0 0.0
    %2344 = vmatprep.subr.mxu0 0.0
    %2345 = vmatpush1.msra.mxu0 0.0
    %2346 = vmatprep.subr.mxu0 0.0
    %2347 = vmatpush1.msra.mxu0 0.0
    %2348 = vmatprep.subr.mxu0 0.0
    %2349 = vmatpush1.msra.mxu0 0.0
    %2350 = vmatprep.subr.mxu0 0.0
    %2351 = vmatpush1.msra.mxu0 0.0
    %2352 = vmatprep.subr.mxu0 0.0
    %2353 = vmatpush1.msra.mxu0 0.0
    %2354 = vmatprep.subr.mxu0 0.0
    %2355 = vmatpush1.msra.mxu0 0.0
    %2356 = vmatprep.subr.mxu0 0.0
    %2357 = vmatpush1.msra.mxu0 0.0
    %2358 = vmatprep.subr.mxu0 0.0
    %2359 = vmatpush1.msra.mxu0 0.0
    %2360 = vmatprep.subr.mxu0 0.0
    %2361 = vmatpush1.msra.mxu0 0.0
    %2362 = vmatprep.subr.mxu0 0.0
    %2363 = vmatpush1.msra.mxu0 0.0
    %2364 = vmatprep.subr.mxu0 0.0
    %2365 = vmatpush1.msra.mxu0 0.0
    %2366 = vmatprep.subr.mxu0 0.0
    %2367 = vmatpush1.msra.mxu0 0.0
    %2368 = vmatprep.subr.mxu0 0.0
    %2369 = vmatpush1.msra.mxu0 0.0
    %2370 = vmatprep.mubr.f32.mxu0 0.0
    %2371 = vmatmul.mubr.f32.gmra.mrb[0].mxu0 %v1863
    %v2372 = vpop.f32.mrb[0].mxu0
    %v2373 = vadd.f32 %v2164, %v2372
    %v2374 = vpop.f32.mrb[0].mxu0
    %2375 = vdwg.mxu0
    %2376 = vmatprep.subr.mxu0 0.0
    %2377 = vmatpush1.msra.mxu0 %v80
    %2378 = vmatprep.subr.mxu0 0.0
    %2379 = vmatpush1.msra.mxu0 %v81
    %2380 = vmatprep.subr.mxu0 0.0
    %2381 = vmatpush1.msra.mxu0 0.0
    %2382 = vmatprep.subr.mxu0 0.0
    %2383 = vmatpush1.msra.mxu0 0.0
    %2384 = vmatprep.subr.mxu0 0.0
    %2385 = vmatpush1.msra.mxu0 0.0
    %2386 = vmatprep.subr.mxu0 0.0
    %2387 = vmatpush1.msra.mxu0 0.0
    %2388 = vmatprep.subr.mxu0 0.0
    %2389 = vmatpush1.msra.mxu0 0.0
    %2390 = vmatprep.subr.mxu0 0.0
    %2391 = vmatpush1.msra.mxu0 0.0
    %2392 = vmatprep.subr.mxu0 0.0
    %2393 = vmatpush1.msra.mxu0 0.0
    %2394 = vmatprep.subr.mxu0 0.0
    %2395 = vmatpush1.msra.mxu0 0.0
    %2396 = vmatprep.subr.mxu0 0.0
    %2397 = vmatpush1.msra.mxu0 0.0
    %2398 = vmatprep.subr.mxu0 0.0
    %2399 = vmatpush1.msra.mxu0 0.0
    %2400 = vmatprep.subr.mxu0 0.0
    %2401 = vmatpush1.msra.mxu0 0.0
    %2402 = vmatprep.subr.mxu0 0.0
    %2403 = vmatpush1.msra.mxu0 0.0
    %2404 = vmatprep.subr.mxu0 0.0
    %2405 = vmatpush1.msra.mxu0 0.0
    %2406 = vmatprep.subr.mxu0 0.0
    %2407 = vmatpush1.msra.mxu0 0.0
    %2408 = vmatprep.subr.mxu0 0.0
    %2409 = vmatpush1.msra.mxu0 0.0
    %2410 = vmatprep.subr.mxu0 0.0
    %2411 = vmatpush1.msra.mxu0 0.0
    %2412 = vmatprep.subr.mxu0 0.0
    %2413 = vmatpush1.msra.mxu0 0.0
    %2414 = vmatprep.subr.mxu0 0.0
    %2415 = vmatpush1.msra.mxu0 0.0
    %2416 = vmatprep.subr.mxu0 0.0
    %2417 = vmatpush1.msra.mxu0 0.0
    %2418 = vmatprep.subr.mxu0 0.0
    %2419 = vmatpush1.msra.mxu0 0.0
    %2420 = vmatprep.subr.mxu0 0.0
    %2421 = vmatpush1.msra.mxu0 0.0
    %2422 = vmatprep.subr.mxu0 0.0
    %2423 = vmatpush1.msra.mxu0 0.0
    %2424 = vmatprep.subr.mxu0 0.0
    %2425 = vmatpush1.msra.mxu0 0.0
    %2426 = vmatprep.subr.mxu0 0.0
    %2427 = vmatpush1.msra.mxu0 0.0
    %2428 = vmatprep.subr.mxu0 0.0
    %2429 = vmatpush1.msra.mxu0 0.0
    %2430 = vmatprep.subr.mxu0 0.0
    %2431 = vmatpush1.msra.mxu0 0.0
    %2432 = vmatprep.subr.mxu0 0.0
    %2433 = vmatpush1.msra.mxu0 0.0
    %2434 = vmatprep.subr.mxu0 0.0
    %2435 = vmatpush1.msra.mxu0 0.0
    %2436 = vmatprep.subr.mxu0 0.0
    %2437 = vmatpush1.msra.mxu0 0.0
    %2438 = vmatprep.subr.mxu0 0.0
    %2439 = vmatpush1.msra.mxu0 0.0
    %2440 = vmatprep.mubr.f32.mxu0 0.0
    %2441 = vmatmul.mubr.f32.gmra.mrb[0].mxu0 %v1963
    %v2442 = vpop.f32.mrb[0].mxu0
    %v2443 = vadd.f32 %v2164, %v2442
    %v2444 = vpop.f32.mrb[0].mxu0
    %2445 = vdwg.mxu0
    %2446 = vmatprep.subr.mxu0 0.0
    %2447 = vmatpush1.msra.mxu0 %v80
    %2448 = vmatprep.subr.mxu0 0.0
    %2449 = vmatpush1.msra.mxu0 %v81
    %2450 = vmatprep.subr.mxu0 0.0
    %2451 = vmatpush1.msra.mxu0 0.0
    %2452 = vmatprep.subr.mxu0 0.0
    %2453 = vmatpush1.msra.mxu0 0.0
    %2454 = vmatprep.subr.mxu0 0.0
    %2455 = vmatpush1.msra.mxu0 0.0
    %2456 = vmatprep.subr.mxu0 0.0
    %2457 = vmatpush1.msra.mxu0 0.0
    %2458 = vmatprep.subr.mxu0 0.0
    %2459 = vmatpush1.msra.mxu0 0.0
    %2460 = vmatprep.subr.mxu0 0.0
    %2461 = vmatpush1.msra.mxu0 0.0
    %2462 = vmatprep.subr.mxu0 0.0
    %2463 = vmatpush1.msra.mxu0 0.0
    %2464 = vmatprep.subr.mxu0 0.0
    %2465 = vmatpush1.msra.mxu0 0.0
    %2466 = vmatprep.subr.mxu0 0.0
    %2467 = vmatpush1.msra.mxu0 0.0
    %2468 = vmatprep.subr.mxu0 0.0
    %2469 = vmatpush1.msra.mxu0 0.0
    %2470 = vmatprep.subr.mxu0 0.0
    %2471 = vmatpush1.msra.mxu0 0.0
    %2472 = vmatprep.subr.mxu0 0.0
    %2473 = vmatpush1.msra.mxu0 0.0
    %2474 = vmatprep.subr.mxu0 0.0
    %2475 = vmatpush1.msra.mxu0 0.0
    %2476 = vmatprep.subr.mxu0 0.0
    %2477 = vmatpush1.msra.mxu0 0.0
    %2478 = vmatprep.subr.mxu0 0.0
    %2479 = vmatpush1.msra.mxu0 0.0
    %2480 = vmatprep.subr.mxu0 0.0
    %2481 = vmatpush1.msra.mxu0 0.0
    %2482 = vmatprep.subr.mxu0 0.0
    %2483 = vmatpush1.msra.mxu0 0.0
    %2484 = vmatprep.subr.mxu0 0.0
    %2485 = vmatpush1.msra.mxu0 0.0
    %2486 = vmatprep.subr.mxu0 0.0
    %2487 = vmatpush1.msra.mxu0 0.0
    %2488 = vmatprep.subr.mxu0 0.0
    %2489 = vmatpush1.msra.mxu0 0.0
    %2490 = vmatprep.subr.mxu0 0.0
    %2491 = vmatpush1.msra.mxu0 0.0
    %2492 = vmatprep.subr.mxu0 0.0
    %2493 = vmatpush1.msra.mxu0 0.0
    %2494 = vmatprep.subr.mxu0 0.0
    %2495 = vmatpush1.msra.mxu0 0.0
    %2496 = vmatprep.subr.mxu0 0.0
    %2497 = vmatpush1.msra.mxu0 0.0
    %2498 = vmatprep.subr.mxu0 0.0
    %2499 = vmatpush1.msra.mxu0 0.0
    %2500 = vmatprep.subr.mxu0 0.0
    %2501 = vmatpush1.msra.mxu0 0.0
    %2502 = vmatprep.subr.mxu0 0.0
    %2503 = vmatpush1.msra.mxu0 0.0
    %2504 = vmatprep.subr.mxu0 0.0
    %2505 = vmatpush1.msra.mxu0 0.0
    %2506 = vmatprep.subr.mxu0 0.0
    %2507 = vmatpush1.msra.mxu0 0.0
    %2508 = vmatprep.subr.mxu0 0.0
    %2509 = vmatpush1.msra.mxu0 0.0
    %2510 = vmatprep.mubr.f32.mxu0 0.0
    %2511 = vmatmul.mubr.f32.gmra.mrb[0].mxu0 %v2063
    %v2512 = vpop.f32.mrb[0].mxu0
    %v2513 = vadd.f32 %v2164, %v2512
    %v2514 = vpop.f32.mrb[0].mxu0
    %2515 = vdwg.mxu0
    %2517 = vrot.lane.b32.xlu0 %v2159, 80
    %v2518 = vpop.permute.xlu0 %2517
    %v2519 = vsel %vm685, %v2518, 0
    %2521 = vmatprep.subr.mxu0 0.0
    %2522 = vmatpush1.msra.mxu0 %v80
    %2523 = vmatprep.subr.mxu0 0.0
    %2524 = vmatpush1.msra.mxu0 %v81
    %2525 = vmatprep.subr.mxu0 0.0
    %2526 = vmatpush1.msra.mxu0 0.0
    %2527 = vmatprep.subr.mxu0 0.0
    %2528 = vmatpush1.msra.mxu0 0.0
    %2529 = vmatprep.subr.mxu0 0.0
    %2530 = vmatpush1.msra.mxu0 0.0
    %2531 = vmatprep.subr.mxu0 0.0
    %2532 = vmatpush1.msra.mxu0 0.0
    %2533 = vmatprep.subr.mxu0 0.0
    %2534 = vmatpush1.msra.mxu0 0.0
    %2535 = vmatprep.subr.mxu0 0.0
    %2536 = vmatpush1.msra.mxu0 0.0
    %2537 = vmatprep.subr.mxu0 0.0
    %2538 = vmatpush1.msra.mxu0 0.0
    %2539 = vmatprep.subr.mxu0 0.0
    %2540 = vmatpush1.msra.mxu0 0.0
    %2541 = vmatprep.subr.mxu0 0.0
    %2542 = vmatpush1.msra.mxu0 0.0
    %2543 = vmatprep.subr.mxu0 0.0
    %2544 = vmatpush1.msra.mxu0 0.0
    %2545 = vmatprep.subr.mxu0 0.0
    %2546 = vmatpush1.msra.mxu0 0.0
    %2547 = vmatprep.subr.mxu0 0.0
    %2548 = vmatpush1.msra.mxu0 0.0
    %2549 = vmatprep.subr.mxu0 0.0
    %2550 = vmatpush1.msra.mxu0 0.0
    %2551 = vmatprep.subr.mxu0 0.0
    %2552 = vmatpush1.msra.mxu0 0.0
    %2553 = vmatprep.subr.mxu0 0.0
    %2554 = vmatpush1.msra.mxu0 0.0
    %2555 = vmatprep.subr.mxu0 0.0
    %2556 = vmatpush1.msra.mxu0 0.0
    %2557 = vmatprep.subr.mxu0 0.0
    %2558 = vmatpush1.msra.mxu0 0.0
    %2559 = vmatprep.subr.mxu0 0.0
    %2560 = vmatpush1.msra.mxu0 0.0
    %2561 = vmatprep.subr.mxu0 0.0
    %2562 = vmatpush1.msra.mxu0 0.0
    %2563 = vmatprep.subr.mxu0 0.0
    %2564 = vmatpush1.msra.mxu0 0.0
    %2565 = vmatprep.subr.mxu0 0.0
    %2566 = vmatpush1.msra.mxu0 0.0
    %2567 = vmatprep.subr.mxu0 0.0
    %2568 = vmatpush1.msra.mxu0 0.0
    %2569 = vmatprep.subr.mxu0 0.0
    %2570 = vmatpush1.msra.mxu0 0.0
    %2571 = vmatprep.subr.mxu0 0.0
    %2572 = vmatpush1.msra.mxu0 0.0
    %2573 = vmatprep.subr.mxu0 0.0
    %2574 = vmatpush1.msra.mxu0 0.0
    %2575 = vmatprep.subr.mxu0 0.0
    %2576 = vmatpush1.msra.mxu0 0.0
    %2577 = vmatprep.subr.mxu0 0.0
    %2578 = vmatpush1.msra.mxu0 0.0
    %2579 = vmatprep.subr.mxu0 0.0
    %2580 = vmatpush1.msra.mxu0 0.0
    %2581 = vmatprep.subr.mxu0 0.0
    %2582 = vmatpush1.msra.mxu0 0.0
    %2583 = vmatprep.subr.mxu0 0.0
    %2584 = vmatpush1.msra.mxu0 0.0
    %2585 = vmatprep.mubr.f32.mxu0 0.0
    %2586 = vmatmul.mubr.f32.gmra.mrb[0].mxu0 %v2519
    %v2587 = vpop.f32.mrb[0].mxu0
    %v2588 = vadd.f32 %v2164, %v2587
    %v2589 = vpop.f32.mrb[0].mxu0
    %2590 = vdwg.mxu0
    %2592 = vrot.lane.b32.xlu0 %v2303, 8
    %v2593 = vpop.permute.xlu0 %2592
    %2596 = vrot.lane.b32.xlu0 %v2373, 16
    %v2597 = vpop.permute.xlu0 %2596
    %2600 = vrot.lane.b32.xlu0 %v2443, 24
    %v2601 = vpop.permute.xlu0 %2600
    %2604 = vrot.lane.b32.xlu0 %v2513, 32
    %v2605 = vpop.permute.xlu0 %2604
    %2608 = vrot.lane.b32.xlu0 %v2588, 40
    %v2609 = vpop.permute.xlu0 %2608
    %vm2611 = vcmask 64512
    %v2612 = vsel %vm2611, %v2233, %v2593
    %v2613 = vsel %vm685, %v2612, %v2597
    %vm2614 = vcmask 195584
    %v2615 = vsel %vm2614, %v2613, %v2601
    %vm2616 = vcmask 261120
    %v2617 = vsel %vm2616, %v2615, %v2605
    %vm2618 = vcmask 326656
    %v2619 = vsel %vm2618, %v2617, %v2609
    %vm2620 = vcmask 386048
    %2621 = vst.msk [vmem:[#allocation8] sm:$0x3] %vm2620, %v2619
    // Predicated region
    $region50: #{tpu_custom_call.1} parent=1 // pred_check
      _
    $region51: #{tpu_custom_call.1} parent=1 // pred_check_branch
      %2623 = sbr.rel (0) target = $region53
    $region52: #{tpu_custom_call.1} parent=1 // pred_region
      %s2625 = ssub.s32 32, 32
      %2626 = vsyncadd [#allocation4], %s2625
      %s2628 = sshll.u32 [#allocation8], 4
      %s2629 = int_to_ptr.vmem [resolvable:$true] %s2628
      %2631 = dma.vmem_to_hbm [thread:$0]  %s2629, 32, %s9, [#allocation4]
    $region53: #{tpu_custom_call.1} parent=1 // pred_fallthru
      _
    // Predicated region
    $region54: #{tpu_custom_call.1} parent=1 // pred_check
      _
    $region55: #{tpu_custom_call.1} parent=1 // pred_check_branch
      %2633 = sbr.rel (0) target = $region57
    $region56: #{tpu_custom_call.1} parent=1 // pred_region
      %2634 = dma.done [#allocation4], 32
    $region57: #{tpu_custom_call.1} parent=1 // pred_fallthru
      _
    %2635 = vsyncpa [#allocation3], 1
    %2636 = vsyncpa [#allocation6], 1
    %2637 = vsyncpa [#allocation4], 1

</llo_original>
